<compile_context>
chip_gen: v6e
topology: v6e:2x2x1
jax: 0.10.0
libtpu: 0.0.40
codegen_flags: <defaults>
</compile_context>

<pallas_src>
import functools

import jax
import jax.numpy as jnp
import numpy as np
from jax.experimental import pallas as pl
from jax.experimental.pallas import tpu as pltpu

EPS = 1e-6
LANE = 128


def _round_up(x, m):
    return (x + m - 1) // m * m


def block_kernel(xpad_ref, dww_ref, dwb_ref, lnw_ref, lnb_ref,
                 w1_ref, b1_ref, w2_ref, b2_ref, gamma_ref, out_ref,
                 *, C, TH):
    # out_ref block: (1, TH, W, Cp)  -- Cp is the lane-padded channel count
    _, _, W, Cp = out_ref.shape
    r = pl.program_id(1)
    row0 = r * TH
    if TH % 8 == 0:
        row0 = pl.multiple_of(row0, 8)

    # Load the (TH+6, W+6, Cp) halo band for this row tile once; the residual is reused
    # from the same band (no second input stream / no extra HBM traffic).
    xb = xpad_ref[0, pl.ds(row0, TH + 6), :, :].astype(jnp.float32)

    dww = dww_ref[...].astype(jnp.float32)                    # (49, Cp)

    # ---- depthwise 7x7 conv (padding=3, groups=C) ----
    acc = jnp.zeros((TH, W, Cp), jnp.float32) + dwb_ref[0]
    for dy in range(7):
        band = xb[dy:dy + TH]                                 # (TH, W+6, Cp), one band per dy
        for dx in range(7):
            acc = acc + band[:, dx:dx + W, :] * dww[dy * 7 + dx]
    # TODO(synk): generate the 7 dx shifts with pltpu.roll along the sublane (W) axis to
    # move shift work onto the XLU instead of re-slicing the band 7 times per dy.

    # ---- LayerNorm over channels (channels_first semantics) ----
    # Padded channels of `acc` are exactly zero (weights/bias/input zero-padded), so
    # sums over Cp equal sums over the real C channels; fuse sum and sum-of-squares.
    a2 = acc.reshape(TH * W, Cp)
    inv_c = jnp.float32(1.0 / C)
    mu = jnp.sum(a2, axis=-1, keepdims=True) * inv_c
    msq = jnp.sum(a2 * a2, axis=-1, keepdims=True) * inv_c
    var = msq - mu * mu
    xn = (a2 - mu) * jax.lax.rsqrt(var + EPS)
    xn = xn * lnw_ref[0] + lnb_ref[0]                         # padded lanes -> 0 again

    # ---- pointwise MLP: Linear(C->4C) -> exact GELU -> Linear(4C->C) ----
    # bf16 operands on the MXU, f32 accumulation.
    h = jnp.dot(xn.astype(jnp.bfloat16), w1_ref[...],
                preferred_element_type=jnp.float32) + b1_ref[0]
    h = 0.5 * h * (1.0 + jax.lax.erf(h * 0.7071067811865476))  # nn.GELU (exact)
    y = jnp.dot(h.astype(jnp.bfloat16), w2_ref[...],
                preferred_element_type=jnp.float32) + b2_ref[0]

    # ---- layer scale (gamma) + residual (interior of the halo band) ----
    y = (y * gamma_ref[0]).reshape(TH, W, Cp)
    res = xb[3:3 + TH, 3:3 + W, :]
    out_ref[0] = (res + y).astype(out_ref.dtype)


def convnext_block(x_nchw, params, *, row_tile=8):
    """x_nchw: (N, C, H, W). Returns (N, C, H, W)."""
    N, C, H, W = x_nchw.shape
    Cp = _round_up(C, LANE)               # lane-dense channels
    Hd = 4 * C
    Hp = _round_up(Hd, LANE)              # lane-dense hidden width
    TH = row_tile if (H % row_tile == 0 and row_tile % 8 == 0) else H
    n_row = H // TH

    # Single fused relayout: NCHW -> NHWC, 3-px spatial halo pad, channel pad to 128 lanes.
    x = jnp.transpose(x_nchw, (0, 2, 3, 1))
    xpad = jnp.pad(x, ((0, 0), (3, 3), (3, 3), (0, Cp - C)))

    def padc(v):                          # (C,) -> (1, Cp), zero-padded
        return jnp.pad(v, (0, Cp - C))[None]

    dww = jnp.pad(params["dw_w49"], ((0, 0), (0, Cp - C)))                    # (49, Cp)
    dwb = padc(params["dw_b"])
    lnw = padc(params["ln_w"])
    lnb = padc(params["ln_b"])
    gamma = padc(params["gamma"])
    b2 = padc(params["b2"])
    b1 = jnp.pad(params["b1"], (0, Hp - Hd))[None]                            # (1, Hp)
    w1 = jnp.pad(params["w1"], ((0, Cp - C), (0, Hp - Hd))).astype(jnp.bfloat16)  # (Cp, Hp)
    w2 = jnp.pad(params["w2"], ((0, Hp - Hd), (0, Cp - C))).astype(jnp.bfloat16)  # (Hp, Cp)

    # rough per-step VMEM footprint (double-buffered blocks + intermediates) w/ headroom
    in_blk = (H + 6) * (W + 6) * Cp * 4
    out_blk = TH * W * Cp * 4
    wts = 49 * Cp * 4 + 2 * Cp * Hp * 2 + 8 * Cp * 4 + Hp * 4
    interm = (TH + 6) * (W + 6) * Cp * 4 + TH * W * Hp * 4 + 4 * TH * W * Cp * 4
    vmem_limit = int(min(96 * 1024 * 1024,
                         max(32 * 1024 * 1024,
                             3 * (2 * in_blk + 2 * out_blk + 2 * wts + interm))))

    kernel = functools.partial(block_kernel, C=C, TH=TH)

    out = pl.pallas_call(
        kernel,
        out_shape=jax.ShapeDtypeStruct((N, H, W, Cp), x.dtype),
        grid_spec=pltpu.PrefetchScalarGridSpec(
            num_scalar_prefetch=0,
            grid=(N, n_row),
            in_specs=[
                # whole padded image, resident across the row-tile axis (halo rows sliced
                # in-kernel), fetched once per batch element
                pl.BlockSpec((1, H + 6, W + 6, Cp), lambda b, r: (b, 0, 0, 0)),
                pl.BlockSpec((49, Cp), lambda b, r: (0, 0)),   # dw weights
                pl.BlockSpec((1, Cp), lambda b, r: (0, 0)),    # dw bias
                pl.BlockSpec((1, Cp), lambda b, r: (0, 0)),    # ln weight
                pl.BlockSpec((1, Cp), lambda b, r: (0, 0)),    # ln bias
                pl.BlockSpec((Cp, Hp), lambda b, r: (0, 0)),   # pwconv1 W (bf16)
                pl.BlockSpec((1, Hp), lambda b, r: (0, 0)),    # pwconv1 b
                pl.BlockSpec((Hp, Cp), lambda b, r: (0, 0)),   # pwconv2 W (bf16)
                pl.BlockSpec((1, Cp), lambda b, r: (0, 0)),    # pwconv2 b
                pl.BlockSpec((1, Cp), lambda b, r: (0, 0)),    # gamma
            ],
            out_specs=pl.BlockSpec((1, TH, W, Cp), lambda b, r: (b, r, 0, 0)),
        ),
        compiler_params=pltpu.CompilerParams(
            dimension_semantics=("parallel", "parallel"),
            vmem_limit_bytes=vmem_limit,
        ),
    )(xpad, dww, dwb, lnw, lnb, w1, b1, w2, b2, gamma)

    return jnp.transpose(out[..., :C], (0, 3, 1, 2))           # back to NCHW


def reference(x_nchw, params):
    """Pure-JAX reference mirroring the PyTorch Block.forward (NCHW)."""
    C = x_nchw.shape[1]
    w = params["dw_w_c77"][:, None, :, :]                      # (C,1,7,7)
    y = jax.lax.conv_general_dilated(
        x_nchw, w, (1, 1), [(3, 3), (3, 3)],
        dimension_numbers=("NCHW", "OIHW", "NCHW"), feature_group_count=C)
    y = y + params["dw_b"][None, :, None, None]
    u = y.mean(1, keepdims=True)
    s = ((y - u) ** 2).mean(1, keepdims=True)
    y = (y - u) / jnp.sqrt(s + EPS)
    y = params["ln_w"][None, :, None, None] * y + params["ln_b"][None, :, None, None]
    y = jnp.transpose(y, (0, 2, 3, 1))
    y = y @ params["w1"] + params["b1"]
    y = jax.nn.gelu(y, approximate=False)
    y = y @ params["w2"] + params["b2"]
    y = params["gamma"] * y
    y = jnp.transpose(y, (0, 3, 1, 2))
    return x_nchw + y


if __name__ == "__main__":
    N, C, H, W = 2, 8, 16, 16   # dim=8 -> hidden 4*dim=32

    key = jax.random.PRNGKey(0)
    ks = jax.random.split(key, 9)
    dw_w_c77 = 0.1 * jax.random.normal(ks[0], (C, 7, 7), jnp.float32)   # Conv2d(dim,dim,7,groups=dim)
    dw_b = 0.1 * jax.random.normal(ks[1], (C,), jnp.float32)
    ln_w = 1.0 + 0.1 * jax.random.normal(ks[2], (C,), jnp.float32)
    ln_b = 0.1 * jax.random.normal(ks[3], (C,), jnp.float32)
    w1 = 0.1 * jax.random.normal(ks[4], (C, 4 * C), jnp.float32)        # Linear(dim, 4*dim) (transposed)
    b1 = 0.1 * jax.random.normal(ks[5], (4 * C,), jnp.float32)
    w2 = 0.1 * jax.random.normal(ks[6], (4 * C, C), jnp.float32)        # Linear(4*dim, dim) (transposed)
    b2 = 0.1 * jax.random.normal(ks[7], (C,), jnp.float32)
    # PyTorch inits gamma = layer_scale_init_value (1e-6) * ones; use a larger value so the
    # MLP branch contributes measurably to the correctness check.
    gamma = jnp.full((C,), 0.1, jnp.float32)

    params = dict(
        dw_w_c77=dw_w_c77,
        dw_w49=jnp.transpose(dw_w_c77, (1, 2, 0)).reshape(49, C),
        dw_b=dw_b, ln_w=ln_w, ln_b=ln_b,
        w1=w1, b1=b1, w2=w2, b2=b2, gamma=gamma,
    )

    x = jax.random.normal(ks[8], (N, C, H, W), jnp.float32)

    out = jax.block_until_ready(convnext_block(x, params))
    ref = jax.block_until_ready(reference(x, params))

    assert out.shape == x.shape and out.dtype == x.dtype
    np.testing.assert_allclose(np.asarray(out), np.asarray(ref), atol=2e-3, rtol=2e-3)
    print("KERNEL_OK")
</pallas_src>

<mosaic_0001>
module attributes {stable_mosaic.version = 11 : i64} {
  func.func @block_kernel(%arg0: i32, %arg1: i32, %arg2: memref<1x22x22x128xf32, #tpu.memory_space<vmem>>, %arg3: memref<49x128xf32, #tpu.memory_space<vmem>>, %arg4: memref<1x128xf32, #tpu.memory_space<vmem>>, %arg5: memref<1x128xf32, #tpu.memory_space<vmem>>, %arg6: memref<1x128xf32, #tpu.memory_space<vmem>>, %arg7: memref<128x128xbf16, #tpu.memory_space<vmem>>, %arg8: memref<1x128xf32, #tpu.memory_space<vmem>>, %arg9: memref<128x128xbf16, #tpu.memory_space<vmem>>, %arg10: memref<1x128xf32, #tpu.memory_space<vmem>>, %arg11: memref<1x128xf32, #tpu.memory_space<vmem>>, %arg12: memref<1x8x16x128xf32, #tpu.memory_space<vmem>>) attributes {dimension_semantics = [#tpu.dimension_semantics<parallel>, #tpu.dimension_semantics<parallel>], iteration_bounds = array<i64: 2, 2>, scalar_prefetch = 0 : i64, scratch_operands = 0 : i64, tpu.core_type = #tpu.core_type<tc>, window_params = [{transform_indices = @transform_0, window_bounds = array<i64: 1, 22, 22, 128>}, {pipeline_mode = #tpu.pipeline_mode<synchronous>, transform_indices = @transform_1, window_bounds = array<i64: 49, 128>}, {pipeline_mode = #tpu.pipeline_mode<synchronous>, transform_indices = @transform_2, window_bounds = array<i64: 1, 128>}, {pipeline_mode = #tpu.pipeline_mode<synchronous>, transform_indices = @transform_3, window_bounds = array<i64: 1, 128>}, {pipeline_mode = #tpu.pipeline_mode<synchronous>, transform_indices = @transform_4, window_bounds = array<i64: 1, 128>}, {pipeline_mode = #tpu.pipeline_mode<synchronous>, transform_indices = @transform_5, window_bounds = array<i64: 128, 128>}, {pipeline_mode = #tpu.pipeline_mode<synchronous>, transform_indices = @transform_6, window_bounds = array<i64: 1, 128>}, {pipeline_mode = #tpu.pipeline_mode<synchronous>, transform_indices = @transform_7, window_bounds = array<i64: 128, 128>}, {pipeline_mode = #tpu.pipeline_mode<synchronous>, transform_indices = @transform_8, window_bounds = array<i64: 1, 128>}, {pipeline_mode = #tpu.pipeline_mode<synchronous>, transform_indices = @transform_9, window_bounds = array<i64: 1, 128>}, {transform_indices = @transform_10, window_bounds = array<i64: 1, 8, 16, 128>}]} {
    %c8_i32 = arith.constant 8 : i32
    %0 = arith.muli %arg1, %c8_i32 : i32
    %1 = tpu.assume_multiple %0, 8 : i32
    %c0 = arith.constant 0 : index
    %2 = arith.index_cast %1 : i32 to index
    %c0_0 = arith.constant 0 : index
    %c0_1 = arith.constant 0 : index
    %3 = vector.load %arg2[%c0, %2, %c0_0, %c0_1] : memref<1x22x22x128xf32, #tpu.memory_space<vmem>>, vector<1x14x22x128xf32>
    %4 = vector.shape_cast %3 : vector<1x14x22x128xf32> to vector<14x22x128xf32>
    %c0_2 = arith.constant 0 : index
    %c0_3 = arith.constant 0 : index
    %5 = vector.load %arg3[%c0_2, %c0_3] : memref<49x128xf32, #tpu.memory_space<vmem>>, vector<49x128xf32>
    %cst = arith.constant 0.000000e+00 : f32
    %6 = vector.broadcast %cst : f32 to vector<8x16x128xf32>
    %c0_4 = arith.constant 0 : index
    %c0_5 = arith.constant 0 : index
    %7 = vector.load %arg4[%c0_4, %c0_5] : memref<1x128xf32, #tpu.memory_space<vmem>>, vector<1x128xf32>
    %8 = vector.shape_cast %7 : vector<1x128xf32> to vector<128xf32>
    %9 = vector.shape_cast %8 : vector<128xf32> to vector<1x1x128xf32>
    %10 = vector.broadcast %9 : vector<1x1x128xf32> to vector<8x16x128xf32>
    %11 = arith.addf %6, %10 : vector<8x16x128xf32>
    %12 = vector.extract_strided_slice %4 {offsets = [0, 0, 0], sizes = [8, 22, 128], strides = [1, 1, 1]} : vector<14x22x128xf32> to vector<8x22x128xf32>
    %13 = vector.extract_strided_slice %12 {offsets = [0, 0, 0], sizes = [8, 16, 128], strides = [1, 1, 1]} : vector<8x22x128xf32> to vector<8x16x128xf32>
    %14 = vector.extract_strided_slice %5 {offsets = [0, 0], sizes = [1, 128], strides = [1, 1]} : vector<49x128xf32> to vector<1x128xf32>
    %15 = vector.shape_cast %14 : vector<1x128xf32> to vector<128xf32>
    %16 = vector.shape_cast %15 : vector<128xf32> to vector<1x1x128xf32>
    %17 = vector.broadcast %16 : vector<1x1x128xf32> to vector<8x16x128xf32>
    %18 = arith.mulf %13, %17 : vector<8x16x128xf32>
    %19 = arith.addf %11, %18 : vector<8x16x128xf32>
    %20 = vector.extract_strided_slice %12 {offsets = [0, 1, 0], sizes = [8, 16, 128], strides = [1, 1, 1]} : vector<8x22x128xf32> to vector<8x16x128xf32>
    %21 = vector.extract_strided_slice %5 {offsets = [1, 0], sizes = [1, 128], strides = [1, 1]} : vector<49x128xf32> to vector<1x128xf32>
    %22 = vector.shape_cast %21 : vector<1x128xf32> to vector<128xf32>
    %23 = vector.shape_cast %22 : vector<128xf32> to vector<1x1x128xf32>
    %24 = vector.broadcast %23 : vector<1x1x128xf32> to vector<8x16x128xf32>
    %25 = arith.mulf %20, %24 : vector<8x16x128xf32>
    %26 = arith.addf %19, %25 : vector<8x16x128xf32>
    %27 = vector.extract_strided_slice %12 {offsets = [0, 2, 0], sizes = [8, 16, 128], strides = [1, 1, 1]} : vector<8x22x128xf32> to vector<8x16x128xf32>
    %28 = vector.extract_strided_slice %5 {offsets = [2, 0], sizes = [1, 128], strides = [1, 1]} : vector<49x128xf32> to vector<1x128xf32>
    %29 = vector.shape_cast %28 : vector<1x128xf32> to vector<128xf32>
    %30 = vector.shape_cast %29 : vector<128xf32> to vector<1x1x128xf32>
    %31 = vector.broadcast %30 : vector<1x1x128xf32> to vector<8x16x128xf32>
    %32 = arith.mulf %27, %31 : vector<8x16x128xf32>
    %33 = arith.addf %26, %32 : vector<8x16x128xf32>
    %34 = vector.extract_strided_slice %12 {offsets = [0, 3, 0], sizes = [8, 16, 128], strides = [1, 1, 1]} : vector<8x22x128xf32> to vector<8x16x128xf32>
    %35 = vector.extract_strided_slice %5 {offsets = [3, 0], sizes = [1, 128], strides = [1, 1]} : vector<49x128xf32> to vector<1x128xf32>
    %36 = vector.shape_cast %35 : vector<1x128xf32> to vector<128xf32>
    %37 = vector.shape_cast %36 : vector<128xf32> to vector<1x1x128xf32>
    %38 = vector.broadcast %37 : vector<1x1x128xf32> to vector<8x16x128xf32>
    %39 = arith.mulf %34, %38 : vector<8x16x128xf32>
    %40 = arith.addf %33, %39 : vector<8x16x128xf32>
    %41 = vector.extract_strided_slice %12 {offsets = [0, 4, 0], sizes = [8, 16, 128], strides = [1, 1, 1]} : vector<8x22x128xf32> to vector<8x16x128xf32>
    %42 = vector.extract_strided_slice %5 {offsets = [4, 0], sizes = [1, 128], strides = [1, 1]} : vector<49x128xf32> to vector<1x128xf32>
    %43 = vector.shape_cast %42 : vector<1x128xf32> to vector<128xf32>
    %44 = vector.shape_cast %43 : vector<128xf32> to vector<1x1x128xf32>
    %45 = vector.broadcast %44 : vector<1x1x128xf32> to vector<8x16x128xf32>
    %46 = arith.mulf %41, %45 : vector<8x16x128xf32>
    %47 = arith.addf %40, %46 : vector<8x16x128xf32>
    %48 = vector.extract_strided_slice %12 {offsets = [0, 5, 0], sizes = [8, 16, 128], strides = [1, 1, 1]} : vector<8x22x128xf32> to vector<8x16x128xf32>
    %49 = vector.extract_strided_slice %5 {offsets = [5, 0], sizes = [1, 128], strides = [1, 1]} : vector<49x128xf32> to vector<1x128xf32>
    %50 = vector.shape_cast %49 : vector<1x128xf32> to vector<128xf32>
    %51 = vector.shape_cast %50 : vector<128xf32> to vector<1x1x128xf32>
    %52 = vector.broadcast %51 : vector<1x1x128xf32> to vector<8x16x128xf32>
    %53 = arith.mulf %48, %52 : vector<8x16x128xf32>
    %54 = arith.addf %47, %53 : vector<8x16x128xf32>
    %55 = vector.extract_strided_slice %12 {offsets = [0, 6, 0], sizes = [8, 16, 128], strides = [1, 1, 1]} : vector<8x22x128xf32> to vector<8x16x128xf32>
    %56 = vector.extract_strided_slice %5 {offsets = [6, 0], sizes = [1, 128], strides = [1, 1]} : vector<49x128xf32> to vector<1x128xf32>
    %57 = vector.shape_cast %56 : vector<1x128xf32> to vector<128xf32>
    %58 = vector.shape_cast %57 : vector<128xf32> to vector<1x1x128xf32>
    %59 = vector.broadcast %58 : vector<1x1x128xf32> to vector<8x16x128xf32>
    %60 = arith.mulf %55, %59 : vector<8x16x128xf32>
    %61 = arith.addf %54, %60 : vector<8x16x128xf32>
    %62 = vector.extract_strided_slice %4 {offsets = [1, 0, 0], sizes = [8, 22, 128], strides = [1, 1, 1]} : vector<14x22x128xf32> to vector<8x22x128xf32>
    %63 = vector.extract_strided_slice %62 {offsets = [0, 0, 0], sizes = [8, 16, 128], strides = [1, 1, 1]} : vector<8x22x128xf32> to vector<8x16x128xf32>
    %64 = vector.extract_strided_slice %5 {offsets = [7, 0], sizes = [1, 128], strides = [1, 1]} : vector<49x128xf32> to vector<1x128xf32>
    %65 = vector.shape_cast %64 : vector<1x128xf32> to vector<128xf32>
    %66 = vector.shape_cast %65 : vector<128xf32> to vector<1x1x128xf32>
    %67 = vector.broadcast %66 : vector<1x1x128xf32> to vector<8x16x128xf32>
    %68 = arith.mulf %63, %67 : vector<8x16x128xf32>
    %69 = arith.addf %61, %68 : vector<8x16x128xf32>
    %70 = vector.extract_strided_slice %62 {offsets = [0, 1, 0], sizes = [8, 16, 128], strides = [1, 1, 1]} : vector<8x22x128xf32> to vector<8x16x128xf32>
    %71 = vector.extract_strided_slice %5 {offsets = [8, 0], sizes = [1, 128], strides = [1, 1]} : vector<49x128xf32> to vector<1x128xf32>
    %72 = vector.shape_cast %71 : vector<1x128xf32> to vector<128xf32>
    %73 = vector.shape_cast %72 : vector<128xf32> to vector<1x1x128xf32>
    %74 = vector.broadcast %73 : vector<1x1x128xf32> to vector<8x16x128xf32>
    %75 = arith.mulf %70, %74 : vector<8x16x128xf32>
    %76 = arith.addf %69, %75 : vector<8x16x128xf32>
    %77 = vector.extract_strided_slice %62 {offsets = [0, 2, 0], sizes = [8, 16, 128], strides = [1, 1, 1]} : vector<8x22x128xf32> to vector<8x16x128xf32>
    %78 = vector.extract_strided_slice %5 {offsets = [9, 0], sizes = [1, 128], strides = [1, 1]} : vector<49x128xf32> to vector<1x128xf32>
    %79 = vector.shape_cast %78 : vector<1x128xf32> to vector<128xf32>
    %80 = vector.shape_cast %79 : vector<128xf32> to vector<1x1x128xf32>
    %81 = vector.broadcast %80 : vector<1x1x128xf32> to vector<8x16x128xf32>
    %82 = arith.mulf %77, %81 : vector<8x16x128xf32>
    %83 = arith.addf %76, %82 : vector<8x16x128xf32>
    %84 = vector.extract_strided_slice %62 {offsets = [0, 3, 0], sizes = [8, 16, 128], strides = [1, 1, 1]} : vector<8x22x128xf32> to vector<8x16x128xf32>
    %85 = vector.extract_strided_slice %5 {offsets = [10, 0], sizes = [1, 128], strides = [1, 1]} : vector<49x128xf32> to vector<1x128xf32>
    %86 = vector.shape_cast %85 : vector<1x128xf32> to vector<128xf32>
    %87 = vector.shape_cast %86 : vector<128xf32> to vector<1x1x128xf32>
    %88 = vector.broadcast %87 : vector<1x1x128xf32> to vector<8x16x128xf32>
    %89 = arith.mulf %84, %88 : vector<8x16x128xf32>
    %90 = arith.addf %83, %89 : vector<8x16x128xf32>
    %91 = vector.extract_strided_slice %62 {offsets = [0, 4, 0], sizes = [8, 16, 128], strides = [1, 1, 1]} : vector<8x22x128xf32> to vector<8x16x128xf32>
    %92 = vector.extract_strided_slice %5 {offsets = [11, 0], sizes = [1, 128], strides = [1, 1]} : vector<49x128xf32> to vector<1x128xf32>
    %93 = vector.shape_cast %92 : vector<1x128xf32> to vector<128xf32>
    %94 = vector.shape_cast %93 : vector<128xf32> to vector<1x1x128xf32>
    %95 = vector.broadcast %94 : vector<1x1x128xf32> to vector<8x16x128xf32>
    %96 = arith.mulf %91, %95 : vector<8x16x128xf32>
    %97 = arith.addf %90, %96 : vector<8x16x128xf32>
    %98 = vector.extract_strided_slice %62 {offsets = [0, 5, 0], sizes = [8, 16, 128], strides = [1, 1, 1]} : vector<8x22x128xf32> to vector<8x16x128xf32>
    %99 = vector.extract_strided_slice %5 {offsets = [12, 0], sizes = [1, 128], strides = [1, 1]} : vector<49x128xf32> to vector<1x128xf32>
    %100 = vector.shape_cast %99 : vector<1x128xf32> to vector<128xf32>
    %101 = vector.shape_cast %100 : vector<128xf32> to vector<1x1x128xf32>
    %102 = vector.broadcast %101 : vector<1x1x128xf32> to vector<8x16x128xf32>
    %103 = arith.mulf %98, %102 : vector<8x16x128xf32>
    %104 = arith.addf %97, %103 : vector<8x16x128xf32>
    %105 = vector.extract_strided_slice %62 {offsets = [0, 6, 0], sizes = [8, 16, 128], strides = [1, 1, 1]} : vector<8x22x128xf32> to vector<8x16x128xf32>
    %106 = vector.extract_strided_slice %5 {offsets = [13, 0], sizes = [1, 128], strides = [1, 1]} : vector<49x128xf32> to vector<1x128xf32>
    %107 = vector.shape_cast %106 : vector<1x128xf32> to vector<128xf32>
    %108 = vector.shape_cast %107 : vector<128xf32> to vector<1x1x128xf32>
    %109 = vector.broadcast %108 : vector<1x1x128xf32> to vector<8x16x128xf32>
    %110 = arith.mulf %105, %109 : vector<8x16x128xf32>
    %111 = arith.addf %104, %110 : vector<8x16x128xf32>
    %112 = vector.extract_strided_slice %4 {offsets = [2, 0, 0], sizes = [8, 22, 128], strides = [1, 1, 1]} : vector<14x22x128xf32> to vector<8x22x128xf32>
    %113 = vector.extract_strided_slice %112 {offsets = [0, 0, 0], sizes = [8, 16, 128], strides = [1, 1, 1]} : vector<8x22x128xf32> to vector<8x16x128xf32>
    %114 = vector.extract_strided_slice %5 {offsets = [14, 0], sizes = [1, 128], strides = [1, 1]} : vector<49x128xf32> to vector<1x128xf32>
    %115 = vector.shape_cast %114 : vector<1x128xf32> to vector<128xf32>
    %116 = vector.shape_cast %115 : vector<128xf32> to vector<1x1x128xf32>
    %117 = vector.broadcast %116 : vector<1x1x128xf32> to vector<8x16x128xf32>
    %118 = arith.mulf %113, %117 : vector<8x16x128xf32>
    %119 = arith.addf %111, %118 : vector<8x16x128xf32>
    %120 = vector.extract_strided_slice %112 {offsets = [0, 1, 0], sizes = [8, 16, 128], strides = [1, 1, 1]} : vector<8x22x128xf32> to vector<8x16x128xf32>
    %121 = vector.extract_strided_slice %5 {offsets = [15, 0], sizes = [1, 128], strides = [1, 1]} : vector<49x128xf32> to vector<1x128xf32>
    %122 = vector.shape_cast %121 : vector<1x128xf32> to vector<128xf32>
    %123 = vector.shape_cast %122 : vector<128xf32> to vector<1x1x128xf32>
    %124 = vector.broadcast %123 : vector<1x1x128xf32> to vector<8x16x128xf32>
    %125 = arith.mulf %120, %124 : vector<8x16x128xf32>
    %126 = arith.addf %119, %125 : vector<8x16x128xf32>
    %127 = vector.extract_strided_slice %112 {offsets = [0, 2, 0], sizes = [8, 16, 128], strides = [1, 1, 1]} : vector<8x22x128xf32> to vector<8x16x128xf32>
    %128 = vector.extract_strided_slice %5 {offsets = [16, 0], sizes = [1, 128], strides = [1, 1]} : vector<49x128xf32> to vector<1x128xf32>
    %129 = vector.shape_cast %128 : vector<1x128xf32> to vector<128xf32>
    %130 = vector.shape_cast %129 : vector<128xf32> to vector<1x1x128xf32>
    %131 = vector.broadcast %130 : vector<1x1x128xf32> to vector<8x16x128xf32>
    %132 = arith.mulf %127, %131 : vector<8x16x128xf32>
    %133 = arith.addf %126, %132 : vector<8x16x128xf32>
    %134 = vector.extract_strided_slice %112 {offsets = [0, 3, 0], sizes = [8, 16, 128], strides = [1, 1, 1]} : vector<8x22x128xf32> to vector<8x16x128xf32>
    %135 = vector.extract_strided_slice %5 {offsets = [17, 0], sizes = [1, 128], strides = [1, 1]} : vector<49x128xf32> to vector<1x128xf32>
    %136 = vector.shape_cast %135 : vector<1x128xf32> to vector<128xf32>
    %137 = vector.shape_cast %136 : vector<128xf32> to vector<1x1x128xf32>
    %138 = vector.broadcast %137 : vector<1x1x128xf32> to vector<8x16x128xf32>
    %139 = arith.mulf %134, %138 : vector<8x16x128xf32>
    %140 = arith.addf %133, %139 : vector<8x16x128xf32>
    %141 = vector.extract_strided_slice %112 {offsets = [0, 4, 0], sizes = [8, 16, 128], strides = [1, 1, 1]} : vector<8x22x128xf32> to vector<8x16x128xf32>
    %142 = vector.extract_strided_slice %5 {offsets = [18, 0], sizes = [1, 128], strides = [1, 1]} : vector<49x128xf32> to vector<1x128xf32>
    %143 = vector.shape_cast %142 : vector<1x128xf32> to vector<128xf32>
    %144 = vector.shape_cast %143 : vector<128xf32> to vector<1x1x128xf32>
    %145 = vector.broadcast %144 : vector<1x1x128xf32> to vector<8x16x128xf32>
    %146 = arith.mulf %141, %145 : vector<8x16x128xf32>
    %147 = arith.addf %140, %146 : vector<8x16x128xf32>
    %148 = vector.extract_strided_slice %112 {offsets = [0, 5, 0], sizes = [8, 16, 128], strides = [1, 1, 1]} : vector<8x22x128xf32> to vector<8x16x128xf32>
    %149 = vector.extract_strided_slice %5 {offsets = [19, 0], sizes = [1, 128], strides = [1, 1]} : vector<49x128xf32> to vector<1x128xf32>
    %150 = vector.shape_cast %149 : vector<1x128xf32> to vector<128xf32>
    %151 = vector.shape_cast %150 : vector<128xf32> to vector<1x1x128xf32>
    %152 = vector.broadcast %151 : vector<1x1x128xf32> to vector<8x16x128xf32>
    %153 = arith.mulf %148, %152 : vector<8x16x128xf32>
    %154 = arith.addf %147, %153 : vector<8x16x128xf32>
    %155 = vector.extract_strided_slice %112 {offsets = [0, 6, 0], sizes = [8, 16, 128], strides = [1, 1, 1]} : vector<8x22x128xf32> to vector<8x16x128xf32>
    %156 = vector.extract_strided_slice %5 {offsets = [20, 0], sizes = [1, 128], strides = [1, 1]} : vector<49x128xf32> to vector<1x128xf32>
    %157 = vector.shape_cast %156 : vector<1x128xf32> to vector<128xf32>
    %158 = vector.shape_cast %157 : vector<128xf32> to vector<1x1x128xf32>
    %159 = vector.broadcast %158 : vector<1x1x128xf32> to vector<8x16x128xf32>
    %160 = arith.mulf %155, %159 : vector<8x16x128xf32>
    %161 = arith.addf %154, %160 : vector<8x16x128xf32>
    %162 = vector.extract_strided_slice %4 {offsets = [3, 0, 0], sizes = [8, 22, 128], strides = [1, 1, 1]} : vector<14x22x128xf32> to vector<8x22x128xf32>
    %163 = vector.extract_strided_slice %162 {offsets = [0, 0, 0], sizes = [8, 16, 128], strides = [1, 1, 1]} : vector<8x22x128xf32> to vector<8x16x128xf32>
    %164 = vector.extract_strided_slice %5 {offsets = [21, 0], sizes = [1, 128], strides = [1, 1]} : vector<49x128xf32> to vector<1x128xf32>
    %165 = vector.shape_cast %164 : vector<1x128xf32> to vector<128xf32>
    %166 = vector.shape_cast %165 : vector<128xf32> to vector<1x1x128xf32>
    %167 = vector.broadcast %166 : vector<1x1x128xf32> to vector<8x16x128xf32>
    %168 = arith.mulf %163, %167 : vector<8x16x128xf32>
    %169 = arith.addf %161, %168 : vector<8x16x128xf32>
    %170 = vector.extract_strided_slice %162 {offsets = [0, 1, 0], sizes = [8, 16, 128], strides = [1, 1, 1]} : vector<8x22x128xf32> to vector<8x16x128xf32>
    %171 = vector.extract_strided_slice %5 {offsets = [22, 0], sizes = [1, 128], strides = [1, 1]} : vector<49x128xf32> to vector<1x128xf32>
    %172 = vector.shape_cast %171 : vector<1x128xf32> to vector<128xf32>
    %173 = vector.shape_cast %172 : vector<128xf32> to vector<1x1x128xf32>
    %174 = vector.broadcast %173 : vector<1x1x128xf32> to vector<8x16x128xf32>
    %175 = arith.mulf %170, %174 : vector<8x16x128xf32>
    %176 = arith.addf %169, %175 : vector<8x16x128xf32>
    %177 = vector.extract_strided_slice %162 {offsets = [0, 2, 0], sizes = [8, 16, 128], strides = [1, 1, 1]} : vector<8x22x128xf32> to vector<8x16x128xf32>
    %178 = vector.extract_strided_slice %5 {offsets = [23, 0], sizes = [1, 128], strides = [1, 1]} : vector<49x128xf32> to vector<1x128xf32>
    %179 = vector.shape_cast %178 : vector<1x128xf32> to vector<128xf32>
    %180 = vector.shape_cast %179 : vector<128xf32> to vector<1x1x128xf32>
    %181 = vector.broadcast %180 : vector<1x1x128xf32> to vector<8x16x128xf32>
    %182 = arith.mulf %177, %181 : vector<8x16x128xf32>
    %183 = arith.addf %176, %182 : vector<8x16x128xf32>
    %184 = vector.extract_strided_slice %162 {offsets = [0, 3, 0], sizes = [8, 16, 128], strides = [1, 1, 1]} : vector<8x22x128xf32> to vector<8x16x128xf32>
    %185 = vector.extract_strided_slice %5 {offsets = [24, 0], sizes = [1, 128], strides = [1, 1]} : vector<49x128xf32> to vector<1x128xf32>
    %186 = vector.shape_cast %185 : vector<1x128xf32> to vector<128xf32>
    %187 = vector.shape_cast %186 : vector<128xf32> to vector<1x1x128xf32>
    %188 = vector.broadcast %187 : vector<1x1x128xf32> to vector<8x16x128xf32>
    %189 = arith.mulf %184, %188 : vector<8x16x128xf32>
    %190 = arith.addf %183, %189 : vector<8x16x128xf32>
    %191 = vector.extract_strided_slice %162 {offsets = [0, 4, 0], sizes = [8, 16, 128], strides = [1, 1, 1]} : vector<8x22x128xf32> to vector<8x16x128xf32>
    %192 = vector.extract_strided_slice %5 {offsets = [25, 0], sizes = [1, 128], strides = [1, 1]} : vector<49x128xf32> to vector<1x128xf32>
    %193 = vector.shape_cast %192 : vector<1x128xf32> to vector<128xf32>
    %194 = vector.shape_cast %193 : vector<128xf32> to vector<1x1x128xf32>
    %195 = vector.broadcast %194 : vector<1x1x128xf32> to vector<8x16x128xf32>
    %196 = arith.mulf %191, %195 : vector<8x16x128xf32>
    %197 = arith.addf %190, %196 : vector<8x16x128xf32>
    %198 = vector.extract_strided_slice %162 {offsets = [0, 5, 0], sizes = [8, 16, 128], strides = [1, 1, 1]} : vector<8x22x128xf32> to vector<8x16x128xf32>
    %199 = vector.extract_strided_slice %5 {offsets = [26, 0], sizes = [1, 128], strides = [1, 1]} : vector<49x128xf32> to vector<1x128xf32>
    %200 = vector.shape_cast %199 : vector<1x128xf32> to vector<128xf32>
    %201 = vector.shape_cast %200 : vector<128xf32> to vector<1x1x128xf32>
    %202 = vector.broadcast %201 : vector<1x1x128xf32> to vector<8x16x128xf32>
    %203 = arith.mulf %198, %202 : vector<8x16x128xf32>
    %204 = arith.addf %197, %203 : vector<8x16x128xf32>
    %205 = vector.extract_strided_slice %162 {offsets = [0, 6, 0], sizes = [8, 16, 128], strides = [1, 1, 1]} : vector<8x22x128xf32> to vector<8x16x128xf32>
    %206 = vector.extract_strided_slice %5 {offsets = [27, 0], sizes = [1, 128], strides = [1, 1]} : vector<49x128xf32> to vector<1x128xf32>
    %207 = vector.shape_cast %206 : vector<1x128xf32> to vector<128xf32>
    %208 = vector.shape_cast %207 : vector<128xf32> to vector<1x1x128xf32>
    %209 = vector.broadcast %208 : vector<1x1x128xf32> to vector<8x16x128xf32>
    %210 = arith.mulf %205, %209 : vector<8x16x128xf32>
    %211 = arith.addf %204, %210 : vector<8x16x128xf32>
    %212 = vector.extract_strided_slice %4 {offsets = [4, 0, 0], sizes = [8, 22, 128], strides = [1, 1, 1]} : vector<14x22x128xf32> to vector<8x22x128xf32>
    %213 = vector.extract_strided_slice %212 {offsets = [0, 0, 0], sizes = [8, 16, 128], strides = [1, 1, 1]} : vector<8x22x128xf32> to vector<8x16x128xf32>
    %214 = vector.extract_strided_slice %5 {offsets = [28, 0], sizes = [1, 128], strides = [1, 1]} : vector<49x128xf32> to vector<1x128xf32>
    %215 = vector.shape_cast %214 : vector<1x128xf32> to vector<128xf32>
    %216 = vector.shape_cast %215 : vector<128xf32> to vector<1x1x128xf32>
    %217 = vector.broadcast %216 : vector<1x1x128xf32> to vector<8x16x128xf32>
    %218 = arith.mulf %213, %217 : vector<8x16x128xf32>
    %219 = arith.addf %211, %218 : vector<8x16x128xf32>
    %220 = vector.extract_strided_slice %212 {offsets = [0, 1, 0], sizes = [8, 16, 128], strides = [1, 1, 1]} : vector<8x22x128xf32> to vector<8x16x128xf32>
    %221 = vector.extract_strided_slice %5 {offsets = [29, 0], sizes = [1, 128], strides = [1, 1]} : vector<49x128xf32> to vector<1x128xf32>
    %222 = vector.shape_cast %221 : vector<1x128xf32> to vector<128xf32>
    %223 = vector.shape_cast %222 : vector<128xf32> to vector<1x1x128xf32>
    %224 = vector.broadcast %223 : vector<1x1x128xf32> to vector<8x16x128xf32>
    %225 = arith.mulf %220, %224 : vector<8x16x128xf32>
    %226 = arith.addf %219, %225 : vector<8x16x128xf32>
    %227 = vector.extract_strided_slice %212 {offsets = [0, 2, 0], sizes = [8, 16, 128], strides = [1, 1, 1]} : vector<8x22x128xf32> to vector<8x16x128xf32>
    %228 = vector.extract_strided_slice %5 {offsets = [30, 0], sizes = [1, 128], strides = [1, 1]} : vector<49x128xf32> to vector<1x128xf32>
    %229 = vector.shape_cast %228 : vector<1x128xf32> to vector<128xf32>
    %230 = vector.shape_cast %229 : vector<128xf32> to vector<1x1x128xf32>
    %231 = vector.broadcast %230 : vector<1x1x128xf32> to vector<8x16x128xf32>
    %232 = arith.mulf %227, %231 : vector<8x16x128xf32>
    %233 = arith.addf %226, %232 : vector<8x16x128xf32>
    %234 = vector.extract_strided_slice %212 {offsets = [0, 3, 0], sizes = [8, 16, 128], strides = [1, 1, 1]} : vector<8x22x128xf32> to vector<8x16x128xf32>
    %235 = vector.extract_strided_slice %5 {offsets = [31, 0], sizes = [1, 128], strides = [1, 1]} : vector<49x128xf32> to vector<1x128xf32>
    %236 = vector.shape_cast %235 : vector<1x128xf32> to vector<128xf32>
    %237 = vector.shape_cast %236 : vector<128xf32> to vector<1x1x128xf32>
    %238 = vector.broadcast %237 : vector<1x1x128xf32> to vector<8x16x128xf32>
    %239 = arith.mulf %234, %238 : vector<8x16x128xf32>
    %240 = arith.addf %233, %239 : vector<8x16x128xf32>
    %241 = vector.extract_strided_slice %212 {offsets = [0, 4, 0], sizes = [8, 16, 128], strides = [1, 1, 1]} : vector<8x22x128xf32> to vector<8x16x128xf32>
    %242 = vector.extract_strided_slice %5 {offsets = [32, 0], sizes = [1, 128], strides = [1, 1]} : vector<49x128xf32> to vector<1x128xf32>
    %243 = vector.shape_cast %242 : vector<1x128xf32> to vector<128xf32>
    %244 = vector.shape_cast %243 : vector<128xf32> to vector<1x1x128xf32>
    %245 = vector.broadcast %244 : vector<1x1x128xf32> to vector<8x16x128xf32>
    %246 = arith.mulf %241, %245 : vector<8x16x128xf32>
    %247 = arith.addf %240, %246 : vector<8x16x128xf32>
    %248 = vector.extract_strided_slice %212 {offsets = [0, 5, 0], sizes = [8, 16, 128], strides = [1, 1, 1]} : vector<8x22x128xf32> to vector<8x16x128xf32>
    %249 = vector.extract_strided_slice %5 {offsets = [33, 0], sizes = [1, 128], strides = [1, 1]} : vector<49x128xf32> to vector<1x128xf32>
    %250 = vector.shape_cast %249 : vector<1x128xf32> to vector<128xf32>
    %251 = vector.shape_cast %250 : vector<128xf32> to vector<1x1x128xf32>
    %252 = vector.broadcast %251 : vector<1x1x128xf32> to vector<8x16x128xf32>
    %253 = arith.mulf %248, %252 : vector<8x16x128xf32>
    %254 = arith.addf %247, %253 : vector<8x16x128xf32>
    %255 = vector.extract_strided_slice %212 {offsets = [0, 6, 0], sizes = [8, 16, 128], strides = [1, 1, 1]} : vector<8x22x128xf32> to vector<8x16x128xf32>
    %256 = vector.extract_strided_slice %5 {offsets = [34, 0], sizes = [1, 128], strides = [1, 1]} : vector<49x128xf32> to vector<1x128xf32>
    %257 = vector.shape_cast %256 : vector<1x128xf32> to vector<128xf32>
    %258 = vector.shape_cast %257 : vector<128xf32> to vector<1x1x128xf32>
    %259 = vector.broadcast %258 : vector<1x1x128xf32> to vector<8x16x128xf32>
    %260 = arith.mulf %255, %259 : vector<8x16x128xf32>
    %261 = arith.addf %254, %260 : vector<8x16x128xf32>
    %262 = vector.extract_strided_slice %4 {offsets = [5, 0, 0], sizes = [8, 22, 128], strides = [1, 1, 1]} : vector<14x22x128xf32> to vector<8x22x128xf32>
    %263 = vector.extract_strided_slice %262 {offsets = [0, 0, 0], sizes = [8, 16, 128], strides = [1, 1, 1]} : vector<8x22x128xf32> to vector<8x16x128xf32>
    %264 = vector.extract_strided_slice %5 {offsets = [35, 0], sizes = [1, 128], strides = [1, 1]} : vector<49x128xf32> to vector<1x128xf32>
    %265 = vector.shape_cast %264 : vector<1x128xf32> to vector<128xf32>
    %266 = vector.shape_cast %265 : vector<128xf32> to vector<1x1x128xf32>
    %267 = vector.broadcast %266 : vector<1x1x128xf32> to vector<8x16x128xf32>
    %268 = arith.mulf %263, %267 : vector<8x16x128xf32>
    %269 = arith.addf %261, %268 : vector<8x16x128xf32>
    %270 = vector.extract_strided_slice %262 {offsets = [0, 1, 0], sizes = [8, 16, 128], strides = [1, 1, 1]} : vector<8x22x128xf32> to vector<8x16x128xf32>
    %271 = vector.extract_strided_slice %5 {offsets = [36, 0], sizes = [1, 128], strides = [1, 1]} : vector<49x128xf32> to vector<1x128xf32>
    %272 = vector.shape_cast %271 : vector<1x128xf32> to vector<128xf32>
    %273 = vector.shape_cast %272 : vector<128xf32> to vector<1x1x128xf32>
    %274 = vector.broadcast %273 : vector<1x1x128xf32> to vector<8x16x128xf32>
    %275 = arith.mulf %270, %274 : vector<8x16x128xf32>
    %276 = arith.addf %269, %275 : vector<8x16x128xf32>
    %277 = vector.extract_strided_slice %262 {offsets = [0, 2, 0], sizes = [8, 16, 128], strides = [1, 1, 1]} : vector<8x22x128xf32> to vector<8x16x128xf32>
    %278 = vector.extract_strided_slice %5 {offsets = [37, 0], sizes = [1, 128], strides = [1, 1]} : vector<49x128xf32> to vector<1x128xf32>
    %279 = vector.shape_cast %278 : vector<1x128xf32> to vector<128xf32>
    %280 = vector.shape_cast %279 : vector<128xf32> to vector<1x1x128xf32>
    %281 = vector.broadcast %280 : vector<1x1x128xf32> to vector<8x16x128xf32>
    %282 = arith.mulf %277, %281 : vector<8x16x128xf32>
    %283 = arith.addf %276, %282 : vector<8x16x128xf32>
    %284 = vector.extract_strided_slice %262 {offsets = [0, 3, 0], sizes = [8, 16, 128], strides = [1, 1, 1]} : vector<8x22x128xf32> to vector<8x16x128xf32>
    %285 = vector.extract_strided_slice %5 {offsets = [38, 0], sizes = [1, 128], strides = [1, 1]} : vector<49x128xf32> to vector<1x128xf32>
    %286 = vector.shape_cast %285 : vector<1x128xf32> to vector<128xf32>
    %287 = vector.shape_cast %286 : vector<128xf32> to vector<1x1x128xf32>
    %288 = vector.broadcast %287 : vector<1x1x128xf32> to vector<8x16x128xf32>
    %289 = arith.mulf %284, %288 : vector<8x16x128xf32>
    %290 = arith.addf %283, %289 : vector<8x16x128xf32>
    %291 = vector.extract_strided_slice %262 {offsets = [0, 4, 0], sizes = [8, 16, 128], strides = [1, 1, 1]} : vector<8x22x128xf32> to vector<8x16x128xf32>
    %292 = vector.extract_strided_slice %5 {offsets = [39, 0], sizes = [1, 128], strides = [1, 1]} : vector<49x128xf32> to vector<1x128xf32>
    %293 = vector.shape_cast %292 : vector<1x128xf32> to vector<128xf32>
    %294 = vector.shape_cast %293 : vector<128xf32> to vector<1x1x128xf32>
    %295 = vector.broadcast %294 : vector<1x1x128xf32> to vector<8x16x128xf32>
    %296 = arith.mulf %291, %295 : vector<8x16x128xf32>
    %297 = arith.addf %290, %296 : vector<8x16x128xf32>
    %298 = vector.extract_strided_slice %262 {offsets = [0, 5, 0], sizes = [8, 16, 128], strides = [1, 1, 1]} : vector<8x22x128xf32> to vector<8x16x128xf32>
    %299 = vector.extract_strided_slice %5 {offsets = [40, 0], sizes = [1, 128], strides = [1, 1]} : vector<49x128xf32> to vector<1x128xf32>
    %300 = vector.shape_cast %299 : vector<1x128xf32> to vector<128xf32>
    %301 = vector.shape_cast %300 : vector<128xf32> to vector<1x1x128xf32>
    %302 = vector.broadcast %301 : vector<1x1x128xf32> to vector<8x16x128xf32>
    %303 = arith.mulf %298, %302 : vector<8x16x128xf32>
    %304 = arith.addf %297, %303 : vector<8x16x128xf32>
    %305 = vector.extract_strided_slice %262 {offsets = [0, 6, 0], sizes = [8, 16, 128], strides = [1, 1, 1]} : vector<8x22x128xf32> to vector<8x16x128xf32>
    %306 = vector.extract_strided_slice %5 {offsets = [41, 0], sizes = [1, 128], strides = [1, 1]} : vector<49x128xf32> to vector<1x128xf32>
    %307 = vector.shape_cast %306 : vector<1x128xf32> to vector<128xf32>
    %308 = vector.shape_cast %307 : vector<128xf32> to vector<1x1x128xf32>
    %309 = vector.broadcast %308 : vector<1x1x128xf32> to vector<8x16x128xf32>
    %310 = arith.mulf %305, %309 : vector<8x16x128xf32>
    %311 = arith.addf %304, %310 : vector<8x16x128xf32>
    %312 = vector.extract_strided_slice %4 {offsets = [6, 0, 0], sizes = [8, 22, 128], strides = [1, 1, 1]} : vector<14x22x128xf32> to vector<8x22x128xf32>
    %313 = vector.extract_strided_slice %312 {offsets = [0, 0, 0], sizes = [8, 16, 128], strides = [1, 1, 1]} : vector<8x22x128xf32> to vector<8x16x128xf32>
    %314 = vector.extract_strided_slice %5 {offsets = [42, 0], sizes = [1, 128], strides = [1, 1]} : vector<49x128xf32> to vector<1x128xf32>
    %315 = vector.shape_cast %314 : vector<1x128xf32> to vector<128xf32>
    %316 = vector.shape_cast %315 : vector<128xf32> to vector<1x1x128xf32>
    %317 = vector.broadcast %316 : vector<1x1x128xf32> to vector<8x16x128xf32>
    %318 = arith.mulf %313, %317 : vector<8x16x128xf32>
    %319 = arith.addf %311, %318 : vector<8x16x128xf32>
    %320 = vector.extract_strided_slice %312 {offsets = [0, 1, 0], sizes = [8, 16, 128], strides = [1, 1, 1]} : vector<8x22x128xf32> to vector<8x16x128xf32>
    %321 = vector.extract_strided_slice %5 {offsets = [43, 0], sizes = [1, 128], strides = [1, 1]} : vector<49x128xf32> to vector<1x128xf32>
    %322 = vector.shape_cast %321 : vector<1x128xf32> to vector<128xf32>
    %323 = vector.shape_cast %322 : vector<128xf32> to vector<1x1x128xf32>
    %324 = vector.broadcast %323 : vector<1x1x128xf32> to vector<8x16x128xf32>
    %325 = arith.mulf %320, %324 : vector<8x16x128xf32>
    %326 = arith.addf %319, %325 : vector<8x16x128xf32>
    %327 = vector.extract_strided_slice %312 {offsets = [0, 2, 0], sizes = [8, 16, 128], strides = [1, 1, 1]} : vector<8x22x128xf32> to vector<8x16x128xf32>
    %328 = vector.extract_strided_slice %5 {offsets = [44, 0], sizes = [1, 128], strides = [1, 1]} : vector<49x128xf32> to vector<1x128xf32>
    %329 = vector.shape_cast %328 : vector<1x128xf32> to vector<128xf32>
    %330 = vector.shape_cast %329 : vector<128xf32> to vector<1x1x128xf32>
    %331 = vector.broadcast %330 : vector<1x1x128xf32> to vector<8x16x128xf32>
    %332 = arith.mulf %327, %331 : vector<8x16x128xf32>
    %333 = arith.addf %326, %332 : vector<8x16x128xf32>
    %334 = vector.extract_strided_slice %312 {offsets = [0, 3, 0], sizes = [8, 16, 128], strides = [1, 1, 1]} : vector<8x22x128xf32> to vector<8x16x128xf32>
    %335 = vector.extract_strided_slice %5 {offsets = [45, 0], sizes = [1, 128], strides = [1, 1]} : vector<49x128xf32> to vector<1x128xf32>
    %336 = vector.shape_cast %335 : vector<1x128xf32> to vector<128xf32>
    %337 = vector.shape_cast %336 : vector<128xf32> to vector<1x1x128xf32>
    %338 = vector.broadcast %337 : vector<1x1x128xf32> to vector<8x16x128xf32>
    %339 = arith.mulf %334, %338 : vector<8x16x128xf32>
    %340 = arith.addf %333, %339 : vector<8x16x128xf32>
    %341 = vector.extract_strided_slice %312 {offsets = [0, 4, 0], sizes = [8, 16, 128], strides = [1, 1, 1]} : vector<8x22x128xf32> to vector<8x16x128xf32>
    %342 = vector.extract_strided_slice %5 {offsets = [46, 0], sizes = [1, 128], strides = [1, 1]} : vector<49x128xf32> to vector<1x128xf32>
    %343 = vector.shape_cast %342 : vector<1x128xf32> to vector<128xf32>
    %344 = vector.shape_cast %343 : vector<128xf32> to vector<1x1x128xf32>
    %345 = vector.broadcast %344 : vector<1x1x128xf32> to vector<8x16x128xf32>
    %346 = arith.mulf %341, %345 : vector<8x16x128xf32>
    %347 = arith.addf %340, %346 : vector<8x16x128xf32>
    %348 = vector.extract_strided_slice %312 {offsets = [0, 5, 0], sizes = [8, 16, 128], strides = [1, 1, 1]} : vector<8x22x128xf32> to vector<8x16x128xf32>
    %349 = vector.extract_strided_slice %5 {offsets = [47, 0], sizes = [1, 128], strides = [1, 1]} : vector<49x128xf32> to vector<1x128xf32>
    %350 = vector.shape_cast %349 : vector<1x128xf32> to vector<128xf32>
    %351 = vector.shape_cast %350 : vector<128xf32> to vector<1x1x128xf32>
    %352 = vector.broadcast %351 : vector<1x1x128xf32> to vector<8x16x128xf32>
    %353 = arith.mulf %348, %352 : vector<8x16x128xf32>
    %354 = arith.addf %347, %353 : vector<8x16x128xf32>
    %355 = vector.extract_strided_slice %312 {offsets = [0, 6, 0], sizes = [8, 16, 128], strides = [1, 1, 1]} : vector<8x22x128xf32> to vector<8x16x128xf32>
    %356 = vector.extract_strided_slice %5 {offsets = [48, 0], sizes = [1, 128], strides = [1, 1]} : vector<49x128xf32> to vector<1x128xf32>
    %357 = vector.shape_cast %356 : vector<1x128xf32> to vector<128xf32>
    %358 = vector.shape_cast %357 : vector<128xf32> to vector<1x1x128xf32>
    %359 = vector.broadcast %358 : vector<1x1x128xf32> to vector<8x16x128xf32>
    %360 = arith.mulf %355, %359 : vector<8x16x128xf32>
    %361 = arith.addf %354, %360 : vector<8x16x128xf32>
    %362 = vector.shape_cast %361 : vector<8x16x128xf32> to vector<128x128xf32>
    %cst_6 = arith.constant dense<0.000000e+00> : vector<128xf32>
    %363 = vector.multi_reduction <add>, %362, %cst_6 [1] : vector<128x128xf32> to vector<128xf32>
    %364 = vector.shape_cast %363 : vector<128xf32> to vector<128x1xf32>
    %cst_7 = arith.constant 1.250000e-01 : f32
    %365 = vector.broadcast %cst_7 : f32 to vector<128x1xf32>
    %366 = arith.mulf %364, %365 : vector<128x1xf32>
    %367 = arith.mulf %362, %362 : vector<128x128xf32>
    %cst_8 = arith.constant dense<0.000000e+00> : vector<128xf32>
    %368 = vector.multi_reduction <add>, %367, %cst_8 [1] : vector<128x128xf32> to vector<128xf32>
    %369 = vector.shape_cast %368 : vector<128xf32> to vector<128x1xf32>
    %cst_9 = arith.constant 1.250000e-01 : f32
    %370 = vector.broadcast %cst_9 : f32 to vector<128x1xf32>
    %371 = arith.mulf %369, %370 : vector<128x1xf32>
    %372 = arith.mulf %366, %366 : vector<128x1xf32>
    %373 = arith.subf %371, %372 : vector<128x1xf32>
    %374 = vector.broadcast %366 : vector<128x1xf32> to vector<128x128xf32>
    %375 = arith.subf %362, %374 : vector<128x128xf32>
    %cst_10 = arith.constant 9.99999997E-7 : f32
    %376 = vector.broadcast %cst_10 : f32 to vector<128x1xf32>
    %377 = arith.addf %373, %376 : vector<128x1xf32>
    %378 = math.rsqrt %377 : vector<128x1xf32>
    %379 = vector.broadcast %378 : vector<128x1xf32> to vector<128x128xf32>
    %380 = arith.mulf %375, %379 : vector<128x128xf32>
    %c0_11 = arith.constant 0 : index
    %c0_12 = arith.constant 0 : index
    %381 = vector.load %arg5[%c0_11, %c0_12] : memref<1x128xf32, #tpu.memory_space<vmem>>, vector<1x128xf32>
    %382 = vector.shape_cast %381 : vector<1x128xf32> to vector<128xf32>
    %383 = vector.shape_cast %382 : vector<128xf32> to vector<1x128xf32>
    %384 = vector.broadcast %383 : vector<1x128xf32> to vector<128x128xf32>
    %385 = arith.mulf %380, %384 : vector<128x128xf32>
    %c0_13 = arith.constant 0 : index
    %c0_14 = arith.constant 0 : index
    %386 = vector.load %arg6[%c0_13, %c0_14] : memref<1x128xf32, #tpu.memory_space<vmem>>, vector<1x128xf32>
    %387 = vector.shape_cast %386 : vector<1x128xf32> to vector<128xf32>
    %388 = vector.shape_cast %387 : vector<128xf32> to vector<1x128xf32>
    %389 = vector.broadcast %388 : vector<1x128xf32> to vector<128x128xf32>
    %390 = arith.addf %385, %389 : vector<128x128xf32>
    %391 = arith.truncf %390 : vector<128x128xf32> to vector<128x128xbf16>
    %c0_15 = arith.constant 0 : index
    %c0_16 = arith.constant 0 : index
    %392 = vector.load %arg7[%c0_15, %c0_16] : memref<128x128xbf16, #tpu.memory_space<vmem>>, vector<128x128xbf16>
    %cst_17 = arith.constant dense<0.000000e+00> : vector<128x128xf32>
    %393 = tpu.matmul %391, %392, %cst_17 {dimension_numbers = #tpu.dot_dimension_numbers<[1], [0], [0], [1], [0, 0, 1, 1], [], []>} : vector<128x128xbf16>, vector<128x128xbf16>, vector<128x128xf32> -> vector<128x128xf32>
    %c0_18 = arith.constant 0 : index
    %c0_19 = arith.constant 0 : index
    %394 = vector.load %arg8[%c0_18, %c0_19] : memref<1x128xf32, #tpu.memory_space<vmem>>, vector<1x128xf32>
    %395 = vector.shape_cast %394 : vector<1x128xf32> to vector<128xf32>
    %396 = vector.shape_cast %395 : vector<128xf32> to vector<1x128xf32>
    %397 = vector.broadcast %396 : vector<1x128xf32> to vector<128x128xf32>
    %398 = arith.addf %393, %397 : vector<128x128xf32>
    %cst_20 = arith.constant 5.000000e-01 : f32
    %399 = vector.broadcast %cst_20 : f32 to vector<128x128xf32>
    %400 = arith.mulf %399, %398 : vector<128x128xf32>
    %cst_21 = arith.constant 0.707106769 : f32
    %401 = vector.broadcast %cst_21 : f32 to vector<128x128xf32>
    %402 = arith.mulf %398, %401 : vector<128x128xf32>
    %403 = math.erf %402 : vector<128x128xf32>
    %cst_22 = arith.constant 1.000000e+00 : f32
    %404 = vector.broadcast %cst_22 : f32 to vector<128x128xf32>
    %405 = arith.addf %404, %403 : vector<128x128xf32>
    %406 = arith.mulf %400, %405 : vector<128x128xf32>
    %407 = arith.truncf %406 : vector<128x128xf32> to vector<128x128xbf16>
    %c0_23 = arith.constant 0 : index
    %c0_24 = arith.constant 0 : index
    %408 = vector.load %arg9[%c0_23, %c0_24] : memref<128x128xbf16, #tpu.memory_space<vmem>>, vector<128x128xbf16>
    %cst_25 = arith.constant dense<0.000000e+00> : vector<128x128xf32>
    %409 = tpu.matmul %407, %408, %cst_25 {dimension_numbers = #tpu.dot_dimension_numbers<[1], [0], [0], [1], [0, 0, 1, 1], [], []>} : vector<128x128xbf16>, vector<128x128xbf16>, vector<128x128xf32> -> vector<128x128xf32>
    %c0_26 = arith.constant 0 : index
    %c0_27 = arith.constant 0 : index
    %410 = vector.load %arg10[%c0_26, %c0_27] : memref<1x128xf32, #tpu.memory_space<vmem>>, vector<1x128xf32>
    %411 = vector.shape_cast %410 : vector<1x128xf32> to vector<128xf32>
    %412 = vector.shape_cast %411 : vector<128xf32> to vector<1x128xf32>
    %413 = vector.broadcast %412 : vector<1x128xf32> to vector<128x128xf32>
    %414 = arith.addf %409, %413 : vector<128x128xf32>
    %c0_28 = arith.constant 0 : index
    %c0_29 = arith.constant 0 : index
    %415 = vector.load %arg11[%c0_28, %c0_29] : memref<1x128xf32, #tpu.memory_space<vmem>>, vector<1x128xf32>
    %416 = vector.shape_cast %415 : vector<1x128xf32> to vector<128xf32>
    %417 = vector.shape_cast %416 : vector<128xf32> to vector<1x128xf32>
    %418 = vector.broadcast %417 : vector<1x128xf32> to vector<128x128xf32>
    %419 = arith.mulf %414, %418 : vector<128x128xf32>
    %420 = vector.shape_cast %419 : vector<128x128xf32> to vector<8x16x128xf32>
    %421 = vector.extract_strided_slice %4 {offsets = [3, 3, 0], sizes = [8, 16, 128], strides = [1, 1, 1]} : vector<14x22x128xf32> to vector<8x16x128xf32>
    %422 = arith.addf %421, %420 : vector<8x16x128xf32>
    %c0_30 = arith.constant 0 : index
    %c0_31 = arith.constant 0 : index
    %c0_32 = arith.constant 0 : index
    %c0_33 = arith.constant 0 : index
    %423 = vector.load %arg12[%c0_30, %c0_31, %c0_32, %c0_33] : memref<1x8x16x128xf32, #tpu.memory_space<vmem>>, vector<1x8x16x128xf32>
    %424 = vector.shape_cast %423 : vector<1x8x16x128xf32> to vector<8x16x128xf32>
    %425 = vector.shape_cast %422 : vector<8x16x128xf32> to vector<1x8x16x128xf32>
    tpu.vector_store %arg12[%c0_30, %c0_31, %c0_32, %c0_33], %425 {strides = array<i32>} : memref<1x8x16x128xf32, #tpu.memory_space<vmem>>, vector<1x8x16x128xf32>,
    return
  }
  func.func @transform_0(%arg0: i32, %arg1: i32) -> (i32, i32, i32, i32) {
    %c0_i32 = arith.constant 0 : i32
    %c0_i32_0 = arith.constant 0 : i32
    %c0_i32_1 = arith.constant 0 : i32
    %c0_i32_2 = arith.constant 0 : i32
    return %arg0, %c0_i32, %c0_i32_0, %c0_i32_1 : i32, i32, i32, i32
  }
  func.func @transform_1(%arg0: i32, %arg1: i32) -> (i32, i32) {
    %c0_i32 = arith.constant 0 : i32
    %c0_i32_0 = arith.constant 0 : i32
    %c0_i32_1 = arith.constant 0 : i32
    return %c0_i32, %c0_i32_0 : i32, i32
  }
  func.func @transform_2(%arg0: i32, %arg1: i32) -> (i32, i32) {
    %c0_i32 = arith.constant 0 : i32
    %c0_i32_0 = arith.constant 0 : i32
    %c0_i32_1 = arith.constant 0 : i32
    return %c0_i32, %c0_i32_0 : i32, i32
  }
  func.func @transform_3(%arg0: i32, %arg1: i32) -> (i32, i32) {
    %c0_i32 = arith.constant 0 : i32
    %c0_i32_0 = arith.constant 0 : i32
    %c0_i32_1 = arith.constant 0 : i32
    return %c0_i32, %c0_i32_0 : i32, i32
  }
  func.func @transform_4(%arg0: i32, %arg1: i32) -> (i32, i32) {
    %c0_i32 = arith.constant 0 : i32
    %c0_i32_0 = arith.constant 0 : i32
    %c0_i32_1 = arith.constant 0 : i32
    return %c0_i32, %c0_i32_0 : i32, i32
  }
  func.func @transform_5(%arg0: i32, %arg1: i32) -> (i32, i32) {
    %c0_i32 = arith.constant 0 : i32
    %c0_i32_0 = arith.constant 0 : i32
    %c0_i32_1 = arith.constant 0 : i32
    return %c0_i32, %c0_i32_0 : i32, i32
  }
  func.func @transform_6(%arg0: i32, %arg1: i32) -> (i32, i32) {
    %c0_i32 = arith.constant 0 : i32
    %c0_i32_0 = arith.constant 0 : i32
    %c0_i32_1 = arith.constant 0 : i32
    return %c0_i32, %c0_i32_0 : i32, i32
  }
  func.func @transform_7(%arg0: i32, %arg1: i32) -> (i32, i32) {
    %c0_i32 = arith.constant 0 : i32
    %c0_i32_0 = arith.constant 0 : i32
    %c0_i32_1 = arith.constant 0 : i32
    return %c0_i32, %c0_i32_0 : i32, i32
  }
  func.func @transform_8(%arg0: i32, %arg1: i32) -> (i32, i32) {
    %c0_i32 = arith.constant 0 : i32
    %c0_i32_0 = arith.constant 0 : i32
    %c0_i32_1 = arith.constant 0 : i32
    return %c0_i32, %c0_i32_0 : i32, i32
  }
  func.func @transform_9(%arg0: i32, %arg1: i32) -> (i32, i32) {
    %c0_i32 = arith.constant 0 : i32
    %c0_i32_0 = arith.constant 0 : i32
    %c0_i32_1 = arith.constant 0 : i32
    return %c0_i32, %c0_i32_0 : i32, i32
  }
  func.func @transform_10(%arg0: i32, %arg1: i32) -> (i32, i32, i32, i32) {
    %c0_i32 = arith.constant 0 : i32
    %c0_i32_0 = arith.constant 0 : i32
    %c0_i32_1 = arith.constant 0 : i32
    return %arg0, %arg1, %c0_i32, %c0_i32_0 : i32, i32, i32, i32
  }
}

</mosaic_0001>

<llo_original>
// kernel: tpu_custom_call.1
$region0: #{tpu_custom_call.1}
  #allocation0 [shape = 'u32[]', space=smem, size = 0x4, offset = 0x4, fixed_abs, tag = 'smem constant byte address 0x4 - core index']
  #allocation1 [shape = 'u32[144,128]{1,0:T(1,128)}', space=vmem, size = 0x12000, scoped, tag = 'internal scratch']
  %s0 = inlined_call_operand.vmem [shape: f32[2,22,22,128], index: 0, kind: input, shape index: {}]
  %s1 = inlined_call_operand.vmem [shape: f32[49,128], index: 1, kind: input, shape index: {}]
  %s2 = inlined_call_operand.vmem [shape: f32[1,128], index: 2, kind: input, shape index: {}]
  %s3 = inlined_call_operand.vmem [shape: f32[1,128], index: 3, kind: input, shape index: {}]
  %s4 = inlined_call_operand.vmem [shape: f32[1,128], index: 4, kind: input, shape index: {}]
  %s5 = inlined_call_operand.vmem [shape: bf16[128,128], index: 5, kind: input, shape index: {}]
  %s6 = inlined_call_operand.vmem [shape: f32[1,128], index: 6, kind: input, shape index: {}]
  %s7 = inlined_call_operand.vmem [shape: bf16[128,128], index: 7, kind: input, shape index: {}]
  %s8 = inlined_call_operand.vmem [shape: f32[1,128], index: 8, kind: input, shape index: {}]
  %s9 = inlined_call_operand.vmem [shape: f32[1,128], index: 9, kind: input, shape index: {}]
  %s10 = inlined_call_operand.hbm [shape: f32[2,16,16,128], index: 10, kind: output, shape index: {}]
  %s11 = sld [smem:[#allocation0]]
  $region73: #{tpu_custom_call.1} parent=0
    _
  %s13 = ssub.s32 1, %s11
  %s14 = scalar_select 0, %s13, %s11
  $region1: #{tpu_custom_call.1} parent=0
    #allocation2 [shape = 'u8[131072]{0}', space=vmem, size = 0x20000, scoped, tag = 'output window, operand 0']
    #allocation3 [shape = 's32[2]{0}', space=sflag, size = 0x8, scoped, tag = 'scoped memory for tpu_custom_call.1']
    %15 = vsyncpa [#allocation3], 0
    %s16 = scalar_lea.sflag [#allocation3], 1
    %17 = vsyncpa %s16, 0
    loop: start=0, step=1, limit=6
    $region2: #{tpu_custom_call.1} parent=1 // loop_pre_header
      _
    $region3: #{tpu_custom_call.1} parent=1 // loop_header
      %s19 = sphi 0, %s23
      %p20 = scmp.ge.s32.totalorder %s19, 6
      %s26 = sphi 0, %s38
      %s27 = sphi 0, %s34
      %s28 = sphi 0, %s26
      %s29 = sphi 0, %s27
      %s30 = sphi 0, %s28
      %s31 = sphi 0, %s29
      %s41 = sphi 0, %s43
      %s44 = sphi 0, %s41
      %s45 = sphi 0, %s44
      %s61 = sphi 0, %s45
      %s65 = sphi 0, %s65
      %s67 = sphi 0, %s65
      %s68 = sphi 0, %s67
      %s82 = sphi 0, %s68
      %s86 = sphi 0, %s86
      %s88 = sphi 0, %s86
      %s89 = sphi 0, %s88
      %s103 = sphi 0, %s89
      %s107 = sphi 0, %s107
      %s109 = sphi 0, %s107
      %s110 = sphi 0, %s109
      %s124 = sphi 0, %s110
      %s128 = sphi 0, %s128
      %s130 = sphi 0, %s128
      %s131 = sphi 0, %s130
      %s145 = sphi 0, %s131
      %s149 = sphi 0, %s149
      %s151 = sphi 0, %s149
      %s152 = sphi 0, %s151
      %s166 = sphi 0, %s152
      %s170 = sphi 0, %s170
      %s172 = sphi 0, %s170
      %s173 = sphi 0, %s172
      %s187 = sphi 0, %s173
      %s191 = sphi 0, %s191
      %s193 = sphi 0, %s191
      %s194 = sphi 0, %s193
      %s208 = sphi 0, %s194
      %s212 = sphi 0, %s212
      %s214 = sphi 0, %s212
      %s215 = sphi 0, %s214
      %s229 = sphi 0, %s215
      %s233 = sphi 0, %s233
      %s235 = sphi 0, %s233
      %s236 = sphi 0, %s235
      %s250 = sphi 0, %s236
      %s258 = sphi 0, %s260
      %s261 = sphi 0, %s258
      %s262 = sphi 0, %s261
      %s278 = sphi 0, %s262
    $region4: #{tpu_custom_call.1} parent=1 // loop_header_branch
      %22 = sbr.rel (%p20) target = $region8
    $region5: #{tpu_custom_call.1} parent=1 // loop_body
      %s24 = ssub.s32 %s19, 1
      %s25 = ssub.s32 %s19, 2
      %s32 = sadd.s32 1, %s27
      %p33 = scmp.ge.s32.totalorder %s32, 2
      %s34 = scalar_select %p33, 0, %s32
      %s35 = sadd.s32 1, %s26
      %s36 = scalar_select %p33, %s35, %s26
      %p37 = scmp.ge.s32.totalorder %s36, 2
      %s38 = scalar_select %p37, 0, %s36
      %s39 = ssub.s32 %s26, %s38
      %p40 = scmp.eq.s32.totalorder %s39, 0
      %s42 = sadd.s32 %s41, 1
      %s43 = scalar_select %p40, %s41, %s42
      %p46 = pneg %p40
      %p47 = scmp.eq.s32.totalorder %s19, 3
      %p48 = por %p46, %p47
      %p49 = scmp.ne.s32.totalorder %s41, %s44
      %p50 = scmp.eq.s32.totalorder %s19, 0
      %p51 = por %p49, %p50
      %p52 = scmp.ne.s32.totalorder %s41, %s44
      %p53 = scmp.eq.s32.totalorder %s24, 3
      %p54 = por %p52, %p53
      %p55 = scmp.ne.s32.totalorder %s44, %s45
      %p56 = scmp.eq.s32.totalorder %s24, 0
      %p57 = por %p55, %p56
      %p58 = scmp.ne.s32.totalorder %s44, %s45
      %p59 = scmp.eq.s32.totalorder %s25, 3
      %p60 = por %p58, %p59
      %p62 = scmp.ne.s32.totalorder %s45, %s61
      %p63 = scmp.eq.s32.totalorder %s25, 0
      %p64 = por %p62, %p63
      %s66 = sadd.s32 %s65, 1
      %p69 = scmp.eq.s32.totalorder %s19, 3
      %p70 = scmp.ne.s32.totalorder %s65, %s67
      %p71 = scmp.eq.s32.totalorder %s19, 0
      %p72 = por %p70, %p71
      %p73 = scmp.ne.s32.totalorder %s65, %s67
      %p74 = scmp.eq.s32.totalorder %s24, 3
      %p75 = por %p73, %p74
      %p76 = scmp.ne.s32.totalorder %s67, %s68
      %p77 = scmp.eq.s32.totalorder %s24, 0
      %p78 = por %p76, %p77
      %p79 = scmp.ne.s32.totalorder %s67, %s68
      %p80 = scmp.eq.s32.totalorder %s25, 3
      %p81 = por %p79, %p80
      %p83 = scmp.ne.s32.totalorder %s68, %s82
      %p84 = scmp.eq.s32.totalorder %s25, 0
      %p85 = por %p83, %p84
      %s87 = sadd.s32 %s86, 1
      %p90 = scmp.eq.s32.totalorder %s19, 3
      %p91 = scmp.ne.s32.totalorder %s86, %s88
      %p92 = scmp.eq.s32.totalorder %s19, 0
      %p93 = por %p91, %p92
      %p94 = scmp.ne.s32.totalorder %s86, %s88
      %p95 = scmp.eq.s32.totalorder %s24, 3
      %p96 = por %p94, %p95
      %p97 = scmp.ne.s32.totalorder %s88, %s89
      %p98 = scmp.eq.s32.totalorder %s24, 0
      %p99 = por %p97, %p98
      %p100 = scmp.ne.s32.totalorder %s88, %s89
      %p101 = scmp.eq.s32.totalorder %s25, 3
      %p102 = por %p100, %p101
      %p104 = scmp.ne.s32.totalorder %s89, %s103
      %p105 = scmp.eq.s32.totalorder %s25, 0
      %p106 = por %p104, %p105
      %s108 = sadd.s32 %s107, 1
      %p111 = scmp.eq.s32.totalorder %s19, 3
      %p112 = scmp.ne.s32.totalorder %s107, %s109
      %p113 = scmp.eq.s32.totalorder %s19, 0
      %p114 = por %p112, %p113
      %p115 = scmp.ne.s32.totalorder %s107, %s109
      %p116 = scmp.eq.s32.totalorder %s24, 3
      %p117 = por %p115, %p116
      %p118 = scmp.ne.s32.totalorder %s109, %s110
      %p119 = scmp.eq.s32.totalorder %s24, 0
      %p120 = por %p118, %p119
      %p121 = scmp.ne.s32.totalorder %s109, %s110
      %p122 = scmp.eq.s32.totalorder %s25, 3
      %p123 = por %p121, %p122
      %p125 = scmp.ne.s32.totalorder %s110, %s124
      %p126 = scmp.eq.s32.totalorder %s25, 0
      %p127 = por %p125, %p126
      %s129 = sadd.s32 %s128, 1
      %p132 = scmp.eq.s32.totalorder %s19, 3
      %p133 = scmp.ne.s32.totalorder %s128, %s130
      %p134 = scmp.eq.s32.totalorder %s19, 0
      %p135 = por %p133, %p134
      %p136 = scmp.ne.s32.totalorder %s128, %s130
      %p137 = scmp.eq.s32.totalorder %s24, 3
      %p138 = por %p136, %p137
      %p139 = scmp.ne.s32.totalorder %s130, %s131
      %p140 = scmp.eq.s32.totalorder %s24, 0
      %p141 = por %p139, %p140
      %p142 = scmp.ne.s32.totalorder %s130, %s131
      %p143 = scmp.eq.s32.totalorder %s25, 3
      %p144 = por %p142, %p143
      %p146 = scmp.ne.s32.totalorder %s131, %s145
      %p147 = scmp.eq.s32.totalorder %s25, 0
      %p148 = por %p146, %p147
      %s150 = sadd.s32 %s149, 1
      %p153 = scmp.eq.s32.totalorder %s19, 3
      %p154 = scmp.ne.s32.totalorder %s149, %s151
      %p155 = scmp.eq.s32.totalorder %s19, 0
      %p156 = por %p154, %p155
      %p157 = scmp.ne.s32.totalorder %s149, %s151
      %p158 = scmp.eq.s32.totalorder %s24, 3
      %p159 = por %p157, %p158
      %p160 = scmp.ne.s32.totalorder %s151, %s152
      %p161 = scmp.eq.s32.totalorder %s24, 0
      %p162 = por %p160, %p161
      %p163 = scmp.ne.s32.totalorder %s151, %s152
      %p164 = scmp.eq.s32.totalorder %s25, 3
      %p165 = por %p163, %p164
      %p167 = scmp.ne.s32.totalorder %s152, %s166
      %p168 = scmp.eq.s32.totalorder %s25, 0
      %p169 = por %p167, %p168
      %s171 = sadd.s32 %s170, 1
      %p174 = scmp.eq.s32.totalorder %s19, 3
      %p175 = scmp.ne.s32.totalorder %s170, %s172
      %p176 = scmp.eq.s32.totalorder %s19, 0
      %p177 = por %p175, %p176
      %p178 = scmp.ne.s32.totalorder %s170, %s172
      %p179 = scmp.eq.s32.totalorder %s24, 3
      %p180 = por %p178, %p179
      %p181 = scmp.ne.s32.totalorder %s172, %s173
      %p182 = scmp.eq.s32.totalorder %s24, 0
      %p183 = por %p181, %p182
      %p184 = scmp.ne.s32.totalorder %s172, %s173
      %p185 = scmp.eq.s32.totalorder %s25, 3
      %p186 = por %p184, %p185
      %p188 = scmp.ne.s32.totalorder %s173, %s187
      %p189 = scmp.eq.s32.totalorder %s25, 0
      %p190 = por %p188, %p189
      %s192 = sadd.s32 %s191, 1
      %p195 = scmp.eq.s32.totalorder %s19, 3
      %p196 = scmp.ne.s32.totalorder %s191, %s193
      %p197 = scmp.eq.s32.totalorder %s19, 0
      %p198 = por %p196, %p197
      %p199 = scmp.ne.s32.totalorder %s191, %s193
      %p200 = scmp.eq.s32.totalorder %s24, 3
      %p201 = por %p199, %p200
      %p202 = scmp.ne.s32.totalorder %s193, %s194
      %p203 = scmp.eq.s32.totalorder %s24, 0
      %p204 = por %p202, %p203
      %p205 = scmp.ne.s32.totalorder %s193, %s194
      %p206 = scmp.eq.s32.totalorder %s25, 3
      %p207 = por %p205, %p206
      %p209 = scmp.ne.s32.totalorder %s194, %s208
      %p210 = scmp.eq.s32.totalorder %s25, 0
      %p211 = por %p209, %p210
      %s213 = sadd.s32 %s212, 1
      %p216 = scmp.eq.s32.totalorder %s19, 3
      %p217 = scmp.ne.s32.totalorder %s212, %s214
      %p218 = scmp.eq.s32.totalorder %s19, 0
      %p219 = por %p217, %p218
      %p220 = scmp.ne.s32.totalorder %s212, %s214
      %p221 = scmp.eq.s32.totalorder %s24, 3
      %p222 = por %p220, %p221
      %p223 = scmp.ne.s32.totalorder %s214, %s215
      %p224 = scmp.eq.s32.totalorder %s24, 0
      %p225 = por %p223, %p224
      %p226 = scmp.ne.s32.totalorder %s214, %s215
      %p227 = scmp.eq.s32.totalorder %s25, 3
      %p228 = por %p226, %p227
      %p230 = scmp.ne.s32.totalorder %s215, %s229
      %p231 = scmp.eq.s32.totalorder %s25, 0
      %p232 = por %p230, %p231
      %s234 = sadd.s32 %s233, 1
      %p237 = scmp.eq.s32.totalorder %s19, 3
      %p238 = scmp.ne.s32.totalorder %s233, %s235
      %p239 = scmp.eq.s32.totalorder %s19, 0
      %p240 = por %p238, %p239
      %p241 = scmp.ne.s32.totalorder %s233, %s235
      %p242 = scmp.eq.s32.totalorder %s24, 3
      %p243 = por %p241, %p242
      %p244 = scmp.ne.s32.totalorder %s235, %s236
      %p245 = scmp.eq.s32.totalorder %s24, 0
      %p246 = por %p244, %p245
      %p247 = scmp.ne.s32.totalorder %s235, %s236
      %p248 = scmp.eq.s32.totalorder %s25, 3
      %p249 = por %p247, %p248
      %p251 = scmp.ne.s32.totalorder %s236, %s250
      %p252 = scmp.eq.s32.totalorder %s25, 0
      %p253 = por %p251, %p252
      %s254 = ssub.s32 %s26, %s38
      %s255 = ssub.s32 %s27, %s34
      %s256 = sor.u32 %s254, %s255
      %p257 = scmp.eq.s32.totalorder %s256, 0
      %s259 = sadd.s32 %s258, 1
      %s260 = scalar_select %p257, %s258, %s259
      %p263 = pneg %p257
      %p264 = scmp.eq.s32.totalorder %s19, 3
      %p265 = por %p263, %p264
      %p266 = scmp.ne.s32.totalorder %s258, %s261
      %p267 = scmp.eq.s32.totalorder %s19, 0
      %p268 = por %p266, %p267
      %p269 = scmp.ne.s32.totalorder %s258, %s261
      %p270 = scmp.eq.s32.totalorder %s24, 3
      %p271 = por %p269, %p270
      %p272 = scmp.ne.s32.totalorder %s261, %s262
      %p273 = scmp.eq.s32.totalorder %s24, 0
      %p274 = por %p272, %p273
      %p275 = scmp.ne.s32.totalorder %s261, %s262
      %p276 = scmp.eq.s32.totalorder %s25, 3
      %p277 = por %p275, %p276
      %p279 = scmp.ne.s32.totalorder %s262, %s278
      %p280 = scmp.eq.s32.totalorder %s25, 0
      %p281 = por %p279, %p280
      %p282 = scmp.le.s32.totalorder 1, %s19
      %p283 = scmp.lt.s32.totalorder %s19, 5
      %p284 = pnand %p282, %p283
      %p285 = pneg %p284
      // Predicated region
      $region9: #{tpu_custom_call.1} parent=5 // pred_check
        _
      $region10: #{tpu_custom_call.1} parent=5 // pred_check_branch
        %287 = sbr.rel (%p284) target = $region12
      $region11: #{tpu_custom_call.1} parent=5 // pred_region
        %s288 = ssub.s32 %s19, 1
        // Predicated region
        $region13: #{tpu_custom_call.1} parent=11 // pred_check
          %p289 = pneg %p78
        $region14: #{tpu_custom_call.1} parent=11 // pred_check_branch
          %291 = sbr.rel (%p289) target = $region16
        $region15: #{tpu_custom_call.1} parent=11 // pred_region
          _
        $region16: #{tpu_custom_call.1} parent=11 // pred_fallthru
          _
        // Predicated region
        $region17: #{tpu_custom_call.1} parent=11 // pred_check
          %p292 = pneg %p99
        $region18: #{tpu_custom_call.1} parent=11 // pred_check_branch
          %294 = sbr.rel (%p292) target = $region20
        $region19: #{tpu_custom_call.1} parent=11 // pred_region
          _
        $region20: #{tpu_custom_call.1} parent=11 // pred_fallthru
          _
        // Predicated region
        $region21: #{tpu_custom_call.1} parent=11 // pred_check
          %p295 = pneg %p120
        $region22: #{tpu_custom_call.1} parent=11 // pred_check_branch
          %297 = sbr.rel (%p295) target = $region24
        $region23: #{tpu_custom_call.1} parent=11 // pred_region
          _
        $region24: #{tpu_custom_call.1} parent=11 // pred_fallthru
          _
        // Predicated region
        $region25: #{tpu_custom_call.1} parent=11 // pred_check
          %p298 = pneg %p141
        $region26: #{tpu_custom_call.1} parent=11 // pred_check_branch
          %300 = sbr.rel (%p298) target = $region28
        $region27: #{tpu_custom_call.1} parent=11 // pred_region
          _
        $region28: #{tpu_custom_call.1} parent=11 // pred_fallthru
          _
        // Predicated region
        $region29: #{tpu_custom_call.1} parent=11 // pred_check
          %p301 = pneg %p162
        $region30: #{tpu_custom_call.1} parent=11 // pred_check_branch
          %303 = sbr.rel (%p301) target = $region32
        $region31: #{tpu_custom_call.1} parent=11 // pred_region
          _
        $region32: #{tpu_custom_call.1} parent=11 // pred_fallthru
          _
        // Predicated region
        $region33: #{tpu_custom_call.1} parent=11 // pred_check
          %p304 = pneg %p183
        $region34: #{tpu_custom_call.1} parent=11 // pred_check_branch
          %306 = sbr.rel (%p304) target = $region36
        $region35: #{tpu_custom_call.1} parent=11 // pred_region
          _
        $region36: #{tpu_custom_call.1} parent=11 // pred_fallthru
          _
        // Predicated region
        $region37: #{tpu_custom_call.1} parent=11 // pred_check
          %p307 = pneg %p204
        $region38: #{tpu_custom_call.1} parent=11 // pred_check_branch
          %309 = sbr.rel (%p307) target = $region40
        $region39: #{tpu_custom_call.1} parent=11 // pred_region
          _
        $region40: #{tpu_custom_call.1} parent=11 // pred_fallthru
          _
        // Predicated region
        $region41: #{tpu_custom_call.1} parent=11 // pred_check
          %p310 = pneg %p225
        $region42: #{tpu_custom_call.1} parent=11 // pred_check_branch
          %312 = sbr.rel (%p310) target = $region44
        $region43: #{tpu_custom_call.1} parent=11 // pred_region
          _
        $region44: #{tpu_custom_call.1} parent=11 // pred_fallthru
          _
        // Predicated region
        $region45: #{tpu_custom_call.1} parent=11 // pred_check
          %p313 = pneg %p246
        $region46: #{tpu_custom_call.1} parent=11 // pred_check_branch
          %315 = sbr.rel (%p313) target = $region48
        $region47: #{tpu_custom_call.1} parent=11 // pred_region
          _
        $region48: #{tpu_custom_call.1} parent=11 // pred_fallthru
          _
      $region12: #{tpu_custom_call.1} parent=5 // pred_fallthru
        _
      %p316 = scmp.lt.s32.totalorder %s19, 4
      // Predicated region
      $region49: #{tpu_custom_call.1} parent=5 // pred_check
        %p317 = pneg %p316
      $region50: #{tpu_custom_call.1} parent=5 // pred_check_branch
        %319 = sbr.rel (%p317) target = $region52
      $region51: #{tpu_custom_call.1} parent=5 // pred_region
        // Predicated region
        $region53: #{tpu_custom_call.1} parent=51 // pred_check
          %p320 = pneg %p51
        $region54: #{tpu_custom_call.1} parent=51 // pred_check_branch
          %322 = sbr.rel (%p320) target = $region56
        $region55: #{tpu_custom_call.1} parent=51 // pred_region
          %p323 = scmp.lt.s32.totalorder %s26, 1
          %s324 = scalar_select %p323, %s26, 1
          %s325 = smul.addr %s324, 66
          %s326 = smul.addr %s325, 8
          %s327 = scalar_lea.vmem %s0, %s326
        $region56: #{tpu_custom_call.1} parent=51 // pred_fallthru
          _
      $region52: #{tpu_custom_call.1} parent=5 // pred_fallthru
        _
      %p328 = scmp.le.s32.totalorder 1, %s19
      %p329 = scmp.lt.s32.totalorder %s19, 5
      %p330 = pnand %p328, %p329
      %p331 = pneg %p330
      // Predicated region
      $region57: #{tpu_custom_call.1} parent=5 // pred_check
        _
      $region58: #{tpu_custom_call.1} parent=5 // pred_check_branch
        %333 = sbr.rel (%p330) target = $region60
      $region59: #{tpu_custom_call.1} parent=5 // pred_region
        %s334 = ssub.s32 %s19, 1
        %p335 = scmp.lt.s32.totalorder %s28, 1
        %s336 = scalar_select %p335, %s28, 1
        %s337 = smul.addr %s336, 66
        %s338 = smul.addr %s337, 8
        %s339 = scalar_lea.vmem %s0, %s338
        %p340 = pneg %p57
        %p341 = pneg %p54
        %p342 = pneg %p78
        %p343 = pneg %p75
        %p344 = pneg %p99
        %p345 = pneg %p96
        %p346 = pneg %p120
        %p347 = pneg %p117
        %p348 = pneg %p141
        %p349 = pneg %p138
        %p350 = pneg %p162
        %p351 = pneg %p159
        %p352 = pneg %p183
        %p353 = pneg %p180
        %p354 = pneg %p204
        %p355 = pneg %p201
        %p356 = pneg %p225
        %p357 = pneg %p222
        %p358 = pneg %p246
        %p359 = pneg %p243
        %p360 = pneg %p274
        %p361 = pneg %p271
        %s362 = sand.u32 %s261, 1
        %s363 = scalar_lea.sflag [#allocation3], %s362
        %s364 = sand.u32 %s261, 1
        %s365 = smul.addr %s364, 128
        %s366 = scalar_lea.vmem [#allocation2], %s365
        %p367 = scmp.lt.s32.totalorder %s28, 1
        %s368 = scalar_select %p367, %s28, 1
        %s369 = smul.addr %s368, 66
        %s370 = smul.addr %s369, 8
        %s371 = scalar_lea.vmem %s0, %s370
        %s372 = smul.u32 8, %s29
        %s374 = smul.u32 %s29, 8
        %s375 = smul.u32 %s374, 24
        %s376 = scalar_lea.vmem %s371, %s375
        %v377 = vld [vmem:[%s376] sm:$0xff]
        %v378 = vld [vmem:[%s376 + $0x8] sm:$0xff]
        %v379 = vld [vmem:[%s376 + $0x10] sm:$0x3f]
        %v380 = vld [vmem:[%s376 + $0x18] sm:$0xff]
        %v381 = vld [vmem:[%s376 + $0x20] sm:$0xff]
        %v382 = vld [vmem:[%s376 + $0x28] sm:$0x3f]
        %v383 = vld [vmem:[%s376 + $0x30] sm:$0xff]
        %v384 = vld [vmem:[%s376 + $0x38] sm:$0xff]
        %v385 = vld [vmem:[%s376 + $0x40] sm:$0x3f]
        %v386 = vld [vmem:[%s376 + $0x48] sm:$0xff]
        %v387 = vld [vmem:[%s376 + $0x50] sm:$0xff]
        %v388 = vld [vmem:[%s376 + $0x58] sm:$0x3f]
        %v389 = vld [vmem:[%s376 + $0x60] sm:$0xff]
        %v390 = vld [vmem:[%s376 + $0x68] sm:$0xff]
        %v391 = vld [vmem:[%s376 + $0x70] sm:$0x3f]
        %v392 = vld [vmem:[%s376 + $0x78] sm:$0xff]
        %v393 = vld [vmem:[%s376 + $0x80] sm:$0xff]
        %v394 = vld [vmem:[%s376 + $0x88] sm:$0x3f]
        %v395 = vld [vmem:[%s376 + $0x90] sm:$0xff]
        %v396 = vld [vmem:[%s376 + $0x98] sm:$0xff]
        %v397 = vld [vmem:[%s376 + $0xa0] sm:$0x3f]
        %v398 = vld [vmem:[%s376 + $0xa8] sm:$0xff]
        %v399 = vld [vmem:[%s376 + $0xb0] sm:$0xff]
        %v400 = vld [vmem:[%s376 + $0xb8] sm:$0x3f]
        %v401 = vld [vmem:[%s376 + $0xc0] sm:$0xff]
        %v402 = vld [vmem:[%s376 + $0xc8] sm:$0xff]
        %v403 = vld [vmem:[%s376 + $0xd0] sm:$0x3f]
        %v404 = vld [vmem:[%s376 + $0xd8] sm:$0xff]
        %v405 = vld [vmem:[%s376 + $0xe0] sm:$0xff]
        %v406 = vld [vmem:[%s376 + $0xe8] sm:$0x3f]
        %v407 = vld [vmem:[%s376 + $0xf0] sm:$0xff]
        %v408 = vld [vmem:[%s376 + $0xf8] sm:$0xff]
        %v409 = vld [vmem:[%s376 + $0x100] sm:$0x3f]
        %v410 = vld [vmem:[%s376 + $0x108] sm:$0xff]
        %v411 = vld [vmem:[%s376 + $0x110] sm:$0xff]
        %v412 = vld [vmem:[%s376 + $0x118] sm:$0x3f]
        %v413 = vld [vmem:[%s376 + $0x120] sm:$0xff]
        %v414 = vld [vmem:[%s376 + $0x128] sm:$0xff]
        %v415 = vld [vmem:[%s376 + $0x130] sm:$0x3f]
        %v416 = vld [vmem:[%s376 + $0x138] sm:$0xff]
        %v417 = vld [vmem:[%s376 + $0x140] sm:$0xff]
        %v418 = vld [vmem:[%s376 + $0x148] sm:$0x3f]
        %v419 = vld [vmem:[%s1] sm:$0xff]
        %v420 = vld [vmem:[%s1 + $0x8] sm:$0xff]
        %v421 = vld [vmem:[%s1 + $0x10] sm:$0xff]
        %v422 = vld [vmem:[%s1 + $0x18] sm:$0xff]
        %v423 = vld [vmem:[%s1 + $0x20] sm:$0xff]
        %v424 = vld [vmem:[%s1 + $0x28] sm:$0xff]
        %v425 = vld [vmem:[%s1 + $0x30] sm:$0x1]
        %v426 = vld [vmem:[%s2] sm:$0x1]
        %v428 = vlaneseq
        %v429 = vshrl.u32 %v428, 7
        %v430 = vsub.s32 0, %v429
        %v431 = vrot.slane %v426, %v430
        %v433 = vadd.f32 %v431, 0.0
        %v434 = vlaneseq
        %v435 = vshrl.u32 %v434, 7
        %v436 = vsub.s32 0, %v435
        %v437 = vrot.slane %v419, %v436
        %v438 = vmul.f32 %v377, %v437
        %v439 = vmul.f32 %v378, %v437
        %v440 = vmul.f32 %v380, %v437
        %v441 = vmul.f32 %v381, %v437
        %v442 = vmul.f32 %v383, %v437
        %v443 = vmul.f32 %v384, %v437
        %v444 = vmul.f32 %v386, %v437
        %v445 = vmul.f32 %v387, %v437
        %v446 = vmul.f32 %v389, %v437
        %v447 = vmul.f32 %v390, %v437
        %v448 = vmul.f32 %v392, %v437
        %v449 = vmul.f32 %v393, %v437
        %v450 = vmul.f32 %v395, %v437
        %v451 = vmul.f32 %v396, %v437
        %v452 = vmul.f32 %v398, %v437
        %v453 = vmul.f32 %v399, %v437
        %v454 = vadd.f32 %v433, %v438
        %v455 = vadd.f32 %v433, %v439
        %v456 = vadd.f32 %v433, %v440
        %v457 = vadd.f32 %v433, %v441
        %v458 = vadd.f32 %v433, %v442
        %v459 = vadd.f32 %v433, %v443
        %v460 = vadd.f32 %v433, %v444
        %v461 = vadd.f32 %v433, %v445
        %v462 = vadd.f32 %v433, %v446
        %v463 = vadd.f32 %v433, %v447
        %v464 = vadd.f32 %v433, %v448
        %v465 = vadd.f32 %v433, %v449
        %v466 = vadd.f32 %v433, %v450
        %v467 = vadd.f32 %v433, %v451
        %v468 = vadd.f32 %v433, %v452
        %v469 = vadd.f32 %v433, %v453
        %v470 = vlaneseq
        %v471 = vshrl.u32 %v470, 7
        %v472 = vsub.s32 1, %v471
        %v473 = vrot.slane %v419, %v472
        %v474 = vmul.f32 %v377, %v473
        %v475 = vmul.f32 %v378, %v473
        %v476 = vmul.f32 %v379, %v473
        %v477 = vmul.f32 %v380, %v473
        %v478 = vmul.f32 %v381, %v473
        %v479 = vmul.f32 %v382, %v473
        %v480 = vmul.f32 %v383, %v473
        %v481 = vmul.f32 %v384, %v473
        %v482 = vmul.f32 %v385, %v473
        %v483 = vmul.f32 %v386, %v473
        %v484 = vmul.f32 %v387, %v473
        %v485 = vmul.f32 %v388, %v473
        %v486 = vmul.f32 %v389, %v473
        %v487 = vmul.f32 %v390, %v473
        %v488 = vmul.f32 %v391, %v473
        %v489 = vmul.f32 %v392, %v473
        %v490 = vmul.f32 %v393, %v473
        %v491 = vmul.f32 %v394, %v473
        %v492 = vmul.f32 %v395, %v473
        %v493 = vmul.f32 %v396, %v473
        %v494 = vmul.f32 %v397, %v473
        %v495 = vmul.f32 %v398, %v473
        %v496 = vmul.f32 %v399, %v473
        %v497 = vmul.f32 %v400, %v473
        %vm522 = vcmask 1046528
        %v523 = vrot.slane %v474, 1
        %v524 = vrot.slane %v475, 1
        %v525 = vsel %vm522, %v523, %v524
        %v526 = vrot.slane %v476, 1
        %v527 = vsel %vm522, %v524, %v526
        %v528 = vrot.slane %v477, 1
        %v529 = vrot.slane %v478, 1
        %v530 = vsel %vm522, %v528, %v529
        %v531 = vrot.slane %v479, 1
        %v532 = vsel %vm522, %v529, %v531
        %v533 = vrot.slane %v480, 1
        %v534 = vrot.slane %v481, 1
        %v535 = vsel %vm522, %v533, %v534
        %v536 = vrot.slane %v482, 1
        %v537 = vsel %vm522, %v534, %v536
        %v538 = vrot.slane %v483, 1
        %v539 = vrot.slane %v484, 1
        %v540 = vsel %vm522, %v538, %v539
        %v541 = vrot.slane %v485, 1
        %v542 = vsel %vm522, %v539, %v541
        %v543 = vrot.slane %v486, 1
        %v544 = vrot.slane %v487, 1
        %v545 = vsel %vm522, %v543, %v544
        %v546 = vrot.slane %v488, 1
        %v547 = vsel %vm522, %v544, %v546
        %v548 = vrot.slane %v489, 1
        %v549 = vrot.slane %v490, 1
        %v550 = vsel %vm522, %v548, %v549
        %v551 = vrot.slane %v491, 1
        %v552 = vsel %vm522, %v549, %v551
        %v553 = vrot.slane %v492, 1
        %v554 = vrot.slane %v493, 1
        %v555 = vsel %vm522, %v553, %v554
        %v556 = vrot.slane %v494, 1
        %v557 = vsel %vm522, %v554, %v556
        %v558 = vrot.slane %v495, 1
        %v559 = vrot.slane %v496, 1
        %v560 = vsel %vm522, %v558, %v559
        %v561 = vrot.slane %v497, 1
        %v562 = vsel %vm522, %v559, %v561
        %v579 = vadd.f32 %v454, %v525
        %v580 = vadd.f32 %v455, %v527
        %v581 = vadd.f32 %v456, %v530
        %v582 = vadd.f32 %v457, %v532
        %v583 = vadd.f32 %v458, %v535
        %v584 = vadd.f32 %v459, %v537
        %v585 = vadd.f32 %v460, %v540
        %v586 = vadd.f32 %v461, %v542
        %v587 = vadd.f32 %v462, %v545
        %v588 = vadd.f32 %v463, %v547
        %v589 = vadd.f32 %v464, %v550
        %v590 = vadd.f32 %v465, %v552
        %v591 = vadd.f32 %v466, %v555
        %v592 = vadd.f32 %v467, %v557
        %v593 = vadd.f32 %v468, %v560
        %v594 = vadd.f32 %v469, %v562
        %v595 = vlaneseq
        %v596 = vshrl.u32 %v595, 7
        %v597 = vsub.s32 2, %v596
        %v598 = vrot.slane %v419, %v597
        %v599 = vmul.f32 %v377, %v598
        %v600 = vmul.f32 %v378, %v598
        %v601 = vmul.f32 %v379, %v598
        %v602 = vmul.f32 %v380, %v598
        %v603 = vmul.f32 %v381, %v598
        %v604 = vmul.f32 %v382, %v598
        %v605 = vmul.f32 %v383, %v598
        %v606 = vmul.f32 %v384, %v598
        %v607 = vmul.f32 %v385, %v598
        %v608 = vmul.f32 %v386, %v598
        %v609 = vmul.f32 %v387, %v598
        %v610 = vmul.f32 %v388, %v598
        %v611 = vmul.f32 %v389, %v598
        %v612 = vmul.f32 %v390, %v598
        %v613 = vmul.f32 %v391, %v598
        %v614 = vmul.f32 %v392, %v598
        %v615 = vmul.f32 %v393, %v598
        %v616 = vmul.f32 %v394, %v598
        %v617 = vmul.f32 %v395, %v598
        %v618 = vmul.f32 %v396, %v598
        %v619 = vmul.f32 %v397, %v598
        %v620 = vmul.f32 %v398, %v598
        %v621 = vmul.f32 %v399, %v598
        %v622 = vmul.f32 %v400, %v598
        %vm647 = vcmask 1045504
        %v648 = vrot.slane %v599, 2
        %v649 = vrot.slane %v600, 2
        %v650 = vsel %vm647, %v648, %v649
        %v651 = vrot.slane %v601, 2
        %v652 = vsel %vm647, %v649, %v651
        %v653 = vrot.slane %v602, 2
        %v654 = vrot.slane %v603, 2
        %v655 = vsel %vm647, %v653, %v654
        %v656 = vrot.slane %v604, 2
        %v657 = vsel %vm647, %v654, %v656
        %v658 = vrot.slane %v605, 2
        %v659 = vrot.slane %v606, 2
        %v660 = vsel %vm647, %v658, %v659
        %v661 = vrot.slane %v607, 2
        %v662 = vsel %vm647, %v659, %v661
        %v663 = vrot.slane %v608, 2
        %v664 = vrot.slane %v609, 2
        %v665 = vsel %vm647, %v663, %v664
        %v666 = vrot.slane %v610, 2
        %v667 = vsel %vm647, %v664, %v666
        %v668 = vrot.slane %v611, 2
        %v669 = vrot.slane %v612, 2
        %v670 = vsel %vm647, %v668, %v669
        %v671 = vrot.slane %v613, 2
        %v672 = vsel %vm647, %v669, %v671
        %v673 = vrot.slane %v614, 2
        %v674 = vrot.slane %v615, 2
        %v675 = vsel %vm647, %v673, %v674
        %v676 = vrot.slane %v616, 2
        %v677 = vsel %vm647, %v674, %v676
        %v678 = vrot.slane %v617, 2
        %v679 = vrot.slane %v618, 2
        %v680 = vsel %vm647, %v678, %v679
        %v681 = vrot.slane %v619, 2
        %v682 = vsel %vm647, %v679, %v681
        %v683 = vrot.slane %v620, 2
        %v684 = vrot.slane %v621, 2
        %v685 = vsel %vm647, %v683, %v684
        %v686 = vrot.slane %v622, 2
        %v687 = vsel %vm647, %v684, %v686
        %v704 = vadd.f32 %v579, %v650
        %v705 = vadd.f32 %v580, %v652
        %v706 = vadd.f32 %v581, %v655
        %v707 = vadd.f32 %v582, %v657
        %v708 = vadd.f32 %v583, %v660
        %v709 = vadd.f32 %v584, %v662
        %v710 = vadd.f32 %v585, %v665
        %v711 = vadd.f32 %v586, %v667
        %v712 = vadd.f32 %v587, %v670
        %v713 = vadd.f32 %v588, %v672
        %v714 = vadd.f32 %v589, %v675
        %v715 = vadd.f32 %v590, %v677
        %v716 = vadd.f32 %v591, %v680
        %v717 = vadd.f32 %v592, %v682
        %v718 = vadd.f32 %v593, %v685
        %v719 = vadd.f32 %v594, %v687
        %v720 = vlaneseq
        %v721 = vshrl.u32 %v720, 7
        %v722 = vsub.s32 3, %v721
        %v723 = vrot.slane %v419, %v722
        %v724 = vmul.f32 %v377, %v723
        %v725 = vmul.f32 %v378, %v723
        %v726 = vmul.f32 %v379, %v723
        %v727 = vmul.f32 %v380, %v723
        %v728 = vmul.f32 %v381, %v723
        %v729 = vmul.f32 %v382, %v723
        %v730 = vmul.f32 %v383, %v723
        %v731 = vmul.f32 %v384, %v723
        %v732 = vmul.f32 %v385, %v723
        %v733 = vmul.f32 %v386, %v723
        %v734 = vmul.f32 %v387, %v723
        %v735 = vmul.f32 %v388, %v723
        %v736 = vmul.f32 %v389, %v723
        %v737 = vmul.f32 %v390, %v723
        %v738 = vmul.f32 %v391, %v723
        %v739 = vmul.f32 %v392, %v723
        %v740 = vmul.f32 %v393, %v723
        %v741 = vmul.f32 %v394, %v723
        %v742 = vmul.f32 %v395, %v723
        %v743 = vmul.f32 %v396, %v723
        %v744 = vmul.f32 %v397, %v723
        %v745 = vmul.f32 %v398, %v723
        %v746 = vmul.f32 %v399, %v723
        %v747 = vmul.f32 %v400, %v723
        %vm772 = vcmask 1044480
        %v773 = vrot.slane %v724, 3
        %v774 = vrot.slane %v725, 3
        %v775 = vsel %vm772, %v773, %v774
        %v776 = vrot.slane %v726, 3
        %v777 = vsel %vm772, %v774, %v776
        %v778 = vrot.slane %v727, 3
        %v779 = vrot.slane %v728, 3
        %v780 = vsel %vm772, %v778, %v779
        %v781 = vrot.slane %v729, 3
        %v782 = vsel %vm772, %v779, %v781
        %v783 = vrot.slane %v730, 3
        %v784 = vrot.slane %v731, 3
        %v785 = vsel %vm772, %v783, %v784
        %v786 = vrot.slane %v732, 3
        %v787 = vsel %vm772, %v784, %v786
        %v788 = vrot.slane %v733, 3
        %v789 = vrot.slane %v734, 3
        %v790 = vsel %vm772, %v788, %v789
        %v791 = vrot.slane %v735, 3
        %v792 = vsel %vm772, %v789, %v791
        %v793 = vrot.slane %v736, 3
        %v794 = vrot.slane %v737, 3
        %v795 = vsel %vm772, %v793, %v794
        %v796 = vrot.slane %v738, 3
        %v797 = vsel %vm772, %v794, %v796
        %v798 = vrot.slane %v739, 3
        %v799 = vrot.slane %v740, 3
        %v800 = vsel %vm772, %v798, %v799
        %v801 = vrot.slane %v741, 3
        %v802 = vsel %vm772, %v799, %v801
        %v803 = vrot.slane %v742, 3
        %v804 = vrot.slane %v743, 3
        %v805 = vsel %vm772, %v803, %v804
        %v806 = vrot.slane %v744, 3
        %v807 = vsel %vm772, %v804, %v806
        %v808 = vrot.slane %v745, 3
        %v809 = vrot.slane %v746, 3
        %v810 = vsel %vm772, %v808, %v809
        %v811 = vrot.slane %v747, 3
        %v812 = vsel %vm772, %v809, %v811
        %v829 = vadd.f32 %v704, %v775
        %v830 = vadd.f32 %v705, %v777
        %v831 = vadd.f32 %v706, %v780
        %v832 = vadd.f32 %v707, %v782
        %v833 = vadd.f32 %v708, %v785
        %v834 = vadd.f32 %v709, %v787
        %v835 = vadd.f32 %v710, %v790
        %v836 = vadd.f32 %v711, %v792
        %v837 = vadd.f32 %v712, %v795
        %v838 = vadd.f32 %v713, %v797
        %v839 = vadd.f32 %v714, %v800
        %v840 = vadd.f32 %v715, %v802
        %v841 = vadd.f32 %v716, %v805
        %v842 = vadd.f32 %v717, %v807
        %v843 = vadd.f32 %v718, %v810
        %v844 = vadd.f32 %v719, %v812
        %v845 = vlaneseq
        %v846 = vshrl.u32 %v845, 7
        %v847 = vsub.s32 4, %v846
        %v848 = vrot.slane %v419, %v847
        %v849 = vmul.f32 %v377, %v848
        %v850 = vmul.f32 %v378, %v848
        %v851 = vmul.f32 %v379, %v848
        %v852 = vmul.f32 %v380, %v848
        %v853 = vmul.f32 %v381, %v848
        %v854 = vmul.f32 %v382, %v848
        %v855 = vmul.f32 %v383, %v848
        %v856 = vmul.f32 %v384, %v848
        %v857 = vmul.f32 %v385, %v848
        %v858 = vmul.f32 %v386, %v848
        %v859 = vmul.f32 %v387, %v848
        %v860 = vmul.f32 %v388, %v848
        %v861 = vmul.f32 %v389, %v848
        %v862 = vmul.f32 %v390, %v848
        %v863 = vmul.f32 %v391, %v848
        %v864 = vmul.f32 %v392, %v848
        %v865 = vmul.f32 %v393, %v848
        %v866 = vmul.f32 %v394, %v848
        %v867 = vmul.f32 %v395, %v848
        %v868 = vmul.f32 %v396, %v848
        %v869 = vmul.f32 %v397, %v848
        %v870 = vmul.f32 %v398, %v848
        %v871 = vmul.f32 %v399, %v848
        %v872 = vmul.f32 %v400, %v848
        %vm897 = vcmask 1043456
        %v898 = vrot.slane %v849, 4
        %v899 = vrot.slane %v850, 4
        %v900 = vsel %vm897, %v898, %v899
        %v901 = vrot.slane %v851, 4
        %v902 = vsel %vm897, %v899, %v901
        %v903 = vrot.slane %v852, 4
        %v904 = vrot.slane %v853, 4
        %v905 = vsel %vm897, %v903, %v904
        %v906 = vrot.slane %v854, 4
        %v907 = vsel %vm897, %v904, %v906
        %v908 = vrot.slane %v855, 4
        %v909 = vrot.slane %v856, 4
        %v910 = vsel %vm897, %v908, %v909
        %v911 = vrot.slane %v857, 4
        %v912 = vsel %vm897, %v909, %v911
        %v913 = vrot.slane %v858, 4
        %v914 = vrot.slane %v859, 4
        %v915 = vsel %vm897, %v913, %v914
        %v916 = vrot.slane %v860, 4
        %v917 = vsel %vm897, %v914, %v916
        %v918 = vrot.slane %v861, 4
        %v919 = vrot.slane %v862, 4
        %v920 = vsel %vm897, %v918, %v919
        %v921 = vrot.slane %v863, 4
        %v922 = vsel %vm897, %v919, %v921
        %v923 = vrot.slane %v864, 4
        %v924 = vrot.slane %v865, 4
        %v925 = vsel %vm897, %v923, %v924
        %v926 = vrot.slane %v866, 4
        %v927 = vsel %vm897, %v924, %v926
        %v928 = vrot.slane %v867, 4
        %v929 = vrot.slane %v868, 4
        %v930 = vsel %vm897, %v928, %v929
        %v931 = vrot.slane %v869, 4
        %v932 = vsel %vm897, %v929, %v931
        %v933 = vrot.slane %v870, 4
        %v934 = vrot.slane %v871, 4
        %v935 = vsel %vm897, %v933, %v934
        %v936 = vrot.slane %v872, 4
        %v937 = vsel %vm897, %v934, %v936
        %v954 = vadd.f32 %v829, %v900
        %v955 = vadd.f32 %v830, %v902
        %v956 = vadd.f32 %v831, %v905
        %v957 = vadd.f32 %v832, %v907
        %v958 = vadd.f32 %v833, %v910
        %v959 = vadd.f32 %v834, %v912
        %v960 = vadd.f32 %v835, %v915
        %v961 = vadd.f32 %v836, %v917
        %v962 = vadd.f32 %v837, %v920
        %v963 = vadd.f32 %v838, %v922
        %v964 = vadd.f32 %v839, %v925
        %v965 = vadd.f32 %v840, %v927
        %v966 = vadd.f32 %v841, %v930
        %v967 = vadd.f32 %v842, %v932
        %v968 = vadd.f32 %v843, %v935
        %v969 = vadd.f32 %v844, %v937
        %v970 = vlaneseq
        %v971 = vshrl.u32 %v970, 7
        %v972 = vsub.s32 5, %v971
        %v973 = vrot.slane %v419, %v972
        %v974 = vmul.f32 %v377, %v973
        %v975 = vmul.f32 %v378, %v973
        %v976 = vmul.f32 %v379, %v973
        %v977 = vmul.f32 %v380, %v973
        %v978 = vmul.f32 %v381, %v973
        %v979 = vmul.f32 %v382, %v973
        %v980 = vmul.f32 %v383, %v973
        %v981 = vmul.f32 %v384, %v973
        %v982 = vmul.f32 %v385, %v973
        %v983 = vmul.f32 %v386, %v973
        %v984 = vmul.f32 %v387, %v973
        %v985 = vmul.f32 %v388, %v973
        %v986 = vmul.f32 %v389, %v973
        %v987 = vmul.f32 %v390, %v973
        %v988 = vmul.f32 %v391, %v973
        %v989 = vmul.f32 %v392, %v973
        %v990 = vmul.f32 %v393, %v973
        %v991 = vmul.f32 %v394, %v973
        %v992 = vmul.f32 %v395, %v973
        %v993 = vmul.f32 %v396, %v973
        %v994 = vmul.f32 %v397, %v973
        %v995 = vmul.f32 %v398, %v973
        %v996 = vmul.f32 %v399, %v973
        %v997 = vmul.f32 %v400, %v973
        %vm1022 = vcmask 1042432
        %v1023 = vrot.slane %v974, 5
        %v1024 = vrot.slane %v975, 5
        %v1025 = vsel %vm1022, %v1023, %v1024
        %v1026 = vrot.slane %v976, 5
        %v1027 = vsel %vm1022, %v1024, %v1026
        %v1028 = vrot.slane %v977, 5
        %v1029 = vrot.slane %v978, 5
        %v1030 = vsel %vm1022, %v1028, %v1029
        %v1031 = vrot.slane %v979, 5
        %v1032 = vsel %vm1022, %v1029, %v1031
        %v1033 = vrot.slane %v980, 5
        %v1034 = vrot.slane %v981, 5
        %v1035 = vsel %vm1022, %v1033, %v1034
        %v1036 = vrot.slane %v982, 5
        %v1037 = vsel %vm1022, %v1034, %v1036
        %v1038 = vrot.slane %v983, 5
        %v1039 = vrot.slane %v984, 5
        %v1040 = vsel %vm1022, %v1038, %v1039
        %v1041 = vrot.slane %v985, 5
        %v1042 = vsel %vm1022, %v1039, %v1041
        %v1043 = vrot.slane %v986, 5
        %v1044 = vrot.slane %v987, 5
        %v1045 = vsel %vm1022, %v1043, %v1044
        %v1046 = vrot.slane %v988, 5
        %v1047 = vsel %vm1022, %v1044, %v1046
        %v1048 = vrot.slane %v989, 5
        %v1049 = vrot.slane %v990, 5
        %v1050 = vsel %vm1022, %v1048, %v1049
        %v1051 = vrot.slane %v991, 5
        %v1052 = vsel %vm1022, %v1049, %v1051
        %v1053 = vrot.slane %v992, 5
        %v1054 = vrot.slane %v993, 5
        %v1055 = vsel %vm1022, %v1053, %v1054
        %v1056 = vrot.slane %v994, 5
        %v1057 = vsel %vm1022, %v1054, %v1056
        %v1058 = vrot.slane %v995, 5
        %v1059 = vrot.slane %v996, 5
        %v1060 = vsel %vm1022, %v1058, %v1059
        %v1061 = vrot.slane %v997, 5
        %v1062 = vsel %vm1022, %v1059, %v1061
        %v1079 = vadd.f32 %v954, %v1025
        %v1080 = vadd.f32 %v955, %v1027
        %v1081 = vadd.f32 %v956, %v1030
        %v1082 = vadd.f32 %v957, %v1032
        %v1083 = vadd.f32 %v958, %v1035
        %v1084 = vadd.f32 %v959, %v1037
        %v1085 = vadd.f32 %v960, %v1040
        %v1086 = vadd.f32 %v961, %v1042
        %v1087 = vadd.f32 %v962, %v1045
        %v1088 = vadd.f32 %v963, %v1047
        %v1089 = vadd.f32 %v964, %v1050
        %v1090 = vadd.f32 %v965, %v1052
        %v1091 = vadd.f32 %v966, %v1055
        %v1092 = vadd.f32 %v967, %v1057
        %v1093 = vadd.f32 %v968, %v1060
        %v1094 = vadd.f32 %v969, %v1062
        %v1095 = vlaneseq
        %v1096 = vshrl.u32 %v1095, 7
        %v1097 = vsub.s32 6, %v1096
        %v1098 = vrot.slane %v419, %v1097
        %v1099 = vmul.f32 %v377, %v1098
        %v1100 = vmul.f32 %v378, %v1098
        %v1101 = vmul.f32 %v379, %v1098
        %v1102 = vmul.f32 %v380, %v1098
        %v1103 = vmul.f32 %v381, %v1098
        %v1104 = vmul.f32 %v382, %v1098
        %v1105 = vmul.f32 %v383, %v1098
        %v1106 = vmul.f32 %v384, %v1098
        %v1107 = vmul.f32 %v385, %v1098
        %v1108 = vmul.f32 %v386, %v1098
        %v1109 = vmul.f32 %v387, %v1098
        %v1110 = vmul.f32 %v388, %v1098
        %v1111 = vmul.f32 %v389, %v1098
        %v1112 = vmul.f32 %v390, %v1098
        %v1113 = vmul.f32 %v391, %v1098
        %v1114 = vmul.f32 %v392, %v1098
        %v1115 = vmul.f32 %v393, %v1098
        %v1116 = vmul.f32 %v394, %v1098
        %v1117 = vmul.f32 %v395, %v1098
        %v1118 = vmul.f32 %v396, %v1098
        %v1119 = vmul.f32 %v397, %v1098
        %v1120 = vmul.f32 %v398, %v1098
        %v1121 = vmul.f32 %v399, %v1098
        %v1122 = vmul.f32 %v400, %v1098
        %vm1147 = vcmask 1041408
        %v1148 = vrot.slane %v1099, 6
        %v1149 = vrot.slane %v1100, 6
        %v1150 = vsel %vm1147, %v1148, %v1149
        %v1151 = vrot.slane %v1101, 6
        %v1152 = vsel %vm1147, %v1149, %v1151
        %v1153 = vrot.slane %v1102, 6
        %v1154 = vrot.slane %v1103, 6
        %v1155 = vsel %vm1147, %v1153, %v1154
        %v1156 = vrot.slane %v1104, 6
        %v1157 = vsel %vm1147, %v1154, %v1156
        %v1158 = vrot.slane %v1105, 6
        %v1159 = vrot.slane %v1106, 6
        %v1160 = vsel %vm1147, %v1158, %v1159
        %v1161 = vrot.slane %v1107, 6
        %v1162 = vsel %vm1147, %v1159, %v1161
        %v1163 = vrot.slane %v1108, 6
        %v1164 = vrot.slane %v1109, 6
        %v1165 = vsel %vm1147, %v1163, %v1164
        %v1166 = vrot.slane %v1110, 6
        %v1167 = vsel %vm1147, %v1164, %v1166
        %v1168 = vrot.slane %v1111, 6
        %v1169 = vrot.slane %v1112, 6
        %v1170 = vsel %vm1147, %v1168, %v1169
        %v1171 = vrot.slane %v1113, 6
        %v1172 = vsel %vm1147, %v1169, %v1171
        %v1173 = vrot.slane %v1114, 6
        %v1174 = vrot.slane %v1115, 6
        %v1175 = vsel %vm1147, %v1173, %v1174
        %v1176 = vrot.slane %v1116, 6
        %v1177 = vsel %vm1147, %v1174, %v1176
        %v1178 = vrot.slane %v1117, 6
        %v1179 = vrot.slane %v1118, 6
        %v1180 = vsel %vm1147, %v1178, %v1179
        %v1181 = vrot.slane %v1119, 6
        %v1182 = vsel %vm1147, %v1179, %v1181
        %v1183 = vrot.slane %v1120, 6
        %v1184 = vrot.slane %v1121, 6
        %v1185 = vsel %vm1147, %v1183, %v1184
        %v1186 = vrot.slane %v1122, 6
        %v1187 = vsel %vm1147, %v1184, %v1186
        %v1204 = vadd.f32 %v1079, %v1150
        %v1205 = vadd.f32 %v1080, %v1152
        %v1206 = vadd.f32 %v1081, %v1155
        %v1207 = vadd.f32 %v1082, %v1157
        %v1208 = vadd.f32 %v1083, %v1160
        %v1209 = vadd.f32 %v1084, %v1162
        %v1210 = vadd.f32 %v1085, %v1165
        %v1211 = vadd.f32 %v1086, %v1167
        %v1212 = vadd.f32 %v1087, %v1170
        %v1213 = vadd.f32 %v1088, %v1172
        %v1214 = vadd.f32 %v1089, %v1175
        %v1215 = vadd.f32 %v1090, %v1177
        %v1216 = vadd.f32 %v1091, %v1180
        %v1217 = vadd.f32 %v1092, %v1182
        %v1218 = vadd.f32 %v1093, %v1185
        %v1219 = vadd.f32 %v1094, %v1187
        %v1220 = vlaneseq
        %v1221 = vshrl.u32 %v1220, 7
        %v1222 = vsub.s32 7, %v1221
        %v1223 = vrot.slane %v419, %v1222
        %v1224 = vmul.f32 %v380, %v1223
        %v1225 = vmul.f32 %v381, %v1223
        %v1226 = vmul.f32 %v383, %v1223
        %v1227 = vmul.f32 %v384, %v1223
        %v1228 = vmul.f32 %v386, %v1223
        %v1229 = vmul.f32 %v387, %v1223
        %v1230 = vmul.f32 %v389, %v1223
        %v1231 = vmul.f32 %v390, %v1223
        %v1232 = vmul.f32 %v392, %v1223
        %v1233 = vmul.f32 %v393, %v1223
        %v1234 = vmul.f32 %v395, %v1223
        %v1235 = vmul.f32 %v396, %v1223
        %v1236 = vmul.f32 %v398, %v1223
        %v1237 = vmul.f32 %v399, %v1223
        %v1238 = vmul.f32 %v401, %v1223
        %v1239 = vmul.f32 %v402, %v1223
        %v1240 = vadd.f32 %v1204, %v1224
        %v1241 = vadd.f32 %v1205, %v1225
        %v1242 = vadd.f32 %v1206, %v1226
        %v1243 = vadd.f32 %v1207, %v1227
        %v1244 = vadd.f32 %v1208, %v1228
        %v1245 = vadd.f32 %v1209, %v1229
        %v1246 = vadd.f32 %v1210, %v1230
        %v1247 = vadd.f32 %v1211, %v1231
        %v1248 = vadd.f32 %v1212, %v1232
        %v1249 = vadd.f32 %v1213, %v1233
        %v1250 = vadd.f32 %v1214, %v1234
        %v1251 = vadd.f32 %v1215, %v1235
        %v1252 = vadd.f32 %v1216, %v1236
        %v1253 = vadd.f32 %v1217, %v1237
        %v1254 = vadd.f32 %v1218, %v1238
        %v1255 = vadd.f32 %v1219, %v1239
        %v1256 = vlaneseq
        %v1257 = vshrl.u32 %v1256, 7
        %v1258 = vsub.s32 0, %v1257
        %v1259 = vrot.slane %v420, %v1258
        %v1260 = vmul.f32 %v380, %v1259
        %v1261 = vmul.f32 %v381, %v1259
        %v1262 = vmul.f32 %v382, %v1259
        %v1263 = vmul.f32 %v383, %v1259
        %v1264 = vmul.f32 %v384, %v1259
        %v1265 = vmul.f32 %v385, %v1259
        %v1266 = vmul.f32 %v386, %v1259
        %v1267 = vmul.f32 %v387, %v1259
        %v1268 = vmul.f32 %v388, %v1259
        %v1269 = vmul.f32 %v389, %v1259
        %v1270 = vmul.f32 %v390, %v1259
        %v1271 = vmul.f32 %v391, %v1259
        %v1272 = vmul.f32 %v392, %v1259
        %v1273 = vmul.f32 %v393, %v1259
        %v1274 = vmul.f32 %v394, %v1259
        %v1275 = vmul.f32 %v395, %v1259
        %v1276 = vmul.f32 %v396, %v1259
        %v1277 = vmul.f32 %v397, %v1259
        %v1278 = vmul.f32 %v398, %v1259
        %v1279 = vmul.f32 %v399, %v1259
        %v1280 = vmul.f32 %v400, %v1259
        %v1281 = vmul.f32 %v401, %v1259
        %v1282 = vmul.f32 %v402, %v1259
        %v1283 = vmul.f32 %v403, %v1259
        %v1308 = vrot.slane %v1260, 1
        %v1309 = vrot.slane %v1261, 1
        %v1310 = vsel %vm522, %v1308, %v1309
        %v1311 = vrot.slane %v1262, 1
        %v1312 = vsel %vm522, %v1309, %v1311
        %v1313 = vrot.slane %v1263, 1
        %v1314 = vrot.slane %v1264, 1
        %v1315 = vsel %vm522, %v1313, %v1314
        %v1316 = vrot.slane %v1265, 1
        %v1317 = vsel %vm522, %v1314, %v1316
        %v1318 = vrot.slane %v1266, 1
        %v1319 = vrot.slane %v1267, 1
        %v1320 = vsel %vm522, %v1318, %v1319
        %v1321 = vrot.slane %v1268, 1
        %v1322 = vsel %vm522, %v1319, %v1321
        %v1323 = vrot.slane %v1269, 1
        %v1324 = vrot.slane %v1270, 1
        %v1325 = vsel %vm522, %v1323, %v1324
        %v1326 = vrot.slane %v1271, 1
        %v1327 = vsel %vm522, %v1324, %v1326
        %v1328 = vrot.slane %v1272, 1
        %v1329 = vrot.slane %v1273, 1
        %v1330 = vsel %vm522, %v1328, %v1329
        %v1331 = vrot.slane %v1274, 1
        %v1332 = vsel %vm522, %v1329, %v1331
        %v1333 = vrot.slane %v1275, 1
        %v1334 = vrot.slane %v1276, 1
        %v1335 = vsel %vm522, %v1333, %v1334
        %v1336 = vrot.slane %v1277, 1
        %v1337 = vsel %vm522, %v1334, %v1336
        %v1338 = vrot.slane %v1278, 1
        %v1339 = vrot.slane %v1279, 1
        %v1340 = vsel %vm522, %v1338, %v1339
        %v1341 = vrot.slane %v1280, 1
        %v1342 = vsel %vm522, %v1339, %v1341
        %v1343 = vrot.slane %v1281, 1
        %v1344 = vrot.slane %v1282, 1
        %v1345 = vsel %vm522, %v1343, %v1344
        %v1346 = vrot.slane %v1283, 1
        %v1347 = vsel %vm522, %v1344, %v1346
        %v1364 = vadd.f32 %v1240, %v1310
        %v1365 = vadd.f32 %v1241, %v1312
        %v1366 = vadd.f32 %v1242, %v1315
        %v1367 = vadd.f32 %v1243, %v1317
        %v1368 = vadd.f32 %v1244, %v1320
        %v1369 = vadd.f32 %v1245, %v1322
        %v1370 = vadd.f32 %v1246, %v1325
        %v1371 = vadd.f32 %v1247, %v1327
        %v1372 = vadd.f32 %v1248, %v1330
        %v1373 = vadd.f32 %v1249, %v1332
        %v1374 = vadd.f32 %v1250, %v1335
        %v1375 = vadd.f32 %v1251, %v1337
        %v1376 = vadd.f32 %v1252, %v1340
        %v1377 = vadd.f32 %v1253, %v1342
        %v1378 = vadd.f32 %v1254, %v1345
        %v1379 = vadd.f32 %v1255, %v1347
        %v1380 = vlaneseq
        %v1381 = vshrl.u32 %v1380, 7
        %v1382 = vsub.s32 1, %v1381
        %v1383 = vrot.slane %v420, %v1382
        %v1384 = vmul.f32 %v380, %v1383
        %v1385 = vmul.f32 %v381, %v1383
        %v1386 = vmul.f32 %v382, %v1383
        %v1387 = vmul.f32 %v383, %v1383
        %v1388 = vmul.f32 %v384, %v1383
        %v1389 = vmul.f32 %v385, %v1383
        %v1390 = vmul.f32 %v386, %v1383
        %v1391 = vmul.f32 %v387, %v1383
        %v1392 = vmul.f32 %v388, %v1383
        %v1393 = vmul.f32 %v389, %v1383
        %v1394 = vmul.f32 %v390, %v1383
        %v1395 = vmul.f32 %v391, %v1383
        %v1396 = vmul.f32 %v392, %v1383
        %v1397 = vmul.f32 %v393, %v1383
        %v1398 = vmul.f32 %v394, %v1383
        %v1399 = vmul.f32 %v395, %v1383
        %v1400 = vmul.f32 %v396, %v1383
        %v1401 = vmul.f32 %v397, %v1383
        %v1402 = vmul.f32 %v398, %v1383
        %v1403 = vmul.f32 %v399, %v1383
        %v1404 = vmul.f32 %v400, %v1383
        %v1405 = vmul.f32 %v401, %v1383
        %v1406 = vmul.f32 %v402, %v1383
        %v1407 = vmul.f32 %v403, %v1383
        %v1432 = vrot.slane %v1384, 2
        %v1433 = vrot.slane %v1385, 2
        %v1434 = vsel %vm647, %v1432, %v1433
        %v1435 = vrot.slane %v1386, 2
        %v1436 = vsel %vm647, %v1433, %v1435
        %v1437 = vrot.slane %v1387, 2
        %v1438 = vrot.slane %v1388, 2
        %v1439 = vsel %vm647, %v1437, %v1438
        %v1440 = vrot.slane %v1389, 2
        %v1441 = vsel %vm647, %v1438, %v1440
        %v1442 = vrot.slane %v1390, 2
        %v1443 = vrot.slane %v1391, 2
        %v1444 = vsel %vm647, %v1442, %v1443
        %v1445 = vrot.slane %v1392, 2
        %v1446 = vsel %vm647, %v1443, %v1445
        %v1447 = vrot.slane %v1393, 2
        %v1448 = vrot.slane %v1394, 2
        %v1449 = vsel %vm647, %v1447, %v1448
        %v1450 = vrot.slane %v1395, 2
        %v1451 = vsel %vm647, %v1448, %v1450
        %v1452 = vrot.slane %v1396, 2
        %v1453 = vrot.slane %v1397, 2
        %v1454 = vsel %vm647, %v1452, %v1453
        %v1455 = vrot.slane %v1398, 2
        %v1456 = vsel %vm647, %v1453, %v1455
        %v1457 = vrot.slane %v1399, 2
        %v1458 = vrot.slane %v1400, 2
        %v1459 = vsel %vm647, %v1457, %v1458
        %v1460 = vrot.slane %v1401, 2
        %v1461 = vsel %vm647, %v1458, %v1460
        %v1462 = vrot.slane %v1402, 2
        %v1463 = vrot.slane %v1403, 2
        %v1464 = vsel %vm647, %v1462, %v1463
        %v1465 = vrot.slane %v1404, 2
        %v1466 = vsel %vm647, %v1463, %v1465
        %v1467 = vrot.slane %v1405, 2
        %v1468 = vrot.slane %v1406, 2
        %v1469 = vsel %vm647, %v1467, %v1468
        %v1470 = vrot.slane %v1407, 2
        %v1471 = vsel %vm647, %v1468, %v1470
        %v1488 = vadd.f32 %v1364, %v1434
        %v1489 = vadd.f32 %v1365, %v1436
        %v1490 = vadd.f32 %v1366, %v1439
        %v1491 = vadd.f32 %v1367, %v1441
        %v1492 = vadd.f32 %v1368, %v1444
        %v1493 = vadd.f32 %v1369, %v1446
        %v1494 = vadd.f32 %v1370, %v1449
        %v1495 = vadd.f32 %v1371, %v1451
        %v1496 = vadd.f32 %v1372, %v1454
        %v1497 = vadd.f32 %v1373, %v1456
        %v1498 = vadd.f32 %v1374, %v1459
        %v1499 = vadd.f32 %v1375, %v1461
        %v1500 = vadd.f32 %v1376, %v1464
        %v1501 = vadd.f32 %v1377, %v1466
        %v1502 = vadd.f32 %v1378, %v1469
        %v1503 = vadd.f32 %v1379, %v1471
        %v1504 = vlaneseq
        %v1505 = vshrl.u32 %v1504, 7
        %v1506 = vsub.s32 2, %v1505
        %v1507 = vrot.slane %v420, %v1506
        %v1508 = vmul.f32 %v380, %v1507
        %v1509 = vmul.f32 %v381, %v1507
        %v1510 = vmul.f32 %v382, %v1507
        %v1511 = vmul.f32 %v383, %v1507
        %v1512 = vmul.f32 %v384, %v1507
        %v1513 = vmul.f32 %v385, %v1507
        %v1514 = vmul.f32 %v386, %v1507
        %v1515 = vmul.f32 %v387, %v1507
        %v1516 = vmul.f32 %v388, %v1507
        %v1517 = vmul.f32 %v389, %v1507
        %v1518 = vmul.f32 %v390, %v1507
        %v1519 = vmul.f32 %v391, %v1507
        %v1520 = vmul.f32 %v392, %v1507
        %v1521 = vmul.f32 %v393, %v1507
        %v1522 = vmul.f32 %v394, %v1507
        %v1523 = vmul.f32 %v395, %v1507
        %v1524 = vmul.f32 %v396, %v1507
        %v1525 = vmul.f32 %v397, %v1507
        %v1526 = vmul.f32 %v398, %v1507
        %v1527 = vmul.f32 %v399, %v1507
        %v1528 = vmul.f32 %v400, %v1507
        %v1529 = vmul.f32 %v401, %v1507
        %v1530 = vmul.f32 %v402, %v1507
        %v1531 = vmul.f32 %v403, %v1507
        %v1556 = vrot.slane %v1508, 3
        %v1557 = vrot.slane %v1509, 3
        %v1558 = vsel %vm772, %v1556, %v1557
        %v1559 = vrot.slane %v1510, 3
        %v1560 = vsel %vm772, %v1557, %v1559
        %v1561 = vrot.slane %v1511, 3
        %v1562 = vrot.slane %v1512, 3
        %v1563 = vsel %vm772, %v1561, %v1562
        %v1564 = vrot.slane %v1513, 3
        %v1565 = vsel %vm772, %v1562, %v1564
        %v1566 = vrot.slane %v1514, 3
        %v1567 = vrot.slane %v1515, 3
        %v1568 = vsel %vm772, %v1566, %v1567
        %v1569 = vrot.slane %v1516, 3
        %v1570 = vsel %vm772, %v1567, %v1569
        %v1571 = vrot.slane %v1517, 3
        %v1572 = vrot.slane %v1518, 3
        %v1573 = vsel %vm772, %v1571, %v1572
        %v1574 = vrot.slane %v1519, 3
        %v1575 = vsel %vm772, %v1572, %v1574
        %v1576 = vrot.slane %v1520, 3
        %v1577 = vrot.slane %v1521, 3
        %v1578 = vsel %vm772, %v1576, %v1577
        %v1579 = vrot.slane %v1522, 3
        %v1580 = vsel %vm772, %v1577, %v1579
        %v1581 = vrot.slane %v1523, 3
        %v1582 = vrot.slane %v1524, 3
        %v1583 = vsel %vm772, %v1581, %v1582
        %v1584 = vrot.slane %v1525, 3
        %v1585 = vsel %vm772, %v1582, %v1584
        %v1586 = vrot.slane %v1526, 3
        %v1587 = vrot.slane %v1527, 3
        %v1588 = vsel %vm772, %v1586, %v1587
        %v1589 = vrot.slane %v1528, 3
        %v1590 = vsel %vm772, %v1587, %v1589
        %v1591 = vrot.slane %v1529, 3
        %v1592 = vrot.slane %v1530, 3
        %v1593 = vsel %vm772, %v1591, %v1592
        %v1594 = vrot.slane %v1531, 3
        %v1595 = vsel %vm772, %v1592, %v1594
        %v1612 = vadd.f32 %v1488, %v1558
        %v1613 = vadd.f32 %v1489, %v1560
        %v1614 = vadd.f32 %v1490, %v1563
        %v1615 = vadd.f32 %v1491, %v1565
        %v1616 = vadd.f32 %v1492, %v1568
        %v1617 = vadd.f32 %v1493, %v1570
        %v1618 = vadd.f32 %v1494, %v1573
        %v1619 = vadd.f32 %v1495, %v1575
        %v1620 = vadd.f32 %v1496, %v1578
        %v1621 = vadd.f32 %v1497, %v1580
        %v1622 = vadd.f32 %v1498, %v1583
        %v1623 = vadd.f32 %v1499, %v1585
        %v1624 = vadd.f32 %v1500, %v1588
        %v1625 = vadd.f32 %v1501, %v1590
        %v1626 = vadd.f32 %v1502, %v1593
        %v1627 = vadd.f32 %v1503, %v1595
        %v1628 = vlaneseq
        %v1629 = vshrl.u32 %v1628, 7
        %v1630 = vsub.s32 3, %v1629
        %v1631 = vrot.slane %v420, %v1630
        %v1632 = vmul.f32 %v380, %v1631
        %v1633 = vmul.f32 %v381, %v1631
        %v1634 = vmul.f32 %v382, %v1631
        %v1635 = vmul.f32 %v383, %v1631
        %v1636 = vmul.f32 %v384, %v1631
        %v1637 = vmul.f32 %v385, %v1631
        %v1638 = vmul.f32 %v386, %v1631
        %v1639 = vmul.f32 %v387, %v1631
        %v1640 = vmul.f32 %v388, %v1631
        %v1641 = vmul.f32 %v389, %v1631
        %v1642 = vmul.f32 %v390, %v1631
        %v1643 = vmul.f32 %v391, %v1631
        %v1644 = vmul.f32 %v392, %v1631
        %v1645 = vmul.f32 %v393, %v1631
        %v1646 = vmul.f32 %v394, %v1631
        %v1647 = vmul.f32 %v395, %v1631
        %v1648 = vmul.f32 %v396, %v1631
        %v1649 = vmul.f32 %v397, %v1631
        %v1650 = vmul.f32 %v398, %v1631
        %v1651 = vmul.f32 %v399, %v1631
        %v1652 = vmul.f32 %v400, %v1631
        %v1653 = vmul.f32 %v401, %v1631
        %v1654 = vmul.f32 %v402, %v1631
        %v1655 = vmul.f32 %v403, %v1631
        %v1680 = vrot.slane %v1632, 4
        %v1681 = vrot.slane %v1633, 4
        %v1682 = vsel %vm897, %v1680, %v1681
        %v1683 = vrot.slane %v1634, 4
        %v1684 = vsel %vm897, %v1681, %v1683
        %v1685 = vrot.slane %v1635, 4
        %v1686 = vrot.slane %v1636, 4
        %v1687 = vsel %vm897, %v1685, %v1686
        %v1688 = vrot.slane %v1637, 4
        %v1689 = vsel %vm897, %v1686, %v1688
        %v1690 = vrot.slane %v1638, 4
        %v1691 = vrot.slane %v1639, 4
        %v1692 = vsel %vm897, %v1690, %v1691
        %v1693 = vrot.slane %v1640, 4
        %v1694 = vsel %vm897, %v1691, %v1693
        %v1695 = vrot.slane %v1641, 4
        %v1696 = vrot.slane %v1642, 4
        %v1697 = vsel %vm897, %v1695, %v1696
        %v1698 = vrot.slane %v1643, 4
        %v1699 = vsel %vm897, %v1696, %v1698
        %v1700 = vrot.slane %v1644, 4
        %v1701 = vrot.slane %v1645, 4
        %v1702 = vsel %vm897, %v1700, %v1701
        %v1703 = vrot.slane %v1646, 4
        %v1704 = vsel %vm897, %v1701, %v1703
        %v1705 = vrot.slane %v1647, 4
        %v1706 = vrot.slane %v1648, 4
        %v1707 = vsel %vm897, %v1705, %v1706
        %v1708 = vrot.slane %v1649, 4
        %v1709 = vsel %vm897, %v1706, %v1708
        %v1710 = vrot.slane %v1650, 4
        %v1711 = vrot.slane %v1651, 4
        %v1712 = vsel %vm897, %v1710, %v1711
        %v1713 = vrot.slane %v1652, 4
        %v1714 = vsel %vm897, %v1711, %v1713
        %v1715 = vrot.slane %v1653, 4
        %v1716 = vrot.slane %v1654, 4
        %v1717 = vsel %vm897, %v1715, %v1716
        %v1718 = vrot.slane %v1655, 4
        %v1719 = vsel %vm897, %v1716, %v1718
        %v1736 = vadd.f32 %v1612, %v1682
        %v1737 = vadd.f32 %v1613, %v1684
        %v1738 = vadd.f32 %v1614, %v1687
        %v1739 = vadd.f32 %v1615, %v1689
        %v1740 = vadd.f32 %v1616, %v1692
        %v1741 = vadd.f32 %v1617, %v1694
        %v1742 = vadd.f32 %v1618, %v1697
        %v1743 = vadd.f32 %v1619, %v1699
        %v1744 = vadd.f32 %v1620, %v1702
        %v1745 = vadd.f32 %v1621, %v1704
        %v1746 = vadd.f32 %v1622, %v1707
        %v1747 = vadd.f32 %v1623, %v1709
        %v1748 = vadd.f32 %v1624, %v1712
        %v1749 = vadd.f32 %v1625, %v1714
        %v1750 = vadd.f32 %v1626, %v1717
        %v1751 = vadd.f32 %v1627, %v1719
        %v1752 = vlaneseq
        %v1753 = vshrl.u32 %v1752, 7
        %v1754 = vsub.s32 4, %v1753
        %v1755 = vrot.slane %v420, %v1754
        %v1756 = vmul.f32 %v380, %v1755
        %v1757 = vmul.f32 %v381, %v1755
        %v1758 = vmul.f32 %v382, %v1755
        %v1759 = vmul.f32 %v383, %v1755
        %v1760 = vmul.f32 %v384, %v1755
        %v1761 = vmul.f32 %v385, %v1755
        %v1762 = vmul.f32 %v386, %v1755
        %v1763 = vmul.f32 %v387, %v1755
        %v1764 = vmul.f32 %v388, %v1755
        %v1765 = vmul.f32 %v389, %v1755
        %v1766 = vmul.f32 %v390, %v1755
        %v1767 = vmul.f32 %v391, %v1755
        %v1768 = vmul.f32 %v392, %v1755
        %v1769 = vmul.f32 %v393, %v1755
        %v1770 = vmul.f32 %v394, %v1755
        %v1771 = vmul.f32 %v395, %v1755
        %v1772 = vmul.f32 %v396, %v1755
        %v1773 = vmul.f32 %v397, %v1755
        %v1774 = vmul.f32 %v398, %v1755
        %v1775 = vmul.f32 %v399, %v1755
        %v1776 = vmul.f32 %v400, %v1755
        %v1777 = vmul.f32 %v401, %v1755
        %v1778 = vmul.f32 %v402, %v1755
        %v1779 = vmul.f32 %v403, %v1755
        %v1804 = vrot.slane %v1756, 5
        %v1805 = vrot.slane %v1757, 5
        %v1806 = vsel %vm1022, %v1804, %v1805
        %v1807 = vrot.slane %v1758, 5
        %v1808 = vsel %vm1022, %v1805, %v1807
        %v1809 = vrot.slane %v1759, 5
        %v1810 = vrot.slane %v1760, 5
        %v1811 = vsel %vm1022, %v1809, %v1810
        %v1812 = vrot.slane %v1761, 5
        %v1813 = vsel %vm1022, %v1810, %v1812
        %v1814 = vrot.slane %v1762, 5
        %v1815 = vrot.slane %v1763, 5
        %v1816 = vsel %vm1022, %v1814, %v1815
        %v1817 = vrot.slane %v1764, 5
        %v1818 = vsel %vm1022, %v1815, %v1817
        %v1819 = vrot.slane %v1765, 5
        %v1820 = vrot.slane %v1766, 5
        %v1821 = vsel %vm1022, %v1819, %v1820
        %v1822 = vrot.slane %v1767, 5
        %v1823 = vsel %vm1022, %v1820, %v1822
        %v1824 = vrot.slane %v1768, 5
        %v1825 = vrot.slane %v1769, 5
        %v1826 = vsel %vm1022, %v1824, %v1825
        %v1827 = vrot.slane %v1770, 5
        %v1828 = vsel %vm1022, %v1825, %v1827
        %v1829 = vrot.slane %v1771, 5
        %v1830 = vrot.slane %v1772, 5
        %v1831 = vsel %vm1022, %v1829, %v1830
        %v1832 = vrot.slane %v1773, 5
        %v1833 = vsel %vm1022, %v1830, %v1832
        %v1834 = vrot.slane %v1774, 5
        %v1835 = vrot.slane %v1775, 5
        %v1836 = vsel %vm1022, %v1834, %v1835
        %v1837 = vrot.slane %v1776, 5
        %v1838 = vsel %vm1022, %v1835, %v1837
        %v1839 = vrot.slane %v1777, 5
        %v1840 = vrot.slane %v1778, 5
        %v1841 = vsel %vm1022, %v1839, %v1840
        %v1842 = vrot.slane %v1779, 5
        %v1843 = vsel %vm1022, %v1840, %v1842
        %v1860 = vadd.f32 %v1736, %v1806
        %v1861 = vadd.f32 %v1737, %v1808
        %v1862 = vadd.f32 %v1738, %v1811
        %v1863 = vadd.f32 %v1739, %v1813
        %v1864 = vadd.f32 %v1740, %v1816
        %v1865 = vadd.f32 %v1741, %v1818
        %v1866 = vadd.f32 %v1742, %v1821
        %v1867 = vadd.f32 %v1743, %v1823
        %v1868 = vadd.f32 %v1744, %v1826
        %v1869 = vadd.f32 %v1745, %v1828
        %v1870 = vadd.f32 %v1746, %v1831
        %v1871 = vadd.f32 %v1747, %v1833
        %v1872 = vadd.f32 %v1748, %v1836
        %v1873 = vadd.f32 %v1749, %v1838
        %v1874 = vadd.f32 %v1750, %v1841
        %v1875 = vadd.f32 %v1751, %v1843
        %v1876 = vlaneseq
        %v1877 = vshrl.u32 %v1876, 7
        %v1878 = vsub.s32 5, %v1877
        %v1879 = vrot.slane %v420, %v1878
        %v1880 = vmul.f32 %v380, %v1879
        %v1881 = vmul.f32 %v381, %v1879
        %v1882 = vmul.f32 %v382, %v1879
        %v1883 = vmul.f32 %v383, %v1879
        %v1884 = vmul.f32 %v384, %v1879
        %v1885 = vmul.f32 %v385, %v1879
        %v1886 = vmul.f32 %v386, %v1879
        %v1887 = vmul.f32 %v387, %v1879
        %v1888 = vmul.f32 %v388, %v1879
        %v1889 = vmul.f32 %v389, %v1879
        %v1890 = vmul.f32 %v390, %v1879
        %v1891 = vmul.f32 %v391, %v1879
        %v1892 = vmul.f32 %v392, %v1879
        %v1893 = vmul.f32 %v393, %v1879
        %v1894 = vmul.f32 %v394, %v1879
        %v1895 = vmul.f32 %v395, %v1879
        %v1896 = vmul.f32 %v396, %v1879
        %v1897 = vmul.f32 %v397, %v1879
        %v1898 = vmul.f32 %v398, %v1879
        %v1899 = vmul.f32 %v399, %v1879
        %v1900 = vmul.f32 %v400, %v1879
        %v1901 = vmul.f32 %v401, %v1879
        %v1902 = vmul.f32 %v402, %v1879
        %v1903 = vmul.f32 %v403, %v1879
        %v1928 = vrot.slane %v1880, 6
        %v1929 = vrot.slane %v1881, 6
        %v1930 = vsel %vm1147, %v1928, %v1929
        %v1931 = vrot.slane %v1882, 6
        %v1932 = vsel %vm1147, %v1929, %v1931
        %v1933 = vrot.slane %v1883, 6
        %v1934 = vrot.slane %v1884, 6
        %v1935 = vsel %vm1147, %v1933, %v1934
        %v1936 = vrot.slane %v1885, 6
        %v1937 = vsel %vm1147, %v1934, %v1936
        %v1938 = vrot.slane %v1886, 6
        %v1939 = vrot.slane %v1887, 6
        %v1940 = vsel %vm1147, %v1938, %v1939
        %v1941 = vrot.slane %v1888, 6
        %v1942 = vsel %vm1147, %v1939, %v1941
        %v1943 = vrot.slane %v1889, 6
        %v1944 = vrot.slane %v1890, 6
        %v1945 = vsel %vm1147, %v1943, %v1944
        %v1946 = vrot.slane %v1891, 6
        %v1947 = vsel %vm1147, %v1944, %v1946
        %v1948 = vrot.slane %v1892, 6
        %v1949 = vrot.slane %v1893, 6
        %v1950 = vsel %vm1147, %v1948, %v1949
        %v1951 = vrot.slane %v1894, 6
        %v1952 = vsel %vm1147, %v1949, %v1951
        %v1953 = vrot.slane %v1895, 6
        %v1954 = vrot.slane %v1896, 6
        %v1955 = vsel %vm1147, %v1953, %v1954
        %v1956 = vrot.slane %v1897, 6
        %v1957 = vsel %vm1147, %v1954, %v1956
        %v1958 = vrot.slane %v1898, 6
        %v1959 = vrot.slane %v1899, 6
        %v1960 = vsel %vm1147, %v1958, %v1959
        %v1961 = vrot.slane %v1900, 6
        %v1962 = vsel %vm1147, %v1959, %v1961
        %v1963 = vrot.slane %v1901, 6
        %v1964 = vrot.slane %v1902, 6
        %v1965 = vsel %vm1147, %v1963, %v1964
        %v1966 = vrot.slane %v1903, 6
        %v1967 = vsel %vm1147, %v1964, %v1966
        %v1984 = vadd.f32 %v1860, %v1930
        %v1985 = vadd.f32 %v1861, %v1932
        %v1986 = vadd.f32 %v1862, %v1935
        %v1987 = vadd.f32 %v1863, %v1937
        %v1988 = vadd.f32 %v1864, %v1940
        %v1989 = vadd.f32 %v1865, %v1942
        %v1990 = vadd.f32 %v1866, %v1945
        %v1991 = vadd.f32 %v1867, %v1947
        %v1992 = vadd.f32 %v1868, %v1950
        %v1993 = vadd.f32 %v1869, %v1952
        %v1994 = vadd.f32 %v1870, %v1955
        %v1995 = vadd.f32 %v1871, %v1957
        %v1996 = vadd.f32 %v1872, %v1960
        %v1997 = vadd.f32 %v1873, %v1962
        %v1998 = vadd.f32 %v1874, %v1965
        %v1999 = vadd.f32 %v1875, %v1967
        %v2000 = vlaneseq
        %v2001 = vshrl.u32 %v2000, 7
        %v2002 = vsub.s32 6, %v2001
        %v2003 = vrot.slane %v420, %v2002
        %v2004 = vmul.f32 %v383, %v2003
        %v2005 = vmul.f32 %v384, %v2003
        %v2006 = vmul.f32 %v386, %v2003
        %v2007 = vmul.f32 %v387, %v2003
        %v2008 = vmul.f32 %v389, %v2003
        %v2009 = vmul.f32 %v390, %v2003
        %v2010 = vmul.f32 %v392, %v2003
        %v2011 = vmul.f32 %v393, %v2003
        %v2012 = vmul.f32 %v395, %v2003
        %v2013 = vmul.f32 %v396, %v2003
        %v2014 = vmul.f32 %v398, %v2003
        %v2015 = vmul.f32 %v399, %v2003
        %v2016 = vmul.f32 %v401, %v2003
        %v2017 = vmul.f32 %v402, %v2003
        %v2018 = vmul.f32 %v404, %v2003
        %v2019 = vmul.f32 %v405, %v2003
        %v2020 = vadd.f32 %v1984, %v2004
        %v2021 = vadd.f32 %v1985, %v2005
        %v2022 = vadd.f32 %v1986, %v2006
        %v2023 = vadd.f32 %v1987, %v2007
        %v2024 = vadd.f32 %v1988, %v2008
        %v2025 = vadd.f32 %v1989, %v2009
        %v2026 = vadd.f32 %v1990, %v2010
        %v2027 = vadd.f32 %v1991, %v2011
        %v2028 = vadd.f32 %v1992, %v2012
        %v2029 = vadd.f32 %v1993, %v2013
        %v2030 = vadd.f32 %v1994, %v2014
        %v2031 = vadd.f32 %v1995, %v2015
        %v2032 = vadd.f32 %v1996, %v2016
        %v2033 = vadd.f32 %v1997, %v2017
        %v2034 = vadd.f32 %v1998, %v2018
        %v2035 = vadd.f32 %v1999, %v2019
        %v2036 = vlaneseq
        %v2037 = vshrl.u32 %v2036, 7
        %v2038 = vsub.s32 7, %v2037
        %v2039 = vrot.slane %v420, %v2038
        %v2040 = vmul.f32 %v383, %v2039
        %v2041 = vmul.f32 %v384, %v2039
        %v2042 = vmul.f32 %v385, %v2039
        %v2043 = vmul.f32 %v386, %v2039
        %v2044 = vmul.f32 %v387, %v2039
        %v2045 = vmul.f32 %v388, %v2039
        %v2046 = vmul.f32 %v389, %v2039
        %v2047 = vmul.f32 %v390, %v2039
        %v2048 = vmul.f32 %v391, %v2039
        %v2049 = vmul.f32 %v392, %v2039
        %v2050 = vmul.f32 %v393, %v2039
        %v2051 = vmul.f32 %v394, %v2039
        %v2052 = vmul.f32 %v395, %v2039
        %v2053 = vmul.f32 %v396, %v2039
        %v2054 = vmul.f32 %v397, %v2039
        %v2055 = vmul.f32 %v398, %v2039
        %v2056 = vmul.f32 %v399, %v2039
        %v2057 = vmul.f32 %v400, %v2039
        %v2058 = vmul.f32 %v401, %v2039
        %v2059 = vmul.f32 %v402, %v2039
        %v2060 = vmul.f32 %v403, %v2039
        %v2061 = vmul.f32 %v404, %v2039
        %v2062 = vmul.f32 %v405, %v2039
        %v2063 = vmul.f32 %v406, %v2039
        %v2088 = vrot.slane %v2040, 1
        %v2089 = vrot.slane %v2041, 1
        %v2090 = vsel %vm522, %v2088, %v2089
        %v2091 = vrot.slane %v2042, 1
        %v2092 = vsel %vm522, %v2089, %v2091
        %v2093 = vrot.slane %v2043, 1
        %v2094 = vrot.slane %v2044, 1
        %v2095 = vsel %vm522, %v2093, %v2094
        %v2096 = vrot.slane %v2045, 1
        %v2097 = vsel %vm522, %v2094, %v2096
        %v2098 = vrot.slane %v2046, 1
        %v2099 = vrot.slane %v2047, 1
        %v2100 = vsel %vm522, %v2098, %v2099
        %v2101 = vrot.slane %v2048, 1
        %v2102 = vsel %vm522, %v2099, %v2101
        %v2103 = vrot.slane %v2049, 1
        %v2104 = vrot.slane %v2050, 1
        %v2105 = vsel %vm522, %v2103, %v2104
        %v2106 = vrot.slane %v2051, 1
        %v2107 = vsel %vm522, %v2104, %v2106
        %v2108 = vrot.slane %v2052, 1
        %v2109 = vrot.slane %v2053, 1
        %v2110 = vsel %vm522, %v2108, %v2109
        %v2111 = vrot.slane %v2054, 1
        %v2112 = vsel %vm522, %v2109, %v2111
        %v2113 = vrot.slane %v2055, 1
        %v2114 = vrot.slane %v2056, 1
        %v2115 = vsel %vm522, %v2113, %v2114
        %v2116 = vrot.slane %v2057, 1
        %v2117 = vsel %vm522, %v2114, %v2116
        %v2118 = vrot.slane %v2058, 1
        %v2119 = vrot.slane %v2059, 1
        %v2120 = vsel %vm522, %v2118, %v2119
        %v2121 = vrot.slane %v2060, 1
        %v2122 = vsel %vm522, %v2119, %v2121
        %v2123 = vrot.slane %v2061, 1
        %v2124 = vrot.slane %v2062, 1
        %v2125 = vsel %vm522, %v2123, %v2124
        %v2126 = vrot.slane %v2063, 1
        %v2127 = vsel %vm522, %v2124, %v2126
        %v2144 = vadd.f32 %v2020, %v2090
        %v2145 = vadd.f32 %v2021, %v2092
        %v2146 = vadd.f32 %v2022, %v2095
        %v2147 = vadd.f32 %v2023, %v2097
        %v2148 = vadd.f32 %v2024, %v2100
        %v2149 = vadd.f32 %v2025, %v2102
        %v2150 = vadd.f32 %v2026, %v2105
        %v2151 = vadd.f32 %v2027, %v2107
        %v2152 = vadd.f32 %v2028, %v2110
        %v2153 = vadd.f32 %v2029, %v2112
        %v2154 = vadd.f32 %v2030, %v2115
        %v2155 = vadd.f32 %v2031, %v2117
        %v2156 = vadd.f32 %v2032, %v2120
        %v2157 = vadd.f32 %v2033, %v2122
        %v2158 = vadd.f32 %v2034, %v2125
        %v2159 = vadd.f32 %v2035, %v2127
        %v2160 = vlaneseq
        %v2161 = vshrl.u32 %v2160, 7
        %v2162 = vsub.s32 0, %v2161
        %v2163 = vrot.slane %v421, %v2162
        %v2164 = vmul.f32 %v383, %v2163
        %v2165 = vmul.f32 %v384, %v2163
        %v2166 = vmul.f32 %v385, %v2163
        %v2167 = vmul.f32 %v386, %v2163
        %v2168 = vmul.f32 %v387, %v2163
        %v2169 = vmul.f32 %v388, %v2163
        %v2170 = vmul.f32 %v389, %v2163
        %v2171 = vmul.f32 %v390, %v2163
        %v2172 = vmul.f32 %v391, %v2163
        %v2173 = vmul.f32 %v392, %v2163
        %v2174 = vmul.f32 %v393, %v2163
        %v2175 = vmul.f32 %v394, %v2163
        %v2176 = vmul.f32 %v395, %v2163
        %v2177 = vmul.f32 %v396, %v2163
        %v2178 = vmul.f32 %v397, %v2163
        %v2179 = vmul.f32 %v398, %v2163
        %v2180 = vmul.f32 %v399, %v2163
        %v2181 = vmul.f32 %v400, %v2163
        %v2182 = vmul.f32 %v401, %v2163
        %v2183 = vmul.f32 %v402, %v2163
        %v2184 = vmul.f32 %v403, %v2163
        %v2185 = vmul.f32 %v404, %v2163
        %v2186 = vmul.f32 %v405, %v2163
        %v2187 = vmul.f32 %v406, %v2163
        %v2212 = vrot.slane %v2164, 2
        %v2213 = vrot.slane %v2165, 2
        %v2214 = vsel %vm647, %v2212, %v2213
        %v2215 = vrot.slane %v2166, 2
        %v2216 = vsel %vm647, %v2213, %v2215
        %v2217 = vrot.slane %v2167, 2
        %v2218 = vrot.slane %v2168, 2
        %v2219 = vsel %vm647, %v2217, %v2218
        %v2220 = vrot.slane %v2169, 2
        %v2221 = vsel %vm647, %v2218, %v2220
        %v2222 = vrot.slane %v2170, 2
        %v2223 = vrot.slane %v2171, 2
        %v2224 = vsel %vm647, %v2222, %v2223
        %v2225 = vrot.slane %v2172, 2
        %v2226 = vsel %vm647, %v2223, %v2225
        %v2227 = vrot.slane %v2173, 2
        %v2228 = vrot.slane %v2174, 2
        %v2229 = vsel %vm647, %v2227, %v2228
        %v2230 = vrot.slane %v2175, 2
        %v2231 = vsel %vm647, %v2228, %v2230
        %v2232 = vrot.slane %v2176, 2
        %v2233 = vrot.slane %v2177, 2
        %v2234 = vsel %vm647, %v2232, %v2233
        %v2235 = vrot.slane %v2178, 2
        %v2236 = vsel %vm647, %v2233, %v2235
        %v2237 = vrot.slane %v2179, 2
        %v2238 = vrot.slane %v2180, 2
        %v2239 = vsel %vm647, %v2237, %v2238
        %v2240 = vrot.slane %v2181, 2
        %v2241 = vsel %vm647, %v2238, %v2240
        %v2242 = vrot.slane %v2182, 2
        %v2243 = vrot.slane %v2183, 2
        %v2244 = vsel %vm647, %v2242, %v2243
        %v2245 = vrot.slane %v2184, 2
        %v2246 = vsel %vm647, %v2243, %v2245
        %v2247 = vrot.slane %v2185, 2
        %v2248 = vrot.slane %v2186, 2
        %v2249 = vsel %vm647, %v2247, %v2248
        %v2250 = vrot.slane %v2187, 2
        %v2251 = vsel %vm647, %v2248, %v2250
        %v2268 = vadd.f32 %v2144, %v2214
        %v2269 = vadd.f32 %v2145, %v2216
        %v2270 = vadd.f32 %v2146, %v2219
        %v2271 = vadd.f32 %v2147, %v2221
        %v2272 = vadd.f32 %v2148, %v2224
        %v2273 = vadd.f32 %v2149, %v2226
        %v2274 = vadd.f32 %v2150, %v2229
        %v2275 = vadd.f32 %v2151, %v2231
        %v2276 = vadd.f32 %v2152, %v2234
        %v2277 = vadd.f32 %v2153, %v2236
        %v2278 = vadd.f32 %v2154, %v2239
        %v2279 = vadd.f32 %v2155, %v2241
        %v2280 = vadd.f32 %v2156, %v2244
        %v2281 = vadd.f32 %v2157, %v2246
        %v2282 = vadd.f32 %v2158, %v2249
        %v2283 = vadd.f32 %v2159, %v2251
        %v2284 = vlaneseq
        %v2285 = vshrl.u32 %v2284, 7
        %v2286 = vsub.s32 1, %v2285
        %v2287 = vrot.slane %v421, %v2286
        %v2288 = vmul.f32 %v383, %v2287
        %v2289 = vmul.f32 %v384, %v2287
        %v2290 = vmul.f32 %v385, %v2287
        %v2291 = vmul.f32 %v386, %v2287
        %v2292 = vmul.f32 %v387, %v2287
        %v2293 = vmul.f32 %v388, %v2287
        %v2294 = vmul.f32 %v389, %v2287
        %v2295 = vmul.f32 %v390, %v2287
        %v2296 = vmul.f32 %v391, %v2287
        %v2297 = vmul.f32 %v392, %v2287
        %v2298 = vmul.f32 %v393, %v2287
        %v2299 = vmul.f32 %v394, %v2287
        %v2300 = vmul.f32 %v395, %v2287
        %v2301 = vmul.f32 %v396, %v2287
        %v2302 = vmul.f32 %v397, %v2287
        %v2303 = vmul.f32 %v398, %v2287
        %v2304 = vmul.f32 %v399, %v2287
        %v2305 = vmul.f32 %v400, %v2287
        %v2306 = vmul.f32 %v401, %v2287
        %v2307 = vmul.f32 %v402, %v2287
        %v2308 = vmul.f32 %v403, %v2287
        %v2309 = vmul.f32 %v404, %v2287
        %v2310 = vmul.f32 %v405, %v2287
        %v2311 = vmul.f32 %v406, %v2287
        %v2336 = vrot.slane %v2288, 3
        %v2337 = vrot.slane %v2289, 3
        %v2338 = vsel %vm772, %v2336, %v2337
        %v2339 = vrot.slane %v2290, 3
        %v2340 = vsel %vm772, %v2337, %v2339
        %v2341 = vrot.slane %v2291, 3
        %v2342 = vrot.slane %v2292, 3
        %v2343 = vsel %vm772, %v2341, %v2342
        %v2344 = vrot.slane %v2293, 3
        %v2345 = vsel %vm772, %v2342, %v2344
        %v2346 = vrot.slane %v2294, 3
        %v2347 = vrot.slane %v2295, 3
        %v2348 = vsel %vm772, %v2346, %v2347
        %v2349 = vrot.slane %v2296, 3
        %v2350 = vsel %vm772, %v2347, %v2349
        %v2351 = vrot.slane %v2297, 3
        %v2352 = vrot.slane %v2298, 3
        %v2353 = vsel %vm772, %v2351, %v2352
        %v2354 = vrot.slane %v2299, 3
        %v2355 = vsel %vm772, %v2352, %v2354
        %v2356 = vrot.slane %v2300, 3
        %v2357 = vrot.slane %v2301, 3
        %v2358 = vsel %vm772, %v2356, %v2357
        %v2359 = vrot.slane %v2302, 3
        %v2360 = vsel %vm772, %v2357, %v2359
        %v2361 = vrot.slane %v2303, 3
        %v2362 = vrot.slane %v2304, 3
        %v2363 = vsel %vm772, %v2361, %v2362
        %v2364 = vrot.slane %v2305, 3
        %v2365 = vsel %vm772, %v2362, %v2364
        %v2366 = vrot.slane %v2306, 3
        %v2367 = vrot.slane %v2307, 3
        %v2368 = vsel %vm772, %v2366, %v2367
        %v2369 = vrot.slane %v2308, 3
        %v2370 = vsel %vm772, %v2367, %v2369
        %v2371 = vrot.slane %v2309, 3
        %v2372 = vrot.slane %v2310, 3
        %v2373 = vsel %vm772, %v2371, %v2372
        %v2374 = vrot.slane %v2311, 3
        %v2375 = vsel %vm772, %v2372, %v2374
        %v2392 = vadd.f32 %v2268, %v2338
        %v2393 = vadd.f32 %v2269, %v2340
        %v2394 = vadd.f32 %v2270, %v2343
        %v2395 = vadd.f32 %v2271, %v2345
        %v2396 = vadd.f32 %v2272, %v2348
        %v2397 = vadd.f32 %v2273, %v2350
        %v2398 = vadd.f32 %v2274, %v2353
        %v2399 = vadd.f32 %v2275, %v2355
        %v2400 = vadd.f32 %v2276, %v2358
        %v2401 = vadd.f32 %v2277, %v2360
        %v2402 = vadd.f32 %v2278, %v2363
        %v2403 = vadd.f32 %v2279, %v2365
        %v2404 = vadd.f32 %v2280, %v2368
        %v2405 = vadd.f32 %v2281, %v2370
        %v2406 = vadd.f32 %v2282, %v2373
        %v2407 = vadd.f32 %v2283, %v2375
        %v2408 = vlaneseq
        %v2409 = vshrl.u32 %v2408, 7
        %v2410 = vsub.s32 2, %v2409
        %v2411 = vrot.slane %v421, %v2410
        %v2412 = vmul.f32 %v383, %v2411
        %v2413 = vmul.f32 %v384, %v2411
        %v2414 = vmul.f32 %v385, %v2411
        %v2415 = vmul.f32 %v386, %v2411
        %v2416 = vmul.f32 %v387, %v2411
        %v2417 = vmul.f32 %v388, %v2411
        %v2418 = vmul.f32 %v389, %v2411
        %v2419 = vmul.f32 %v390, %v2411
        %v2420 = vmul.f32 %v391, %v2411
        %v2421 = vmul.f32 %v392, %v2411
        %v2422 = vmul.f32 %v393, %v2411
        %v2423 = vmul.f32 %v394, %v2411
        %v2424 = vmul.f32 %v395, %v2411
        %v2425 = vmul.f32 %v396, %v2411
        %v2426 = vmul.f32 %v397, %v2411
        %v2427 = vmul.f32 %v398, %v2411
        %v2428 = vmul.f32 %v399, %v2411
        %v2429 = vmul.f32 %v400, %v2411
        %v2430 = vmul.f32 %v401, %v2411
        %v2431 = vmul.f32 %v402, %v2411
        %v2432 = vmul.f32 %v403, %v2411
        %v2433 = vmul.f32 %v404, %v2411
        %v2434 = vmul.f32 %v405, %v2411
        %v2435 = vmul.f32 %v406, %v2411
        %v2460 = vrot.slane %v2412, 4
        %v2461 = vrot.slane %v2413, 4
        %v2462 = vsel %vm897, %v2460, %v2461
        %v2463 = vrot.slane %v2414, 4
        %v2464 = vsel %vm897, %v2461, %v2463
        %v2465 = vrot.slane %v2415, 4
        %v2466 = vrot.slane %v2416, 4
        %v2467 = vsel %vm897, %v2465, %v2466
        %v2468 = vrot.slane %v2417, 4
        %v2469 = vsel %vm897, %v2466, %v2468
        %v2470 = vrot.slane %v2418, 4
        %v2471 = vrot.slane %v2419, 4
        %v2472 = vsel %vm897, %v2470, %v2471
        %v2473 = vrot.slane %v2420, 4
        %v2474 = vsel %vm897, %v2471, %v2473
        %v2475 = vrot.slane %v2421, 4
        %v2476 = vrot.slane %v2422, 4
        %v2477 = vsel %vm897, %v2475, %v2476
        %v2478 = vrot.slane %v2423, 4
        %v2479 = vsel %vm897, %v2476, %v2478
        %v2480 = vrot.slane %v2424, 4
        %v2481 = vrot.slane %v2425, 4
        %v2482 = vsel %vm897, %v2480, %v2481
        %v2483 = vrot.slane %v2426, 4
        %v2484 = vsel %vm897, %v2481, %v2483
        %v2485 = vrot.slane %v2427, 4
        %v2486 = vrot.slane %v2428, 4
        %v2487 = vsel %vm897, %v2485, %v2486
        %v2488 = vrot.slane %v2429, 4
        %v2489 = vsel %vm897, %v2486, %v2488
        %v2490 = vrot.slane %v2430, 4
        %v2491 = vrot.slane %v2431, 4
        %v2492 = vsel %vm897, %v2490, %v2491
        %v2493 = vrot.slane %v2432, 4
        %v2494 = vsel %vm897, %v2491, %v2493
        %v2495 = vrot.slane %v2433, 4
        %v2496 = vrot.slane %v2434, 4
        %v2497 = vsel %vm897, %v2495, %v2496
        %v2498 = vrot.slane %v2435, 4
        %v2499 = vsel %vm897, %v2496, %v2498
        %v2516 = vadd.f32 %v2392, %v2462
        %v2517 = vadd.f32 %v2393, %v2464
        %v2518 = vadd.f32 %v2394, %v2467
        %v2519 = vadd.f32 %v2395, %v2469
        %v2520 = vadd.f32 %v2396, %v2472
        %v2521 = vadd.f32 %v2397, %v2474
        %v2522 = vadd.f32 %v2398, %v2477
        %v2523 = vadd.f32 %v2399, %v2479
        %v2524 = vadd.f32 %v2400, %v2482
        %v2525 = vadd.f32 %v2401, %v2484
        %v2526 = vadd.f32 %v2402, %v2487
        %v2527 = vadd.f32 %v2403, %v2489
        %v2528 = vadd.f32 %v2404, %v2492
        %v2529 = vadd.f32 %v2405, %v2494
        %v2530 = vadd.f32 %v2406, %v2497
        %v2531 = vadd.f32 %v2407, %v2499
        %v2532 = vlaneseq
        %v2533 = vshrl.u32 %v2532, 7
        %v2534 = vsub.s32 3, %v2533
        %v2535 = vrot.slane %v421, %v2534
        %v2536 = vmul.f32 %v383, %v2535
        %v2537 = vmul.f32 %v384, %v2535
        %v2538 = vmul.f32 %v385, %v2535
        %v2539 = vmul.f32 %v386, %v2535
        %v2540 = vmul.f32 %v387, %v2535
        %v2541 = vmul.f32 %v388, %v2535
        %v2542 = vmul.f32 %v389, %v2535
        %v2543 = vmul.f32 %v390, %v2535
        %v2544 = vmul.f32 %v391, %v2535
        %v2545 = vmul.f32 %v392, %v2535
        %v2546 = vmul.f32 %v393, %v2535
        %v2547 = vmul.f32 %v394, %v2535
        %v2548 = vmul.f32 %v395, %v2535
        %v2549 = vmul.f32 %v396, %v2535
        %v2550 = vmul.f32 %v397, %v2535
        %v2551 = vmul.f32 %v398, %v2535
        %v2552 = vmul.f32 %v399, %v2535
        %v2553 = vmul.f32 %v400, %v2535
        %v2554 = vmul.f32 %v401, %v2535
        %v2555 = vmul.f32 %v402, %v2535
        %v2556 = vmul.f32 %v403, %v2535
        %v2557 = vmul.f32 %v404, %v2535
        %v2558 = vmul.f32 %v405, %v2535
        %v2559 = vmul.f32 %v406, %v2535
        %v2584 = vrot.slane %v2536, 5
        %v2585 = vrot.slane %v2537, 5
        %v2586 = vsel %vm1022, %v2584, %v2585
        %v2587 = vrot.slane %v2538, 5
        %v2588 = vsel %vm1022, %v2585, %v2587
        %v2589 = vrot.slane %v2539, 5
        %v2590 = vrot.slane %v2540, 5
        %v2591 = vsel %vm1022, %v2589, %v2590
        %v2592 = vrot.slane %v2541, 5
        %v2593 = vsel %vm1022, %v2590, %v2592
        %v2594 = vrot.slane %v2542, 5
        %v2595 = vrot.slane %v2543, 5
        %v2596 = vsel %vm1022, %v2594, %v2595
        %v2597 = vrot.slane %v2544, 5
        %v2598 = vsel %vm1022, %v2595, %v2597
        %v2599 = vrot.slane %v2545, 5
        %v2600 = vrot.slane %v2546, 5
        %v2601 = vsel %vm1022, %v2599, %v2600
        %v2602 = vrot.slane %v2547, 5
        %v2603 = vsel %vm1022, %v2600, %v2602
        %v2604 = vrot.slane %v2548, 5
        %v2605 = vrot.slane %v2549, 5
        %v2606 = vsel %vm1022, %v2604, %v2605
        %v2607 = vrot.slane %v2550, 5
        %v2608 = vsel %vm1022, %v2605, %v2607
        %v2609 = vrot.slane %v2551, 5
        %v2610 = vrot.slane %v2552, 5
        %v2611 = vsel %vm1022, %v2609, %v2610
        %v2612 = vrot.slane %v2553, 5
        %v2613 = vsel %vm1022, %v2610, %v2612
        %v2614 = vrot.slane %v2554, 5
        %v2615 = vrot.slane %v2555, 5
        %v2616 = vsel %vm1022, %v2614, %v2615
        %v2617 = vrot.slane %v2556, 5
        %v2618 = vsel %vm1022, %v2615, %v2617
        %v2619 = vrot.slane %v2557, 5
        %v2620 = vrot.slane %v2558, 5
        %v2621 = vsel %vm1022, %v2619, %v2620
        %v2622 = vrot.slane %v2559, 5
        %v2623 = vsel %vm1022, %v2620, %v2622
        %v2640 = vadd.f32 %v2516, %v2586
        %v2641 = vadd.f32 %v2517, %v2588
        %v2642 = vadd.f32 %v2518, %v2591
        %v2643 = vadd.f32 %v2519, %v2593
        %v2644 = vadd.f32 %v2520, %v2596
        %v2645 = vadd.f32 %v2521, %v2598
        %v2646 = vadd.f32 %v2522, %v2601
        %v2647 = vadd.f32 %v2523, %v2603
        %v2648 = vadd.f32 %v2524, %v2606
        %v2649 = vadd.f32 %v2525, %v2608
        %v2650 = vadd.f32 %v2526, %v2611
        %v2651 = vadd.f32 %v2527, %v2613
        %v2652 = vadd.f32 %v2528, %v2616
        %v2653 = vadd.f32 %v2529, %v2618
        %v2654 = vadd.f32 %v2530, %v2621
        %v2655 = vadd.f32 %v2531, %v2623
        %v2656 = vlaneseq
        %v2657 = vshrl.u32 %v2656, 7
        %v2658 = vsub.s32 4, %v2657
        %v2659 = vrot.slane %v421, %v2658
        %v2660 = vmul.f32 %v383, %v2659
        %v2661 = vmul.f32 %v384, %v2659
        %v2662 = vmul.f32 %v385, %v2659
        %v2663 = vmul.f32 %v386, %v2659
        %v2664 = vmul.f32 %v387, %v2659
        %v2665 = vmul.f32 %v388, %v2659
        %v2666 = vmul.f32 %v389, %v2659
        %v2667 = vmul.f32 %v390, %v2659
        %v2668 = vmul.f32 %v391, %v2659
        %v2669 = vmul.f32 %v392, %v2659
        %v2670 = vmul.f32 %v393, %v2659
        %v2671 = vmul.f32 %v394, %v2659
        %v2672 = vmul.f32 %v395, %v2659
        %v2673 = vmul.f32 %v396, %v2659
        %v2674 = vmul.f32 %v397, %v2659
        %v2675 = vmul.f32 %v398, %v2659
        %v2676 = vmul.f32 %v399, %v2659
        %v2677 = vmul.f32 %v400, %v2659
        %v2678 = vmul.f32 %v401, %v2659
        %v2679 = vmul.f32 %v402, %v2659
        %v2680 = vmul.f32 %v403, %v2659
        %v2681 = vmul.f32 %v404, %v2659
        %v2682 = vmul.f32 %v405, %v2659
        %v2683 = vmul.f32 %v406, %v2659
        %v2708 = vrot.slane %v2660, 6
        %v2709 = vrot.slane %v2661, 6
        %v2710 = vsel %vm1147, %v2708, %v2709
        %v2711 = vrot.slane %v2662, 6
        %v2712 = vsel %vm1147, %v2709, %v2711
        %v2713 = vrot.slane %v2663, 6
        %v2714 = vrot.slane %v2664, 6
        %v2715 = vsel %vm1147, %v2713, %v2714
        %v2716 = vrot.slane %v2665, 6
        %v2717 = vsel %vm1147, %v2714, %v2716
        %v2718 = vrot.slane %v2666, 6
        %v2719 = vrot.slane %v2667, 6
        %v2720 = vsel %vm1147, %v2718, %v2719
        %v2721 = vrot.slane %v2668, 6
        %v2722 = vsel %vm1147, %v2719, %v2721
        %v2723 = vrot.slane %v2669, 6
        %v2724 = vrot.slane %v2670, 6
        %v2725 = vsel %vm1147, %v2723, %v2724
        %v2726 = vrot.slane %v2671, 6
        %v2727 = vsel %vm1147, %v2724, %v2726
        %v2728 = vrot.slane %v2672, 6
        %v2729 = vrot.slane %v2673, 6
        %v2730 = vsel %vm1147, %v2728, %v2729
        %v2731 = vrot.slane %v2674, 6
        %v2732 = vsel %vm1147, %v2729, %v2731
        %v2733 = vrot.slane %v2675, 6
        %v2734 = vrot.slane %v2676, 6
        %v2735 = vsel %vm1147, %v2733, %v2734
        %v2736 = vrot.slane %v2677, 6
        %v2737 = vsel %vm1147, %v2734, %v2736
        %v2738 = vrot.slane %v2678, 6
        %v2739 = vrot.slane %v2679, 6
        %v2740 = vsel %vm1147, %v2738, %v2739
        %v2741 = vrot.slane %v2680, 6
        %v2742 = vsel %vm1147, %v2739, %v2741
        %v2743 = vrot.slane %v2681, 6
        %v2744 = vrot.slane %v2682, 6
        %v2745 = vsel %vm1147, %v2743, %v2744
        %v2746 = vrot.slane %v2683, 6
        %v2747 = vsel %vm1147, %v2744, %v2746
        %v2764 = vadd.f32 %v2640, %v2710
        %v2765 = vadd.f32 %v2641, %v2712
        %v2766 = vadd.f32 %v2642, %v2715
        %v2767 = vadd.f32 %v2643, %v2717
        %v2768 = vadd.f32 %v2644, %v2720
        %v2769 = vadd.f32 %v2645, %v2722
        %v2770 = vadd.f32 %v2646, %v2725
        %v2771 = vadd.f32 %v2647, %v2727
        %v2772 = vadd.f32 %v2648, %v2730
        %v2773 = vadd.f32 %v2649, %v2732
        %v2774 = vadd.f32 %v2650, %v2735
        %v2775 = vadd.f32 %v2651, %v2737
        %v2776 = vadd.f32 %v2652, %v2740
        %v2777 = vadd.f32 %v2653, %v2742
        %v2778 = vadd.f32 %v2654, %v2745
        %v2779 = vadd.f32 %v2655, %v2747
        %v2780 = vlaneseq
        %v2781 = vshrl.u32 %v2780, 7
        %v2782 = vsub.s32 5, %v2781
        %v2783 = vrot.slane %v421, %v2782
        %v2784 = vmul.f32 %v386, %v2783
        %v2785 = vmul.f32 %v387, %v2783
        %v2786 = vmul.f32 %v389, %v2783
        %v2787 = vmul.f32 %v390, %v2783
        %v2788 = vmul.f32 %v392, %v2783
        %v2789 = vmul.f32 %v393, %v2783
        %v2790 = vmul.f32 %v395, %v2783
        %v2791 = vmul.f32 %v396, %v2783
        %v2792 = vmul.f32 %v398, %v2783
        %v2793 = vmul.f32 %v399, %v2783
        %v2794 = vmul.f32 %v401, %v2783
        %v2795 = vmul.f32 %v402, %v2783
        %v2796 = vmul.f32 %v404, %v2783
        %v2797 = vmul.f32 %v405, %v2783
        %v2798 = vmul.f32 %v407, %v2783
        %v2799 = vmul.f32 %v408, %v2783
        %v2800 = vadd.f32 %v2764, %v2784
        %v2801 = vadd.f32 %v2765, %v2785
        %v2802 = vadd.f32 %v2766, %v2786
        %v2803 = vadd.f32 %v2767, %v2787
        %v2804 = vadd.f32 %v2768, %v2788
        %v2805 = vadd.f32 %v2769, %v2789
        %v2806 = vadd.f32 %v2770, %v2790
        %v2807 = vadd.f32 %v2771, %v2791
        %v2808 = vadd.f32 %v2772, %v2792
        %v2809 = vadd.f32 %v2773, %v2793
        %v2810 = vadd.f32 %v2774, %v2794
        %v2811 = vadd.f32 %v2775, %v2795
        %v2812 = vadd.f32 %v2776, %v2796
        %v2813 = vadd.f32 %v2777, %v2797
        %v2814 = vadd.f32 %v2778, %v2798
        %v2815 = vadd.f32 %v2779, %v2799
        %v2816 = vlaneseq
        %v2817 = vshrl.u32 %v2816, 7
        %v2818 = vsub.s32 6, %v2817
        %v2819 = vrot.slane %v421, %v2818
        %v2820 = vmul.f32 %v386, %v2819
        %v2821 = vmul.f32 %v387, %v2819
        %v2822 = vmul.f32 %v388, %v2819
        %v2823 = vmul.f32 %v389, %v2819
        %v2824 = vmul.f32 %v390, %v2819
        %v2825 = vmul.f32 %v391, %v2819
        %v2826 = vmul.f32 %v392, %v2819
        %v2827 = vmul.f32 %v393, %v2819
        %v2828 = vmul.f32 %v394, %v2819
        %v2829 = vmul.f32 %v395, %v2819
        %v2830 = vmul.f32 %v396, %v2819
        %v2831 = vmul.f32 %v397, %v2819
        %v2832 = vmul.f32 %v398, %v2819
        %v2833 = vmul.f32 %v399, %v2819
        %v2834 = vmul.f32 %v400, %v2819
        %v2835 = vmul.f32 %v401, %v2819
        %v2836 = vmul.f32 %v402, %v2819
        %v2837 = vmul.f32 %v403, %v2819
        %v2838 = vmul.f32 %v404, %v2819
        %v2839 = vmul.f32 %v405, %v2819
        %v2840 = vmul.f32 %v406, %v2819
        %v2841 = vmul.f32 %v407, %v2819
        %v2842 = vmul.f32 %v408, %v2819
        %v2843 = vmul.f32 %v409, %v2819
        %v2868 = vrot.slane %v2820, 1
        %v2869 = vrot.slane %v2821, 1
        %v2870 = vsel %vm522, %v2868, %v2869
        %v2871 = vrot.slane %v2822, 1
        %v2872 = vsel %vm522, %v2869, %v2871
        %v2873 = vrot.slane %v2823, 1
        %v2874 = vrot.slane %v2824, 1
        %v2875 = vsel %vm522, %v2873, %v2874
        %v2876 = vrot.slane %v2825, 1
        %v2877 = vsel %vm522, %v2874, %v2876
        %v2878 = vrot.slane %v2826, 1
        %v2879 = vrot.slane %v2827, 1
        %v2880 = vsel %vm522, %v2878, %v2879
        %v2881 = vrot.slane %v2828, 1
        %v2882 = vsel %vm522, %v2879, %v2881
        %v2883 = vrot.slane %v2829, 1
        %v2884 = vrot.slane %v2830, 1
        %v2885 = vsel %vm522, %v2883, %v2884
        %v2886 = vrot.slane %v2831, 1
        %v2887 = vsel %vm522, %v2884, %v2886
        %v2888 = vrot.slane %v2832, 1
        %v2889 = vrot.slane %v2833, 1
        %v2890 = vsel %vm522, %v2888, %v2889
        %v2891 = vrot.slane %v2834, 1
        %v2892 = vsel %vm522, %v2889, %v2891
        %v2893 = vrot.slane %v2835, 1
        %v2894 = vrot.slane %v2836, 1
        %v2895 = vsel %vm522, %v2893, %v2894
        %v2896 = vrot.slane %v2837, 1
        %v2897 = vsel %vm522, %v2894, %v2896
        %v2898 = vrot.slane %v2838, 1
        %v2899 = vrot.slane %v2839, 1
        %v2900 = vsel %vm522, %v2898, %v2899
        %v2901 = vrot.slane %v2840, 1
        %v2902 = vsel %vm522, %v2899, %v2901
        %v2903 = vrot.slane %v2841, 1
        %v2904 = vrot.slane %v2842, 1
        %v2905 = vsel %vm522, %v2903, %v2904
        %v2906 = vrot.slane %v2843, 1
        %v2907 = vsel %vm522, %v2904, %v2906
        %v2924 = vadd.f32 %v2800, %v2870
        %v2925 = vadd.f32 %v2801, %v2872
        %v2926 = vadd.f32 %v2802, %v2875
        %v2927 = vadd.f32 %v2803, %v2877
        %v2928 = vadd.f32 %v2804, %v2880
        %v2929 = vadd.f32 %v2805, %v2882
        %v2930 = vadd.f32 %v2806, %v2885
        %v2931 = vadd.f32 %v2807, %v2887
        %v2932 = vadd.f32 %v2808, %v2890
        %v2933 = vadd.f32 %v2809, %v2892
        %v2934 = vadd.f32 %v2810, %v2895
        %v2935 = vadd.f32 %v2811, %v2897
        %v2936 = vadd.f32 %v2812, %v2900
        %v2937 = vadd.f32 %v2813, %v2902
        %v2938 = vadd.f32 %v2814, %v2905
        %v2939 = vadd.f32 %v2815, %v2907
        %v2940 = vlaneseq
        %v2941 = vshrl.u32 %v2940, 7
        %v2942 = vsub.s32 7, %v2941
        %v2943 = vrot.slane %v421, %v2942
        %v2944 = vmul.f32 %v386, %v2943
        %v2945 = vmul.f32 %v387, %v2943
        %v2946 = vmul.f32 %v388, %v2943
        %v2947 = vmul.f32 %v389, %v2943
        %v2948 = vmul.f32 %v390, %v2943
        %v2949 = vmul.f32 %v391, %v2943
        %v2950 = vmul.f32 %v392, %v2943
        %v2951 = vmul.f32 %v393, %v2943
        %v2952 = vmul.f32 %v394, %v2943
        %v2953 = vmul.f32 %v395, %v2943
        %v2954 = vmul.f32 %v396, %v2943
        %v2955 = vmul.f32 %v397, %v2943
        %v2956 = vmul.f32 %v398, %v2943
        %v2957 = vmul.f32 %v399, %v2943
        %v2958 = vmul.f32 %v400, %v2943
        %v2959 = vmul.f32 %v401, %v2943
        %v2960 = vmul.f32 %v402, %v2943
        %v2961 = vmul.f32 %v403, %v2943
        %v2962 = vmul.f32 %v404, %v2943
        %v2963 = vmul.f32 %v405, %v2943
        %v2964 = vmul.f32 %v406, %v2943
        %v2965 = vmul.f32 %v407, %v2943
        %v2966 = vmul.f32 %v408, %v2943
        %v2967 = vmul.f32 %v409, %v2943
        %v2992 = vrot.slane %v2944, 2
        %v2993 = vrot.slane %v2945, 2
        %v2994 = vsel %vm647, %v2992, %v2993
        %v2995 = vrot.slane %v2946, 2
        %v2996 = vsel %vm647, %v2993, %v2995
        %v2997 = vrot.slane %v2947, 2
        %v2998 = vrot.slane %v2948, 2
        %v2999 = vsel %vm647, %v2997, %v2998
        %v3000 = vrot.slane %v2949, 2
        %v3001 = vsel %vm647, %v2998, %v3000
        %v3002 = vrot.slane %v2950, 2
        %v3003 = vrot.slane %v2951, 2
        %v3004 = vsel %vm647, %v3002, %v3003
        %v3005 = vrot.slane %v2952, 2
        %v3006 = vsel %vm647, %v3003, %v3005
        %v3007 = vrot.slane %v2953, 2
        %v3008 = vrot.slane %v2954, 2
        %v3009 = vsel %vm647, %v3007, %v3008
        %v3010 = vrot.slane %v2955, 2
        %v3011 = vsel %vm647, %v3008, %v3010
        %v3012 = vrot.slane %v2956, 2
        %v3013 = vrot.slane %v2957, 2
        %v3014 = vsel %vm647, %v3012, %v3013
        %v3015 = vrot.slane %v2958, 2
        %v3016 = vsel %vm647, %v3013, %v3015
        %v3017 = vrot.slane %v2959, 2
        %v3018 = vrot.slane %v2960, 2
        %v3019 = vsel %vm647, %v3017, %v3018
        %v3020 = vrot.slane %v2961, 2
        %v3021 = vsel %vm647, %v3018, %v3020
        %v3022 = vrot.slane %v2962, 2
        %v3023 = vrot.slane %v2963, 2
        %v3024 = vsel %vm647, %v3022, %v3023
        %v3025 = vrot.slane %v2964, 2
        %v3026 = vsel %vm647, %v3023, %v3025
        %v3027 = vrot.slane %v2965, 2
        %v3028 = vrot.slane %v2966, 2
        %v3029 = vsel %vm647, %v3027, %v3028
        %v3030 = vrot.slane %v2967, 2
        %v3031 = vsel %vm647, %v3028, %v3030
        %v3048 = vadd.f32 %v2924, %v2994
        %v3049 = vadd.f32 %v2925, %v2996
        %v3050 = vadd.f32 %v2926, %v2999
        %v3051 = vadd.f32 %v2927, %v3001
        %v3052 = vadd.f32 %v2928, %v3004
        %v3053 = vadd.f32 %v2929, %v3006
        %v3054 = vadd.f32 %v2930, %v3009
        %v3055 = vadd.f32 %v2931, %v3011
        %v3056 = vadd.f32 %v2932, %v3014
        %v3057 = vadd.f32 %v2933, %v3016
        %v3058 = vadd.f32 %v2934, %v3019
        %v3059 = vadd.f32 %v2935, %v3021
        %v3060 = vadd.f32 %v2936, %v3024
        %v3061 = vadd.f32 %v2937, %v3026
        %v3062 = vadd.f32 %v2938, %v3029
        %v3063 = vadd.f32 %v2939, %v3031
        %v3064 = vlaneseq
        %v3065 = vshrl.u32 %v3064, 7
        %v3066 = vsub.s32 0, %v3065
        %v3067 = vrot.slane %v422, %v3066
        %v3068 = vmul.f32 %v386, %v3067
        %v3069 = vmul.f32 %v387, %v3067
        %v3070 = vmul.f32 %v388, %v3067
        %v3071 = vmul.f32 %v389, %v3067
        %v3072 = vmul.f32 %v390, %v3067
        %v3073 = vmul.f32 %v391, %v3067
        %v3074 = vmul.f32 %v392, %v3067
        %v3075 = vmul.f32 %v393, %v3067
        %v3076 = vmul.f32 %v394, %v3067
        %v3077 = vmul.f32 %v395, %v3067
        %v3078 = vmul.f32 %v396, %v3067
        %v3079 = vmul.f32 %v397, %v3067
        %v3080 = vmul.f32 %v398, %v3067
        %v3081 = vmul.f32 %v399, %v3067
        %v3082 = vmul.f32 %v400, %v3067
        %v3083 = vmul.f32 %v401, %v3067
        %v3084 = vmul.f32 %v402, %v3067
        %v3085 = vmul.f32 %v403, %v3067
        %v3086 = vmul.f32 %v404, %v3067
        %v3087 = vmul.f32 %v405, %v3067
        %v3088 = vmul.f32 %v406, %v3067
        %v3089 = vmul.f32 %v407, %v3067
        %v3090 = vmul.f32 %v408, %v3067
        %v3091 = vmul.f32 %v409, %v3067
        %v3116 = vrot.slane %v3068, 3
        %v3117 = vrot.slane %v3069, 3
        %v3118 = vsel %vm772, %v3116, %v3117
        %v3119 = vrot.slane %v3070, 3
        %v3120 = vsel %vm772, %v3117, %v3119
        %v3121 = vrot.slane %v3071, 3
        %v3122 = vrot.slane %v3072, 3
        %v3123 = vsel %vm772, %v3121, %v3122
        %v3124 = vrot.slane %v3073, 3
        %v3125 = vsel %vm772, %v3122, %v3124
        %v3126 = vrot.slane %v3074, 3
        %v3127 = vrot.slane %v3075, 3
        %v3128 = vsel %vm772, %v3126, %v3127
        %v3129 = vrot.slane %v3076, 3
        %v3130 = vsel %vm772, %v3127, %v3129
        %v3131 = vrot.slane %v3077, 3
        %v3132 = vrot.slane %v3078, 3
        %v3133 = vsel %vm772, %v3131, %v3132
        %v3134 = vrot.slane %v3079, 3
        %v3135 = vsel %vm772, %v3132, %v3134
        %v3136 = vrot.slane %v3080, 3
        %v3137 = vrot.slane %v3081, 3
        %v3138 = vsel %vm772, %v3136, %v3137
        %v3139 = vrot.slane %v3082, 3
        %v3140 = vsel %vm772, %v3137, %v3139
        %v3141 = vrot.slane %v3083, 3
        %v3142 = vrot.slane %v3084, 3
        %v3143 = vsel %vm772, %v3141, %v3142
        %v3144 = vrot.slane %v3085, 3
        %v3145 = vsel %vm772, %v3142, %v3144
        %v3146 = vrot.slane %v3086, 3
        %v3147 = vrot.slane %v3087, 3
        %v3148 = vsel %vm772, %v3146, %v3147
        %v3149 = vrot.slane %v3088, 3
        %v3150 = vsel %vm772, %v3147, %v3149
        %v3151 = vrot.slane %v3089, 3
        %v3152 = vrot.slane %v3090, 3
        %v3153 = vsel %vm772, %v3151, %v3152
        %v3154 = vrot.slane %v3091, 3
        %v3155 = vsel %vm772, %v3152, %v3154
        %v3172 = vadd.f32 %v3048, %v3118
        %v3173 = vadd.f32 %v3049, %v3120
        %v3174 = vadd.f32 %v3050, %v3123
        %v3175 = vadd.f32 %v3051, %v3125
        %v3176 = vadd.f32 %v3052, %v3128
        %v3177 = vadd.f32 %v3053, %v3130
        %v3178 = vadd.f32 %v3054, %v3133
        %v3179 = vadd.f32 %v3055, %v3135
        %v3180 = vadd.f32 %v3056, %v3138
        %v3181 = vadd.f32 %v3057, %v3140
        %v3182 = vadd.f32 %v3058, %v3143
        %v3183 = vadd.f32 %v3059, %v3145
        %v3184 = vadd.f32 %v3060, %v3148
        %v3185 = vadd.f32 %v3061, %v3150
        %v3186 = vadd.f32 %v3062, %v3153
        %v3187 = vadd.f32 %v3063, %v3155
        %v3188 = vlaneseq
        %v3189 = vshrl.u32 %v3188, 7
        %v3190 = vsub.s32 1, %v3189
        %v3191 = vrot.slane %v422, %v3190
        %v3192 = vmul.f32 %v386, %v3191
        %v3193 = vmul.f32 %v387, %v3191
        %v3194 = vmul.f32 %v388, %v3191
        %v3195 = vmul.f32 %v389, %v3191
        %v3196 = vmul.f32 %v390, %v3191
        %v3197 = vmul.f32 %v391, %v3191
        %v3198 = vmul.f32 %v392, %v3191
        %v3199 = vmul.f32 %v393, %v3191
        %v3200 = vmul.f32 %v394, %v3191
        %v3201 = vmul.f32 %v395, %v3191
        %v3202 = vmul.f32 %v396, %v3191
        %v3203 = vmul.f32 %v397, %v3191
        %v3204 = vmul.f32 %v398, %v3191
        %v3205 = vmul.f32 %v399, %v3191
        %v3206 = vmul.f32 %v400, %v3191
        %v3207 = vmul.f32 %v401, %v3191
        %v3208 = vmul.f32 %v402, %v3191
        %v3209 = vmul.f32 %v403, %v3191
        %v3210 = vmul.f32 %v404, %v3191
        %v3211 = vmul.f32 %v405, %v3191
        %v3212 = vmul.f32 %v406, %v3191
        %v3213 = vmul.f32 %v407, %v3191
        %v3214 = vmul.f32 %v408, %v3191
        %v3215 = vmul.f32 %v409, %v3191
        %v3240 = vrot.slane %v3192, 4
        %v3241 = vrot.slane %v3193, 4
        %v3242 = vsel %vm897, %v3240, %v3241
        %v3243 = vrot.slane %v3194, 4
        %v3244 = vsel %vm897, %v3241, %v3243
        %v3245 = vrot.slane %v3195, 4
        %v3246 = vrot.slane %v3196, 4
        %v3247 = vsel %vm897, %v3245, %v3246
        %v3248 = vrot.slane %v3197, 4
        %v3249 = vsel %vm897, %v3246, %v3248
        %v3250 = vrot.slane %v3198, 4
        %v3251 = vrot.slane %v3199, 4
        %v3252 = vsel %vm897, %v3250, %v3251
        %v3253 = vrot.slane %v3200, 4
        %v3254 = vsel %vm897, %v3251, %v3253
        %v3255 = vrot.slane %v3201, 4
        %v3256 = vrot.slane %v3202, 4
        %v3257 = vsel %vm897, %v3255, %v3256
        %v3258 = vrot.slane %v3203, 4
        %v3259 = vsel %vm897, %v3256, %v3258
        %v3260 = vrot.slane %v3204, 4
        %v3261 = vrot.slane %v3205, 4
        %v3262 = vsel %vm897, %v3260, %v3261
        %v3263 = vrot.slane %v3206, 4
        %v3264 = vsel %vm897, %v3261, %v3263
        %v3265 = vrot.slane %v3207, 4
        %v3266 = vrot.slane %v3208, 4
        %v3267 = vsel %vm897, %v3265, %v3266
        %v3268 = vrot.slane %v3209, 4
        %v3269 = vsel %vm897, %v3266, %v3268
        %v3270 = vrot.slane %v3210, 4
        %v3271 = vrot.slane %v3211, 4
        %v3272 = vsel %vm897, %v3270, %v3271
        %v3273 = vrot.slane %v3212, 4
        %v3274 = vsel %vm897, %v3271, %v3273
        %v3275 = vrot.slane %v3213, 4
        %v3276 = vrot.slane %v3214, 4
        %v3277 = vsel %vm897, %v3275, %v3276
        %v3278 = vrot.slane %v3215, 4
        %v3279 = vsel %vm897, %v3276, %v3278
        %v3296 = vadd.f32 %v3172, %v3242
        %v3297 = vadd.f32 %v3173, %v3244
        %v3298 = vadd.f32 %v3174, %v3247
        %v3299 = vadd.f32 %v3175, %v3249
        %v3300 = vadd.f32 %v3176, %v3252
        %v3301 = vadd.f32 %v3177, %v3254
        %v3302 = vadd.f32 %v3178, %v3257
        %v3303 = vadd.f32 %v3179, %v3259
        %v3304 = vadd.f32 %v3180, %v3262
        %v3305 = vadd.f32 %v3181, %v3264
        %v3306 = vadd.f32 %v3182, %v3267
        %v3307 = vadd.f32 %v3183, %v3269
        %v3308 = vadd.f32 %v3184, %v3272
        %v3309 = vadd.f32 %v3185, %v3274
        %v3310 = vadd.f32 %v3186, %v3277
        %v3311 = vadd.f32 %v3187, %v3279
        %v3312 = vlaneseq
        %v3313 = vshrl.u32 %v3312, 7
        %v3314 = vsub.s32 2, %v3313
        %v3315 = vrot.slane %v422, %v3314
        %v3316 = vmul.f32 %v386, %v3315
        %v3317 = vmul.f32 %v387, %v3315
        %v3318 = vmul.f32 %v388, %v3315
        %v3319 = vmul.f32 %v389, %v3315
        %v3320 = vmul.f32 %v390, %v3315
        %v3321 = vmul.f32 %v391, %v3315
        %v3322 = vmul.f32 %v392, %v3315
        %v3323 = vmul.f32 %v393, %v3315
        %v3324 = vmul.f32 %v394, %v3315
        %v3325 = vmul.f32 %v395, %v3315
        %v3326 = vmul.f32 %v396, %v3315
        %v3327 = vmul.f32 %v397, %v3315
        %v3328 = vmul.f32 %v398, %v3315
        %v3329 = vmul.f32 %v399, %v3315
        %v3330 = vmul.f32 %v400, %v3315
        %v3331 = vmul.f32 %v401, %v3315
        %v3332 = vmul.f32 %v402, %v3315
        %v3333 = vmul.f32 %v403, %v3315
        %v3334 = vmul.f32 %v404, %v3315
        %v3335 = vmul.f32 %v405, %v3315
        %v3336 = vmul.f32 %v406, %v3315
        %v3337 = vmul.f32 %v407, %v3315
        %v3338 = vmul.f32 %v408, %v3315
        %v3339 = vmul.f32 %v409, %v3315
        %v3364 = vrot.slane %v3316, 5
        %v3365 = vrot.slane %v3317, 5
        %v3366 = vsel %vm1022, %v3364, %v3365
        %v3367 = vrot.slane %v3318, 5
        %v3368 = vsel %vm1022, %v3365, %v3367
        %v3369 = vrot.slane %v3319, 5
        %v3370 = vrot.slane %v3320, 5
        %v3371 = vsel %vm1022, %v3369, %v3370
        %v3372 = vrot.slane %v3321, 5
        %v3373 = vsel %vm1022, %v3370, %v3372
        %v3374 = vrot.slane %v3322, 5
        %v3375 = vrot.slane %v3323, 5
        %v3376 = vsel %vm1022, %v3374, %v3375
        %v3377 = vrot.slane %v3324, 5
        %v3378 = vsel %vm1022, %v3375, %v3377
        %v3379 = vrot.slane %v3325, 5
        %v3380 = vrot.slane %v3326, 5
        %v3381 = vsel %vm1022, %v3379, %v3380
        %v3382 = vrot.slane %v3327, 5
        %v3383 = vsel %vm1022, %v3380, %v3382
        %v3384 = vrot.slane %v3328, 5
        %v3385 = vrot.slane %v3329, 5
        %v3386 = vsel %vm1022, %v3384, %v3385
        %v3387 = vrot.slane %v3330, 5
        %v3388 = vsel %vm1022, %v3385, %v3387
        %v3389 = vrot.slane %v3331, 5
        %v3390 = vrot.slane %v3332, 5
        %v3391 = vsel %vm1022, %v3389, %v3390
        %v3392 = vrot.slane %v3333, 5
        %v3393 = vsel %vm1022, %v3390, %v3392
        %v3394 = vrot.slane %v3334, 5
        %v3395 = vrot.slane %v3335, 5
        %v3396 = vsel %vm1022, %v3394, %v3395
        %v3397 = vrot.slane %v3336, 5
        %v3398 = vsel %vm1022, %v3395, %v3397
        %v3399 = vrot.slane %v3337, 5
        %v3400 = vrot.slane %v3338, 5
        %v3401 = vsel %vm1022, %v3399, %v3400
        %v3402 = vrot.slane %v3339, 5
        %v3403 = vsel %vm1022, %v3400, %v3402
        %v3420 = vadd.f32 %v3296, %v3366
        %v3421 = vadd.f32 %v3297, %v3368
        %v3422 = vadd.f32 %v3298, %v3371
        %v3423 = vadd.f32 %v3299, %v3373
        %v3424 = vadd.f32 %v3300, %v3376
        %v3425 = vadd.f32 %v3301, %v3378
        %v3426 = vadd.f32 %v3302, %v3381
        %v3427 = vadd.f32 %v3303, %v3383
        %v3428 = vadd.f32 %v3304, %v3386
        %v3429 = vadd.f32 %v3305, %v3388
        %v3430 = vadd.f32 %v3306, %v3391
        %v3431 = vadd.f32 %v3307, %v3393
        %v3432 = vadd.f32 %v3308, %v3396
        %v3433 = vadd.f32 %v3309, %v3398
        %v3434 = vadd.f32 %v3310, %v3401
        %v3435 = vadd.f32 %v3311, %v3403
        %v3436 = vlaneseq
        %v3437 = vshrl.u32 %v3436, 7
        %v3438 = vsub.s32 3, %v3437
        %v3439 = vrot.slane %v422, %v3438
        %v3440 = vmul.f32 %v386, %v3439
        %v3441 = vmul.f32 %v387, %v3439
        %v3442 = vmul.f32 %v388, %v3439
        %v3443 = vmul.f32 %v389, %v3439
        %v3444 = vmul.f32 %v390, %v3439
        %v3445 = vmul.f32 %v391, %v3439
        %v3446 = vmul.f32 %v392, %v3439
        %v3447 = vmul.f32 %v393, %v3439
        %v3448 = vmul.f32 %v394, %v3439
        %v3449 = vmul.f32 %v395, %v3439
        %v3450 = vmul.f32 %v396, %v3439
        %v3451 = vmul.f32 %v397, %v3439
        %v3452 = vmul.f32 %v398, %v3439
        %v3453 = vmul.f32 %v399, %v3439
        %v3454 = vmul.f32 %v400, %v3439
        %v3455 = vmul.f32 %v401, %v3439
        %v3456 = vmul.f32 %v402, %v3439
        %v3457 = vmul.f32 %v403, %v3439
        %v3458 = vmul.f32 %v404, %v3439
        %v3459 = vmul.f32 %v405, %v3439
        %v3460 = vmul.f32 %v406, %v3439
        %v3461 = vmul.f32 %v407, %v3439
        %v3462 = vmul.f32 %v408, %v3439
        %v3463 = vmul.f32 %v409, %v3439
        %v3488 = vrot.slane %v3440, 6
        %v3489 = vrot.slane %v3441, 6
        %v3490 = vsel %vm1147, %v3488, %v3489
        %v3491 = vrot.slane %v3442, 6
        %v3492 = vsel %vm1147, %v3489, %v3491
        %v3493 = vrot.slane %v3443, 6
        %v3494 = vrot.slane %v3444, 6
        %v3495 = vsel %vm1147, %v3493, %v3494
        %v3496 = vrot.slane %v3445, 6
        %v3497 = vsel %vm1147, %v3494, %v3496
        %v3498 = vrot.slane %v3446, 6
        %v3499 = vrot.slane %v3447, 6
        %v3500 = vsel %vm1147, %v3498, %v3499
        %v3501 = vrot.slane %v3448, 6
        %v3502 = vsel %vm1147, %v3499, %v3501
        %v3503 = vrot.slane %v3449, 6
        %v3504 = vrot.slane %v3450, 6
        %v3505 = vsel %vm1147, %v3503, %v3504
        %v3506 = vrot.slane %v3451, 6
        %v3507 = vsel %vm1147, %v3504, %v3506
        %v3508 = vrot.slane %v3452, 6
        %v3509 = vrot.slane %v3453, 6
        %v3510 = vsel %vm1147, %v3508, %v3509
        %v3511 = vrot.slane %v3454, 6
        %v3512 = vsel %vm1147, %v3509, %v3511
        %v3513 = vrot.slane %v3455, 6
        %v3514 = vrot.slane %v3456, 6
        %v3515 = vsel %vm1147, %v3513, %v3514
        %v3516 = vrot.slane %v3457, 6
        %v3517 = vsel %vm1147, %v3514, %v3516
        %v3518 = vrot.slane %v3458, 6
        %v3519 = vrot.slane %v3459, 6
        %v3520 = vsel %vm1147, %v3518, %v3519
        %v3521 = vrot.slane %v3460, 6
        %v3522 = vsel %vm1147, %v3519, %v3521
        %v3523 = vrot.slane %v3461, 6
        %v3524 = vrot.slane %v3462, 6
        %v3525 = vsel %vm1147, %v3523, %v3524
        %v3526 = vrot.slane %v3463, 6
        %v3527 = vsel %vm1147, %v3524, %v3526
        %v3544 = vadd.f32 %v3420, %v3490
        %v3545 = vadd.f32 %v3421, %v3492
        %v3546 = vadd.f32 %v3422, %v3495
        %v3547 = vadd.f32 %v3423, %v3497
        %v3548 = vadd.f32 %v3424, %v3500
        %v3549 = vadd.f32 %v3425, %v3502
        %v3550 = vadd.f32 %v3426, %v3505
        %v3551 = vadd.f32 %v3427, %v3507
        %v3552 = vadd.f32 %v3428, %v3510
        %v3553 = vadd.f32 %v3429, %v3512
        %v3554 = vadd.f32 %v3430, %v3515
        %v3555 = vadd.f32 %v3431, %v3517
        %v3556 = vadd.f32 %v3432, %v3520
        %v3557 = vadd.f32 %v3433, %v3522
        %v3558 = vadd.f32 %v3434, %v3525
        %v3559 = vadd.f32 %v3435, %v3527
        %v3560 = vlaneseq
        %v3561 = vshrl.u32 %v3560, 7
        %v3562 = vsub.s32 4, %v3561
        %v3563 = vrot.slane %v422, %v3562
        %v3564 = vmul.f32 %v389, %v3563
        %v3565 = vmul.f32 %v390, %v3563
        %v3566 = vmul.f32 %v392, %v3563
        %v3567 = vmul.f32 %v393, %v3563
        %v3568 = vmul.f32 %v395, %v3563
        %v3569 = vmul.f32 %v396, %v3563
        %v3570 = vmul.f32 %v398, %v3563
        %v3571 = vmul.f32 %v399, %v3563
        %v3572 = vmul.f32 %v401, %v3563
        %v3573 = vmul.f32 %v402, %v3563
        %v3574 = vmul.f32 %v404, %v3563
        %v3575 = vmul.f32 %v405, %v3563
        %v3576 = vmul.f32 %v407, %v3563
        %v3577 = vmul.f32 %v408, %v3563
        %v3578 = vmul.f32 %v410, %v3563
        %v3579 = vmul.f32 %v411, %v3563
        %v3580 = vadd.f32 %v3544, %v3564
        %v3581 = vadd.f32 %v3545, %v3565
        %v3582 = vadd.f32 %v3546, %v3566
        %v3583 = vadd.f32 %v3547, %v3567
        %v3584 = vadd.f32 %v3548, %v3568
        %v3585 = vadd.f32 %v3549, %v3569
        %v3586 = vadd.f32 %v3550, %v3570
        %v3587 = vadd.f32 %v3551, %v3571
        %v3588 = vadd.f32 %v3552, %v3572
        %v3589 = vadd.f32 %v3553, %v3573
        %v3590 = vadd.f32 %v3554, %v3574
        %v3591 = vadd.f32 %v3555, %v3575
        %v3592 = vadd.f32 %v3556, %v3576
        %v3593 = vadd.f32 %v3557, %v3577
        %v3594 = vadd.f32 %v3558, %v3578
        %v3595 = vadd.f32 %v3559, %v3579
        %v3596 = vlaneseq
        %v3597 = vshrl.u32 %v3596, 7
        %v3598 = vsub.s32 5, %v3597
        %v3599 = vrot.slane %v422, %v3598
        %v3600 = vmul.f32 %v389, %v3599
        %v3601 = vmul.f32 %v390, %v3599
        %v3602 = vmul.f32 %v391, %v3599
        %v3603 = vmul.f32 %v392, %v3599
        %v3604 = vmul.f32 %v393, %v3599
        %v3605 = vmul.f32 %v394, %v3599
        %v3606 = vmul.f32 %v395, %v3599
        %v3607 = vmul.f32 %v396, %v3599
        %v3608 = vmul.f32 %v397, %v3599
        %v3609 = vmul.f32 %v398, %v3599
        %v3610 = vmul.f32 %v399, %v3599
        %v3611 = vmul.f32 %v400, %v3599
        %v3612 = vmul.f32 %v401, %v3599
        %v3613 = vmul.f32 %v402, %v3599
        %v3614 = vmul.f32 %v403, %v3599
        %v3615 = vmul.f32 %v404, %v3599
        %v3616 = vmul.f32 %v405, %v3599
        %v3617 = vmul.f32 %v406, %v3599
        %v3618 = vmul.f32 %v407, %v3599
        %v3619 = vmul.f32 %v408, %v3599
        %v3620 = vmul.f32 %v409, %v3599
        %v3621 = vmul.f32 %v410, %v3599
        %v3622 = vmul.f32 %v411, %v3599
        %v3623 = vmul.f32 %v412, %v3599
        %v3648 = vrot.slane %v3600, 1
        %v3649 = vrot.slane %v3601, 1
        %v3650 = vsel %vm522, %v3648, %v3649
        %v3651 = vrot.slane %v3602, 1
        %v3652 = vsel %vm522, %v3649, %v3651
        %v3653 = vrot.slane %v3603, 1
        %v3654 = vrot.slane %v3604, 1
        %v3655 = vsel %vm522, %v3653, %v3654
        %v3656 = vrot.slane %v3605, 1
        %v3657 = vsel %vm522, %v3654, %v3656
        %v3658 = vrot.slane %v3606, 1
        %v3659 = vrot.slane %v3607, 1
        %v3660 = vsel %vm522, %v3658, %v3659
        %v3661 = vrot.slane %v3608, 1
        %v3662 = vsel %vm522, %v3659, %v3661
        %v3663 = vrot.slane %v3609, 1
        %v3664 = vrot.slane %v3610, 1
        %v3665 = vsel %vm522, %v3663, %v3664
        %v3666 = vrot.slane %v3611, 1
        %v3667 = vsel %vm522, %v3664, %v3666
        %v3668 = vrot.slane %v3612, 1
        %v3669 = vrot.slane %v3613, 1
        %v3670 = vsel %vm522, %v3668, %v3669
        %v3671 = vrot.slane %v3614, 1
        %v3672 = vsel %vm522, %v3669, %v3671
        %v3673 = vrot.slane %v3615, 1
        %v3674 = vrot.slane %v3616, 1
        %v3675 = vsel %vm522, %v3673, %v3674
        %v3676 = vrot.slane %v3617, 1
        %v3677 = vsel %vm522, %v3674, %v3676
        %v3678 = vrot.slane %v3618, 1
        %v3679 = vrot.slane %v3619, 1
        %v3680 = vsel %vm522, %v3678, %v3679
        %v3681 = vrot.slane %v3620, 1
        %v3682 = vsel %vm522, %v3679, %v3681
        %v3683 = vrot.slane %v3621, 1
        %v3684 = vrot.slane %v3622, 1
        %v3685 = vsel %vm522, %v3683, %v3684
        %v3686 = vrot.slane %v3623, 1
        %v3687 = vsel %vm522, %v3684, %v3686
        %v3704 = vadd.f32 %v3580, %v3650
        %v3705 = vadd.f32 %v3581, %v3652
        %v3706 = vadd.f32 %v3582, %v3655
        %v3707 = vadd.f32 %v3583, %v3657
        %v3708 = vadd.f32 %v3584, %v3660
        %v3709 = vadd.f32 %v3585, %v3662
        %v3710 = vadd.f32 %v3586, %v3665
        %v3711 = vadd.f32 %v3587, %v3667
        %v3712 = vadd.f32 %v3588, %v3670
        %v3713 = vadd.f32 %v3589, %v3672
        %v3714 = vadd.f32 %v3590, %v3675
        %v3715 = vadd.f32 %v3591, %v3677
        %v3716 = vadd.f32 %v3592, %v3680
        %v3717 = vadd.f32 %v3593, %v3682
        %v3718 = vadd.f32 %v3594, %v3685
        %v3719 = vadd.f32 %v3595, %v3687
        %v3720 = vlaneseq
        %v3721 = vshrl.u32 %v3720, 7
        %v3722 = vsub.s32 6, %v3721
        %v3723 = vrot.slane %v422, %v3722
        %v3724 = vmul.f32 %v389, %v3723
        %v3725 = vmul.f32 %v390, %v3723
        %v3726 = vmul.f32 %v391, %v3723
        %v3727 = vmul.f32 %v392, %v3723
        %v3728 = vmul.f32 %v393, %v3723
        %v3729 = vmul.f32 %v394, %v3723
        %v3730 = vmul.f32 %v395, %v3723
        %v3731 = vmul.f32 %v396, %v3723
        %v3732 = vmul.f32 %v397, %v3723
        %v3733 = vmul.f32 %v398, %v3723
        %v3734 = vmul.f32 %v399, %v3723
        %v3735 = vmul.f32 %v400, %v3723
        %v3736 = vmul.f32 %v401, %v3723
        %v3737 = vmul.f32 %v402, %v3723
        %v3738 = vmul.f32 %v403, %v3723
        %v3739 = vmul.f32 %v404, %v3723
        %v3740 = vmul.f32 %v405, %v3723
        %v3741 = vmul.f32 %v406, %v3723
        %v3742 = vmul.f32 %v407, %v3723
        %v3743 = vmul.f32 %v408, %v3723
        %v3744 = vmul.f32 %v409, %v3723
        %v3745 = vmul.f32 %v410, %v3723
        %v3746 = vmul.f32 %v411, %v3723
        %v3747 = vmul.f32 %v412, %v3723
        %v3772 = vrot.slane %v3724, 2
        %v3773 = vrot.slane %v3725, 2
        %v3774 = vsel %vm647, %v3772, %v3773
        %v3775 = vrot.slane %v3726, 2
        %v3776 = vsel %vm647, %v3773, %v3775
        %v3777 = vrot.slane %v3727, 2
        %v3778 = vrot.slane %v3728, 2
        %v3779 = vsel %vm647, %v3777, %v3778
        %v3780 = vrot.slane %v3729, 2
        %v3781 = vsel %vm647, %v3778, %v3780
        %v3782 = vrot.slane %v3730, 2
        %v3783 = vrot.slane %v3731, 2
        %v3784 = vsel %vm647, %v3782, %v3783
        %v3785 = vrot.slane %v3732, 2
        %v3786 = vsel %vm647, %v3783, %v3785
        %v3787 = vrot.slane %v3733, 2
        %v3788 = vrot.slane %v3734, 2
        %v3789 = vsel %vm647, %v3787, %v3788
        %v3790 = vrot.slane %v3735, 2
        %v3791 = vsel %vm647, %v3788, %v3790
        %v3792 = vrot.slane %v3736, 2
        %v3793 = vrot.slane %v3737, 2
        %v3794 = vsel %vm647, %v3792, %v3793
        %v3795 = vrot.slane %v3738, 2
        %v3796 = vsel %vm647, %v3793, %v3795
        %v3797 = vrot.slane %v3739, 2
        %v3798 = vrot.slane %v3740, 2
        %v3799 = vsel %vm647, %v3797, %v3798
        %v3800 = vrot.slane %v3741, 2
        %v3801 = vsel %vm647, %v3798, %v3800
        %v3802 = vrot.slane %v3742, 2
        %v3803 = vrot.slane %v3743, 2
        %v3804 = vsel %vm647, %v3802, %v3803
        %v3805 = vrot.slane %v3744, 2
        %v3806 = vsel %vm647, %v3803, %v3805
        %v3807 = vrot.slane %v3745, 2
        %v3808 = vrot.slane %v3746, 2
        %v3809 = vsel %vm647, %v3807, %v3808
        %v3810 = vrot.slane %v3747, 2
        %v3811 = vsel %vm647, %v3808, %v3810
        %v3828 = vadd.f32 %v3704, %v3774
        %v3829 = vadd.f32 %v3705, %v3776
        %v3830 = vadd.f32 %v3706, %v3779
        %v3831 = vadd.f32 %v3707, %v3781
        %v3832 = vadd.f32 %v3708, %v3784
        %v3833 = vadd.f32 %v3709, %v3786
        %v3834 = vadd.f32 %v3710, %v3789
        %v3835 = vadd.f32 %v3711, %v3791
        %v3836 = vadd.f32 %v3712, %v3794
        %v3837 = vadd.f32 %v3713, %v3796
        %v3838 = vadd.f32 %v3714, %v3799
        %v3839 = vadd.f32 %v3715, %v3801
        %v3840 = vadd.f32 %v3716, %v3804
        %v3841 = vadd.f32 %v3717, %v3806
        %v3842 = vadd.f32 %v3718, %v3809
        %v3843 = vadd.f32 %v3719, %v3811
        %v3844 = vlaneseq
        %v3845 = vshrl.u32 %v3844, 7
        %v3846 = vsub.s32 7, %v3845
        %v3847 = vrot.slane %v422, %v3846
        %v3848 = vmul.f32 %v389, %v3847
        %v3849 = vmul.f32 %v390, %v3847
        %v3850 = vmul.f32 %v391, %v3847
        %v3851 = vmul.f32 %v392, %v3847
        %v3852 = vmul.f32 %v393, %v3847
        %v3853 = vmul.f32 %v394, %v3847
        %v3854 = vmul.f32 %v395, %v3847
        %v3855 = vmul.f32 %v396, %v3847
        %v3856 = vmul.f32 %v397, %v3847
        %v3857 = vmul.f32 %v398, %v3847
        %v3858 = vmul.f32 %v399, %v3847
        %v3859 = vmul.f32 %v400, %v3847
        %v3860 = vmul.f32 %v401, %v3847
        %v3861 = vmul.f32 %v402, %v3847
        %v3862 = vmul.f32 %v403, %v3847
        %v3863 = vmul.f32 %v404, %v3847
        %v3864 = vmul.f32 %v405, %v3847
        %v3865 = vmul.f32 %v406, %v3847
        %v3866 = vmul.f32 %v407, %v3847
        %v3867 = vmul.f32 %v408, %v3847
        %v3868 = vmul.f32 %v409, %v3847
        %v3869 = vmul.f32 %v410, %v3847
        %v3870 = vmul.f32 %v411, %v3847
        %v3871 = vmul.f32 %v412, %v3847
        %v3896 = vrot.slane %v3848, 3
        %v3897 = vrot.slane %v3849, 3
        %v3898 = vsel %vm772, %v3896, %v3897
        %v3899 = vrot.slane %v3850, 3
        %v3900 = vsel %vm772, %v3897, %v3899
        %v3901 = vrot.slane %v3851, 3
        %v3902 = vrot.slane %v3852, 3
        %v3903 = vsel %vm772, %v3901, %v3902
        %v3904 = vrot.slane %v3853, 3
        %v3905 = vsel %vm772, %v3902, %v3904
        %v3906 = vrot.slane %v3854, 3
        %v3907 = vrot.slane %v3855, 3
        %v3908 = vsel %vm772, %v3906, %v3907
        %v3909 = vrot.slane %v3856, 3
        %v3910 = vsel %vm772, %v3907, %v3909
        %v3911 = vrot.slane %v3857, 3
        %v3912 = vrot.slane %v3858, 3
        %v3913 = vsel %vm772, %v3911, %v3912
        %v3914 = vrot.slane %v3859, 3
        %v3915 = vsel %vm772, %v3912, %v3914
        %v3916 = vrot.slane %v3860, 3
        %v3917 = vrot.slane %v3861, 3
        %v3918 = vsel %vm772, %v3916, %v3917
        %v3919 = vrot.slane %v3862, 3
        %v3920 = vsel %vm772, %v3917, %v3919
        %v3921 = vrot.slane %v3863, 3
        %v3922 = vrot.slane %v3864, 3
        %v3923 = vsel %vm772, %v3921, %v3922
        %v3924 = vrot.slane %v3865, 3
        %v3925 = vsel %vm772, %v3922, %v3924
        %v3926 = vrot.slane %v3866, 3
        %v3927 = vrot.slane %v3867, 3
        %v3928 = vsel %vm772, %v3926, %v3927
        %v3929 = vrot.slane %v3868, 3
        %v3930 = vsel %vm772, %v3927, %v3929
        %v3931 = vrot.slane %v3869, 3
        %v3932 = vrot.slane %v3870, 3
        %v3933 = vsel %vm772, %v3931, %v3932
        %v3934 = vrot.slane %v3871, 3
        %v3935 = vsel %vm772, %v3932, %v3934
        %v3952 = vadd.f32 %v3828, %v3898
        %v3953 = vadd.f32 %v3829, %v3900
        %v3954 = vadd.f32 %v3830, %v3903
        %v3955 = vadd.f32 %v3831, %v3905
        %v3956 = vadd.f32 %v3832, %v3908
        %v3957 = vadd.f32 %v3833, %v3910
        %v3958 = vadd.f32 %v3834, %v3913
        %v3959 = vadd.f32 %v3835, %v3915
        %v3960 = vadd.f32 %v3836, %v3918
        %v3961 = vadd.f32 %v3837, %v3920
        %v3962 = vadd.f32 %v3838, %v3923
        %v3963 = vadd.f32 %v3839, %v3925
        %v3964 = vadd.f32 %v3840, %v3928
        %v3965 = vadd.f32 %v3841, %v3930
        %v3966 = vadd.f32 %v3842, %v3933
        %v3967 = vadd.f32 %v3843, %v3935
        %v3968 = vlaneseq
        %v3969 = vshrl.u32 %v3968, 7
        %v3970 = vsub.s32 0, %v3969
        %v3971 = vrot.slane %v423, %v3970
        %v3972 = vmul.f32 %v389, %v3971
        %v3973 = vmul.f32 %v390, %v3971
        %v3974 = vmul.f32 %v391, %v3971
        %v3975 = vmul.f32 %v392, %v3971
        %v3976 = vmul.f32 %v393, %v3971
        %v3977 = vmul.f32 %v394, %v3971
        %v3978 = vmul.f32 %v395, %v3971
        %v3979 = vmul.f32 %v396, %v3971
        %v3980 = vmul.f32 %v397, %v3971
        %v3981 = vmul.f32 %v398, %v3971
        %v3982 = vmul.f32 %v399, %v3971
        %v3983 = vmul.f32 %v400, %v3971
        %v3984 = vmul.f32 %v401, %v3971
        %v3985 = vmul.f32 %v402, %v3971
        %v3986 = vmul.f32 %v403, %v3971
        %v3987 = vmul.f32 %v404, %v3971
        %v3988 = vmul.f32 %v405, %v3971
        %v3989 = vmul.f32 %v406, %v3971
        %v3990 = vmul.f32 %v407, %v3971
        %v3991 = vmul.f32 %v408, %v3971
        %v3992 = vmul.f32 %v409, %v3971
        %v3993 = vmul.f32 %v410, %v3971
        %v3994 = vmul.f32 %v411, %v3971
        %v3995 = vmul.f32 %v412, %v3971
        %v4020 = vrot.slane %v3972, 4
        %v4021 = vrot.slane %v3973, 4
        %v4022 = vsel %vm897, %v4020, %v4021
        %v4023 = vrot.slane %v3974, 4
        %v4024 = vsel %vm897, %v4021, %v4023
        %v4025 = vrot.slane %v3975, 4
        %v4026 = vrot.slane %v3976, 4
        %v4027 = vsel %vm897, %v4025, %v4026
        %v4028 = vrot.slane %v3977, 4
        %v4029 = vsel %vm897, %v4026, %v4028
        %v4030 = vrot.slane %v3978, 4
        %v4031 = vrot.slane %v3979, 4
        %v4032 = vsel %vm897, %v4030, %v4031
        %v4033 = vrot.slane %v3980, 4
        %v4034 = vsel %vm897, %v4031, %v4033
        %v4035 = vrot.slane %v3981, 4
        %v4036 = vrot.slane %v3982, 4
        %v4037 = vsel %vm897, %v4035, %v4036
        %v4038 = vrot.slane %v3983, 4
        %v4039 = vsel %vm897, %v4036, %v4038
        %v4040 = vrot.slane %v3984, 4
        %v4041 = vrot.slane %v3985, 4
        %v4042 = vsel %vm897, %v4040, %v4041
        %v4043 = vrot.slane %v3986, 4
        %v4044 = vsel %vm897, %v4041, %v4043
        %v4045 = vrot.slane %v3987, 4
        %v4046 = vrot.slane %v3988, 4
        %v4047 = vsel %vm897, %v4045, %v4046
        %v4048 = vrot.slane %v3989, 4
        %v4049 = vsel %vm897, %v4046, %v4048
        %v4050 = vrot.slane %v3990, 4
        %v4051 = vrot.slane %v3991, 4
        %v4052 = vsel %vm897, %v4050, %v4051
        %v4053 = vrot.slane %v3992, 4
        %v4054 = vsel %vm897, %v4051, %v4053
        %v4055 = vrot.slane %v3993, 4
        %v4056 = vrot.slane %v3994, 4
        %v4057 = vsel %vm897, %v4055, %v4056
        %v4058 = vrot.slane %v3995, 4
        %v4059 = vsel %vm897, %v4056, %v4058
        %v4076 = vadd.f32 %v3952, %v4022
        %v4077 = vadd.f32 %v3953, %v4024
        %v4078 = vadd.f32 %v3954, %v4027
        %v4079 = vadd.f32 %v3955, %v4029
        %v4080 = vadd.f32 %v3956, %v4032
        %v4081 = vadd.f32 %v3957, %v4034
        %v4082 = vadd.f32 %v3958, %v4037
        %v4083 = vadd.f32 %v3959, %v4039
        %v4084 = vadd.f32 %v3960, %v4042
        %v4085 = vadd.f32 %v3961, %v4044
        %v4086 = vadd.f32 %v3962, %v4047
        %v4087 = vadd.f32 %v3963, %v4049
        %v4088 = vadd.f32 %v3964, %v4052
        %v4089 = vadd.f32 %v3965, %v4054
        %v4090 = vadd.f32 %v3966, %v4057
        %v4091 = vadd.f32 %v3967, %v4059
        %v4092 = vlaneseq
        %v4093 = vshrl.u32 %v4092, 7
        %v4094 = vsub.s32 1, %v4093
        %v4095 = vrot.slane %v423, %v4094
        %v4096 = vmul.f32 %v389, %v4095
        %v4097 = vmul.f32 %v390, %v4095
        %v4098 = vmul.f32 %v391, %v4095
        %v4099 = vmul.f32 %v392, %v4095
        %v4100 = vmul.f32 %v393, %v4095
        %v4101 = vmul.f32 %v394, %v4095
        %v4102 = vmul.f32 %v395, %v4095
        %v4103 = vmul.f32 %v396, %v4095
        %v4104 = vmul.f32 %v397, %v4095
        %v4105 = vmul.f32 %v398, %v4095
        %v4106 = vmul.f32 %v399, %v4095
        %v4107 = vmul.f32 %v400, %v4095
        %v4108 = vmul.f32 %v401, %v4095
        %v4109 = vmul.f32 %v402, %v4095
        %v4110 = vmul.f32 %v403, %v4095
        %v4111 = vmul.f32 %v404, %v4095
        %v4112 = vmul.f32 %v405, %v4095
        %v4113 = vmul.f32 %v406, %v4095
        %v4114 = vmul.f32 %v407, %v4095
        %v4115 = vmul.f32 %v408, %v4095
        %v4116 = vmul.f32 %v409, %v4095
        %v4117 = vmul.f32 %v410, %v4095
        %v4118 = vmul.f32 %v411, %v4095
        %v4119 = vmul.f32 %v412, %v4095
        %v4144 = vrot.slane %v4096, 5
        %v4145 = vrot.slane %v4097, 5
        %v4146 = vsel %vm1022, %v4144, %v4145
        %v4147 = vrot.slane %v4098, 5
        %v4148 = vsel %vm1022, %v4145, %v4147
        %v4149 = vrot.slane %v4099, 5
        %v4150 = vrot.slane %v4100, 5
        %v4151 = vsel %vm1022, %v4149, %v4150
        %v4152 = vrot.slane %v4101, 5
        %v4153 = vsel %vm1022, %v4150, %v4152
        %v4154 = vrot.slane %v4102, 5
        %v4155 = vrot.slane %v4103, 5
        %v4156 = vsel %vm1022, %v4154, %v4155
        %v4157 = vrot.slane %v4104, 5
        %v4158 = vsel %vm1022, %v4155, %v4157
        %v4159 = vrot.slane %v4105, 5
        %v4160 = vrot.slane %v4106, 5
        %v4161 = vsel %vm1022, %v4159, %v4160
        %v4162 = vrot.slane %v4107, 5
        %v4163 = vsel %vm1022, %v4160, %v4162
        %v4164 = vrot.slane %v4108, 5
        %v4165 = vrot.slane %v4109, 5
        %v4166 = vsel %vm1022, %v4164, %v4165
        %v4167 = vrot.slane %v4110, 5
        %v4168 = vsel %vm1022, %v4165, %v4167
        %v4169 = vrot.slane %v4111, 5
        %v4170 = vrot.slane %v4112, 5
        %v4171 = vsel %vm1022, %v4169, %v4170
        %v4172 = vrot.slane %v4113, 5
        %v4173 = vsel %vm1022, %v4170, %v4172
        %v4174 = vrot.slane %v4114, 5
        %v4175 = vrot.slane %v4115, 5
        %v4176 = vsel %vm1022, %v4174, %v4175
        %v4177 = vrot.slane %v4116, 5
        %v4178 = vsel %vm1022, %v4175, %v4177
        %v4179 = vrot.slane %v4117, 5
        %v4180 = vrot.slane %v4118, 5
        %v4181 = vsel %vm1022, %v4179, %v4180
        %v4182 = vrot.slane %v4119, 5
        %v4183 = vsel %vm1022, %v4180, %v4182
        %v4200 = vadd.f32 %v4076, %v4146
        %v4201 = vadd.f32 %v4077, %v4148
        %v4202 = vadd.f32 %v4078, %v4151
        %v4203 = vadd.f32 %v4079, %v4153
        %v4204 = vadd.f32 %v4080, %v4156
        %v4205 = vadd.f32 %v4081, %v4158
        %v4206 = vadd.f32 %v4082, %v4161
        %v4207 = vadd.f32 %v4083, %v4163
        %v4208 = vadd.f32 %v4084, %v4166
        %v4209 = vadd.f32 %v4085, %v4168
        %v4210 = vadd.f32 %v4086, %v4171
        %v4211 = vadd.f32 %v4087, %v4173
        %v4212 = vadd.f32 %v4088, %v4176
        %v4213 = vadd.f32 %v4089, %v4178
        %v4214 = vadd.f32 %v4090, %v4181
        %v4215 = vadd.f32 %v4091, %v4183
        %v4216 = vlaneseq
        %v4217 = vshrl.u32 %v4216, 7
        %v4218 = vsub.s32 2, %v4217
        %v4219 = vrot.slane %v423, %v4218
        %v4220 = vmul.f32 %v389, %v4219
        %v4221 = vmul.f32 %v390, %v4219
        %v4222 = vmul.f32 %v391, %v4219
        %v4223 = vmul.f32 %v392, %v4219
        %v4224 = vmul.f32 %v393, %v4219
        %v4225 = vmul.f32 %v394, %v4219
        %v4226 = vmul.f32 %v395, %v4219
        %v4227 = vmul.f32 %v396, %v4219
        %v4228 = vmul.f32 %v397, %v4219
        %v4229 = vmul.f32 %v398, %v4219
        %v4230 = vmul.f32 %v399, %v4219
        %v4231 = vmul.f32 %v400, %v4219
        %v4232 = vmul.f32 %v401, %v4219
        %v4233 = vmul.f32 %v402, %v4219
        %v4234 = vmul.f32 %v403, %v4219
        %v4235 = vmul.f32 %v404, %v4219
        %v4236 = vmul.f32 %v405, %v4219
        %v4237 = vmul.f32 %v406, %v4219
        %v4238 = vmul.f32 %v407, %v4219
        %v4239 = vmul.f32 %v408, %v4219
        %v4240 = vmul.f32 %v409, %v4219
        %v4241 = vmul.f32 %v410, %v4219
        %v4242 = vmul.f32 %v411, %v4219
        %v4243 = vmul.f32 %v412, %v4219
        %v4268 = vrot.slane %v4220, 6
        %v4269 = vrot.slane %v4221, 6
        %v4270 = vsel %vm1147, %v4268, %v4269
        %v4271 = vrot.slane %v4222, 6
        %v4272 = vsel %vm1147, %v4269, %v4271
        %v4273 = vrot.slane %v4223, 6
        %v4274 = vrot.slane %v4224, 6
        %v4275 = vsel %vm1147, %v4273, %v4274
        %v4276 = vrot.slane %v4225, 6
        %v4277 = vsel %vm1147, %v4274, %v4276
        %v4278 = vrot.slane %v4226, 6
        %v4279 = vrot.slane %v4227, 6
        %v4280 = vsel %vm1147, %v4278, %v4279
        %v4281 = vrot.slane %v4228, 6
        %v4282 = vsel %vm1147, %v4279, %v4281
        %v4283 = vrot.slane %v4229, 6
        %v4284 = vrot.slane %v4230, 6
        %v4285 = vsel %vm1147, %v4283, %v4284
        %v4286 = vrot.slane %v4231, 6
        %v4287 = vsel %vm1147, %v4284, %v4286
        %v4288 = vrot.slane %v4232, 6
        %v4289 = vrot.slane %v4233, 6
        %v4290 = vsel %vm1147, %v4288, %v4289
        %v4291 = vrot.slane %v4234, 6
        %v4292 = vsel %vm1147, %v4289, %v4291
        %v4293 = vrot.slane %v4235, 6
        %v4294 = vrot.slane %v4236, 6
        %v4295 = vsel %vm1147, %v4293, %v4294
        %v4296 = vrot.slane %v4237, 6
        %v4297 = vsel %vm1147, %v4294, %v4296
        %v4298 = vrot.slane %v4238, 6
        %v4299 = vrot.slane %v4239, 6
        %v4300 = vsel %vm1147, %v4298, %v4299
        %v4301 = vrot.slane %v4240, 6
        %v4302 = vsel %vm1147, %v4299, %v4301
        %v4303 = vrot.slane %v4241, 6
        %v4304 = vrot.slane %v4242, 6
        %v4305 = vsel %vm1147, %v4303, %v4304
        %v4306 = vrot.slane %v4243, 6
        %v4307 = vsel %vm1147, %v4304, %v4306
        %v4324 = vadd.f32 %v4200, %v4270
        %v4325 = vadd.f32 %v4201, %v4272
        %v4326 = vadd.f32 %v4202, %v4275
        %v4327 = vadd.f32 %v4203, %v4277
        %v4328 = vadd.f32 %v4204, %v4280
        %v4329 = vadd.f32 %v4205, %v4282
        %v4330 = vadd.f32 %v4206, %v4285
        %v4331 = vadd.f32 %v4207, %v4287
        %v4332 = vadd.f32 %v4208, %v4290
        %v4333 = vadd.f32 %v4209, %v4292
        %v4334 = vadd.f32 %v4210, %v4295
        %v4335 = vadd.f32 %v4211, %v4297
        %v4336 = vadd.f32 %v4212, %v4300
        %v4337 = vadd.f32 %v4213, %v4302
        %v4338 = vadd.f32 %v4214, %v4305
        %v4339 = vadd.f32 %v4215, %v4307
        %v4340 = vlaneseq
        %v4341 = vshrl.u32 %v4340, 7
        %v4342 = vsub.s32 3, %v4341
        %v4343 = vrot.slane %v423, %v4342
        %v4344 = vmul.f32 %v392, %v4343
        %v4345 = vmul.f32 %v393, %v4343
        %v4346 = vmul.f32 %v395, %v4343
        %v4347 = vmul.f32 %v396, %v4343
        %v4348 = vmul.f32 %v398, %v4343
        %v4349 = vmul.f32 %v399, %v4343
        %v4350 = vmul.f32 %v401, %v4343
        %v4351 = vmul.f32 %v402, %v4343
        %v4352 = vmul.f32 %v404, %v4343
        %v4353 = vmul.f32 %v405, %v4343
        %v4354 = vmul.f32 %v407, %v4343
        %v4355 = vmul.f32 %v408, %v4343
        %v4356 = vmul.f32 %v410, %v4343
        %v4357 = vmul.f32 %v411, %v4343
        %v4358 = vmul.f32 %v413, %v4343
        %v4359 = vmul.f32 %v414, %v4343
        %v4360 = vadd.f32 %v4324, %v4344
        %v4361 = vadd.f32 %v4325, %v4345
        %v4362 = vadd.f32 %v4326, %v4346
        %v4363 = vadd.f32 %v4327, %v4347
        %v4364 = vadd.f32 %v4328, %v4348
        %v4365 = vadd.f32 %v4329, %v4349
        %v4366 = vadd.f32 %v4330, %v4350
        %v4367 = vadd.f32 %v4331, %v4351
        %v4368 = vadd.f32 %v4332, %v4352
        %v4369 = vadd.f32 %v4333, %v4353
        %v4370 = vadd.f32 %v4334, %v4354
        %v4371 = vadd.f32 %v4335, %v4355
        %v4372 = vadd.f32 %v4336, %v4356
        %v4373 = vadd.f32 %v4337, %v4357
        %v4374 = vadd.f32 %v4338, %v4358
        %v4375 = vadd.f32 %v4339, %v4359
        %v4376 = vlaneseq
        %v4377 = vshrl.u32 %v4376, 7
        %v4378 = vsub.s32 4, %v4377
        %v4379 = vrot.slane %v423, %v4378
        %v4380 = vmul.f32 %v392, %v4379
        %v4381 = vmul.f32 %v393, %v4379
        %v4382 = vmul.f32 %v394, %v4379
        %v4383 = vmul.f32 %v395, %v4379
        %v4384 = vmul.f32 %v396, %v4379
        %v4385 = vmul.f32 %v397, %v4379
        %v4386 = vmul.f32 %v398, %v4379
        %v4387 = vmul.f32 %v399, %v4379
        %v4388 = vmul.f32 %v400, %v4379
        %v4389 = vmul.f32 %v401, %v4379
        %v4390 = vmul.f32 %v402, %v4379
        %v4391 = vmul.f32 %v403, %v4379
        %v4392 = vmul.f32 %v404, %v4379
        %v4393 = vmul.f32 %v405, %v4379
        %v4394 = vmul.f32 %v406, %v4379
        %v4395 = vmul.f32 %v407, %v4379
        %v4396 = vmul.f32 %v408, %v4379
        %v4397 = vmul.f32 %v409, %v4379
        %v4398 = vmul.f32 %v410, %v4379
        %v4399 = vmul.f32 %v411, %v4379
        %v4400 = vmul.f32 %v412, %v4379
        %v4401 = vmul.f32 %v413, %v4379
        %v4402 = vmul.f32 %v414, %v4379
        %v4403 = vmul.f32 %v415, %v4379
        %v4428 = vrot.slane %v4380, 1
        %v4429 = vrot.slane %v4381, 1
        %v4430 = vsel %vm522, %v4428, %v4429
        %v4431 = vrot.slane %v4382, 1
        %v4432 = vsel %vm522, %v4429, %v4431
        %v4433 = vrot.slane %v4383, 1
        %v4434 = vrot.slane %v4384, 1
        %v4435 = vsel %vm522, %v4433, %v4434
        %v4436 = vrot.slane %v4385, 1
        %v4437 = vsel %vm522, %v4434, %v4436
        %v4438 = vrot.slane %v4386, 1
        %v4439 = vrot.slane %v4387, 1
        %v4440 = vsel %vm522, %v4438, %v4439
        %v4441 = vrot.slane %v4388, 1
        %v4442 = vsel %vm522, %v4439, %v4441
        %v4443 = vrot.slane %v4389, 1
        %v4444 = vrot.slane %v4390, 1
        %v4445 = vsel %vm522, %v4443, %v4444
        %v4446 = vrot.slane %v4391, 1
        %v4447 = vsel %vm522, %v4444, %v4446
        %v4448 = vrot.slane %v4392, 1
        %v4449 = vrot.slane %v4393, 1
        %v4450 = vsel %vm522, %v4448, %v4449
        %v4451 = vrot.slane %v4394, 1
        %v4452 = vsel %vm522, %v4449, %v4451
        %v4453 = vrot.slane %v4395, 1
        %v4454 = vrot.slane %v4396, 1
        %v4455 = vsel %vm522, %v4453, %v4454
        %v4456 = vrot.slane %v4397, 1
        %v4457 = vsel %vm522, %v4454, %v4456
        %v4458 = vrot.slane %v4398, 1
        %v4459 = vrot.slane %v4399, 1
        %v4460 = vsel %vm522, %v4458, %v4459
        %v4461 = vrot.slane %v4400, 1
        %v4462 = vsel %vm522, %v4459, %v4461
        %v4463 = vrot.slane %v4401, 1
        %v4464 = vrot.slane %v4402, 1
        %v4465 = vsel %vm522, %v4463, %v4464
        %v4466 = vrot.slane %v4403, 1
        %v4467 = vsel %vm522, %v4464, %v4466
        %v4484 = vadd.f32 %v4360, %v4430
        %v4485 = vadd.f32 %v4361, %v4432
        %v4486 = vadd.f32 %v4362, %v4435
        %v4487 = vadd.f32 %v4363, %v4437
        %v4488 = vadd.f32 %v4364, %v4440
        %v4489 = vadd.f32 %v4365, %v4442
        %v4490 = vadd.f32 %v4366, %v4445
        %v4491 = vadd.f32 %v4367, %v4447
        %v4492 = vadd.f32 %v4368, %v4450
        %v4493 = vadd.f32 %v4369, %v4452
        %v4494 = vadd.f32 %v4370, %v4455
        %v4495 = vadd.f32 %v4371, %v4457
        %v4496 = vadd.f32 %v4372, %v4460
        %v4497 = vadd.f32 %v4373, %v4462
        %v4498 = vadd.f32 %v4374, %v4465
        %v4499 = vadd.f32 %v4375, %v4467
        %v4500 = vlaneseq
        %v4501 = vshrl.u32 %v4500, 7
        %v4502 = vsub.s32 5, %v4501
        %v4503 = vrot.slane %v423, %v4502
        %v4504 = vmul.f32 %v392, %v4503
        %v4505 = vmul.f32 %v393, %v4503
        %v4506 = vmul.f32 %v394, %v4503
        %v4507 = vmul.f32 %v395, %v4503
        %v4508 = vmul.f32 %v396, %v4503
        %v4509 = vmul.f32 %v397, %v4503
        %v4510 = vmul.f32 %v398, %v4503
        %v4511 = vmul.f32 %v399, %v4503
        %v4512 = vmul.f32 %v400, %v4503
        %v4513 = vmul.f32 %v401, %v4503
        %v4514 = vmul.f32 %v402, %v4503
        %v4515 = vmul.f32 %v403, %v4503
        %v4516 = vmul.f32 %v404, %v4503
        %v4517 = vmul.f32 %v405, %v4503
        %v4518 = vmul.f32 %v406, %v4503
        %v4519 = vmul.f32 %v407, %v4503
        %v4520 = vmul.f32 %v408, %v4503
        %v4521 = vmul.f32 %v409, %v4503
        %v4522 = vmul.f32 %v410, %v4503
        %v4523 = vmul.f32 %v411, %v4503
        %v4524 = vmul.f32 %v412, %v4503
        %v4525 = vmul.f32 %v413, %v4503
        %v4526 = vmul.f32 %v414, %v4503
        %v4527 = vmul.f32 %v415, %v4503
        %v4552 = vrot.slane %v4504, 2
        %v4553 = vrot.slane %v4505, 2
        %v4554 = vsel %vm647, %v4552, %v4553
        %v4555 = vrot.slane %v4506, 2
        %v4556 = vsel %vm647, %v4553, %v4555
        %v4557 = vrot.slane %v4507, 2
        %v4558 = vrot.slane %v4508, 2
        %v4559 = vsel %vm647, %v4557, %v4558
        %v4560 = vrot.slane %v4509, 2
        %v4561 = vsel %vm647, %v4558, %v4560
        %v4562 = vrot.slane %v4510, 2
        %v4563 = vrot.slane %v4511, 2
        %v4564 = vsel %vm647, %v4562, %v4563
        %v4565 = vrot.slane %v4512, 2
        %v4566 = vsel %vm647, %v4563, %v4565
        %v4567 = vrot.slane %v4513, 2
        %v4568 = vrot.slane %v4514, 2
        %v4569 = vsel %vm647, %v4567, %v4568
        %v4570 = vrot.slane %v4515, 2
        %v4571 = vsel %vm647, %v4568, %v4570
        %v4572 = vrot.slane %v4516, 2
        %v4573 = vrot.slane %v4517, 2
        %v4574 = vsel %vm647, %v4572, %v4573
        %v4575 = vrot.slane %v4518, 2
        %v4576 = vsel %vm647, %v4573, %v4575
        %v4577 = vrot.slane %v4519, 2
        %v4578 = vrot.slane %v4520, 2
        %v4579 = vsel %vm647, %v4577, %v4578
        %v4580 = vrot.slane %v4521, 2
        %v4581 = vsel %vm647, %v4578, %v4580
        %v4582 = vrot.slane %v4522, 2
        %v4583 = vrot.slane %v4523, 2
        %v4584 = vsel %vm647, %v4582, %v4583
        %v4585 = vrot.slane %v4524, 2
        %v4586 = vsel %vm647, %v4583, %v4585
        %v4587 = vrot.slane %v4525, 2
        %v4588 = vrot.slane %v4526, 2
        %v4589 = vsel %vm647, %v4587, %v4588
        %v4590 = vrot.slane %v4527, 2
        %v4591 = vsel %vm647, %v4588, %v4590
        %v4608 = vadd.f32 %v4484, %v4554
        %v4609 = vadd.f32 %v4485, %v4556
        %v4610 = vadd.f32 %v4486, %v4559
        %v4611 = vadd.f32 %v4487, %v4561
        %v4612 = vadd.f32 %v4488, %v4564
        %v4613 = vadd.f32 %v4489, %v4566
        %v4614 = vadd.f32 %v4490, %v4569
        %v4615 = vadd.f32 %v4491, %v4571
        %v4616 = vadd.f32 %v4492, %v4574
        %v4617 = vadd.f32 %v4493, %v4576
        %v4618 = vadd.f32 %v4494, %v4579
        %v4619 = vadd.f32 %v4495, %v4581
        %v4620 = vadd.f32 %v4496, %v4584
        %v4621 = vadd.f32 %v4497, %v4586
        %v4622 = vadd.f32 %v4498, %v4589
        %v4623 = vadd.f32 %v4499, %v4591
        %v4624 = vlaneseq
        %v4625 = vshrl.u32 %v4624, 7
        %v4626 = vsub.s32 6, %v4625
        %v4627 = vrot.slane %v423, %v4626
        %v4628 = vmul.f32 %v392, %v4627
        %v4629 = vmul.f32 %v393, %v4627
        %v4630 = vmul.f32 %v394, %v4627
        %v4631 = vmul.f32 %v395, %v4627
        %v4632 = vmul.f32 %v396, %v4627
        %v4633 = vmul.f32 %v397, %v4627
        %v4634 = vmul.f32 %v398, %v4627
        %v4635 = vmul.f32 %v399, %v4627
        %v4636 = vmul.f32 %v400, %v4627
        %v4637 = vmul.f32 %v401, %v4627
        %v4638 = vmul.f32 %v402, %v4627
        %v4639 = vmul.f32 %v403, %v4627
        %v4640 = vmul.f32 %v404, %v4627
        %v4641 = vmul.f32 %v405, %v4627
        %v4642 = vmul.f32 %v406, %v4627
        %v4643 = vmul.f32 %v407, %v4627
        %v4644 = vmul.f32 %v408, %v4627
        %v4645 = vmul.f32 %v409, %v4627
        %v4646 = vmul.f32 %v410, %v4627
        %v4647 = vmul.f32 %v411, %v4627
        %v4648 = vmul.f32 %v412, %v4627
        %v4649 = vmul.f32 %v413, %v4627
        %v4650 = vmul.f32 %v414, %v4627
        %v4651 = vmul.f32 %v415, %v4627
        %v4676 = vrot.slane %v4628, 3
        %v4677 = vrot.slane %v4629, 3
        %v4678 = vsel %vm772, %v4676, %v4677
        %v4679 = vrot.slane %v4630, 3
        %v4680 = vsel %vm772, %v4677, %v4679
        %v4681 = vrot.slane %v4631, 3
        %v4682 = vrot.slane %v4632, 3
        %v4683 = vsel %vm772, %v4681, %v4682
        %v4684 = vrot.slane %v4633, 3
        %v4685 = vsel %vm772, %v4682, %v4684
        %v4686 = vrot.slane %v4634, 3
        %v4687 = vrot.slane %v4635, 3
        %v4688 = vsel %vm772, %v4686, %v4687
        %v4689 = vrot.slane %v4636, 3
        %v4690 = vsel %vm772, %v4687, %v4689
        %v4691 = vrot.slane %v4637, 3
        %v4692 = vrot.slane %v4638, 3
        %v4693 = vsel %vm772, %v4691, %v4692
        %v4694 = vrot.slane %v4639, 3
        %v4695 = vsel %vm772, %v4692, %v4694
        %v4696 = vrot.slane %v4640, 3
        %v4697 = vrot.slane %v4641, 3
        %v4698 = vsel %vm772, %v4696, %v4697
        %v4699 = vrot.slane %v4642, 3
        %v4700 = vsel %vm772, %v4697, %v4699
        %v4701 = vrot.slane %v4643, 3
        %v4702 = vrot.slane %v4644, 3
        %v4703 = vsel %vm772, %v4701, %v4702
        %v4704 = vrot.slane %v4645, 3
        %v4705 = vsel %vm772, %v4702, %v4704
        %v4706 = vrot.slane %v4646, 3
        %v4707 = vrot.slane %v4647, 3
        %v4708 = vsel %vm772, %v4706, %v4707
        %v4709 = vrot.slane %v4648, 3
        %v4710 = vsel %vm772, %v4707, %v4709
        %v4711 = vrot.slane %v4649, 3
        %v4712 = vrot.slane %v4650, 3
        %v4713 = vsel %vm772, %v4711, %v4712
        %v4714 = vrot.slane %v4651, 3
        %v4715 = vsel %vm772, %v4712, %v4714
        %v4732 = vadd.f32 %v4608, %v4678
        %v4733 = vadd.f32 %v4609, %v4680
        %v4734 = vadd.f32 %v4610, %v4683
        %v4735 = vadd.f32 %v4611, %v4685
        %v4736 = vadd.f32 %v4612, %v4688
        %v4737 = vadd.f32 %v4613, %v4690
        %v4738 = vadd.f32 %v4614, %v4693
        %v4739 = vadd.f32 %v4615, %v4695
        %v4740 = vadd.f32 %v4616, %v4698
        %v4741 = vadd.f32 %v4617, %v4700
        %v4742 = vadd.f32 %v4618, %v4703
        %v4743 = vadd.f32 %v4619, %v4705
        %v4744 = vadd.f32 %v4620, %v4708
        %v4745 = vadd.f32 %v4621, %v4710
        %v4746 = vadd.f32 %v4622, %v4713
        %v4747 = vadd.f32 %v4623, %v4715
        %v4748 = vlaneseq
        %v4749 = vshrl.u32 %v4748, 7
        %v4750 = vsub.s32 7, %v4749
        %v4751 = vrot.slane %v423, %v4750
        %v4752 = vmul.f32 %v392, %v4751
        %v4753 = vmul.f32 %v393, %v4751
        %v4754 = vmul.f32 %v394, %v4751
        %v4755 = vmul.f32 %v395, %v4751
        %v4756 = vmul.f32 %v396, %v4751
        %v4757 = vmul.f32 %v397, %v4751
        %v4758 = vmul.f32 %v398, %v4751
        %v4759 = vmul.f32 %v399, %v4751
        %v4760 = vmul.f32 %v400, %v4751
        %v4761 = vmul.f32 %v401, %v4751
        %v4762 = vmul.f32 %v402, %v4751
        %v4763 = vmul.f32 %v403, %v4751
        %v4764 = vmul.f32 %v404, %v4751
        %v4765 = vmul.f32 %v405, %v4751
        %v4766 = vmul.f32 %v406, %v4751
        %v4767 = vmul.f32 %v407, %v4751
        %v4768 = vmul.f32 %v408, %v4751
        %v4769 = vmul.f32 %v409, %v4751
        %v4770 = vmul.f32 %v410, %v4751
        %v4771 = vmul.f32 %v411, %v4751
        %v4772 = vmul.f32 %v412, %v4751
        %v4773 = vmul.f32 %v413, %v4751
        %v4774 = vmul.f32 %v414, %v4751
        %v4775 = vmul.f32 %v415, %v4751
        %v4800 = vrot.slane %v4752, 4
        %v4801 = vrot.slane %v4753, 4
        %v4802 = vsel %vm897, %v4800, %v4801
        %v4803 = vrot.slane %v4754, 4
        %v4804 = vsel %vm897, %v4801, %v4803
        %v4805 = vrot.slane %v4755, 4
        %v4806 = vrot.slane %v4756, 4
        %v4807 = vsel %vm897, %v4805, %v4806
        %v4808 = vrot.slane %v4757, 4
        %v4809 = vsel %vm897, %v4806, %v4808
        %v4810 = vrot.slane %v4758, 4
        %v4811 = vrot.slane %v4759, 4
        %v4812 = vsel %vm897, %v4810, %v4811
        %v4813 = vrot.slane %v4760, 4
        %v4814 = vsel %vm897, %v4811, %v4813
        %v4815 = vrot.slane %v4761, 4
        %v4816 = vrot.slane %v4762, 4
        %v4817 = vsel %vm897, %v4815, %v4816
        %v4818 = vrot.slane %v4763, 4
        %v4819 = vsel %vm897, %v4816, %v4818
        %v4820 = vrot.slane %v4764, 4
        %v4821 = vrot.slane %v4765, 4
        %v4822 = vsel %vm897, %v4820, %v4821
        %v4823 = vrot.slane %v4766, 4
        %v4824 = vsel %vm897, %v4821, %v4823
        %v4825 = vrot.slane %v4767, 4
        %v4826 = vrot.slane %v4768, 4
        %v4827 = vsel %vm897, %v4825, %v4826
        %v4828 = vrot.slane %v4769, 4
        %v4829 = vsel %vm897, %v4826, %v4828
        %v4830 = vrot.slane %v4770, 4
        %v4831 = vrot.slane %v4771, 4
        %v4832 = vsel %vm897, %v4830, %v4831
        %v4833 = vrot.slane %v4772, 4
        %v4834 = vsel %vm897, %v4831, %v4833
        %v4835 = vrot.slane %v4773, 4
        %v4836 = vrot.slane %v4774, 4
        %v4837 = vsel %vm897, %v4835, %v4836
        %v4838 = vrot.slane %v4775, 4
        %v4839 = vsel %vm897, %v4836, %v4838
        %v4856 = vadd.f32 %v4732, %v4802
        %v4857 = vadd.f32 %v4733, %v4804
        %v4858 = vadd.f32 %v4734, %v4807
        %v4859 = vadd.f32 %v4735, %v4809
        %v4860 = vadd.f32 %v4736, %v4812
        %v4861 = vadd.f32 %v4737, %v4814
        %v4862 = vadd.f32 %v4738, %v4817
        %v4863 = vadd.f32 %v4739, %v4819
        %v4864 = vadd.f32 %v4740, %v4822
        %v4865 = vadd.f32 %v4741, %v4824
        %v4866 = vadd.f32 %v4742, %v4827
        %v4867 = vadd.f32 %v4743, %v4829
        %v4868 = vadd.f32 %v4744, %v4832
        %v4869 = vadd.f32 %v4745, %v4834
        %v4870 = vadd.f32 %v4746, %v4837
        %v4871 = vadd.f32 %v4747, %v4839
        %v4872 = vlaneseq
        %v4873 = vshrl.u32 %v4872, 7
        %v4874 = vsub.s32 0, %v4873
        %v4875 = vrot.slane %v424, %v4874
        %v4876 = vmul.f32 %v392, %v4875
        %v4877 = vmul.f32 %v393, %v4875
        %v4878 = vmul.f32 %v394, %v4875
        %v4879 = vmul.f32 %v395, %v4875
        %v4880 = vmul.f32 %v396, %v4875
        %v4881 = vmul.f32 %v397, %v4875
        %v4882 = vmul.f32 %v398, %v4875
        %v4883 = vmul.f32 %v399, %v4875
        %v4884 = vmul.f32 %v400, %v4875
        %v4885 = vmul.f32 %v401, %v4875
        %v4886 = vmul.f32 %v402, %v4875
        %v4887 = vmul.f32 %v403, %v4875
        %v4888 = vmul.f32 %v404, %v4875
        %v4889 = vmul.f32 %v405, %v4875
        %v4890 = vmul.f32 %v406, %v4875
        %v4891 = vmul.f32 %v407, %v4875
        %v4892 = vmul.f32 %v408, %v4875
        %v4893 = vmul.f32 %v409, %v4875
        %v4894 = vmul.f32 %v410, %v4875
        %v4895 = vmul.f32 %v411, %v4875
        %v4896 = vmul.f32 %v412, %v4875
        %v4897 = vmul.f32 %v413, %v4875
        %v4898 = vmul.f32 %v414, %v4875
        %v4899 = vmul.f32 %v415, %v4875
        %v4924 = vrot.slane %v4876, 5
        %v4925 = vrot.slane %v4877, 5
        %v4926 = vsel %vm1022, %v4924, %v4925
        %v4927 = vrot.slane %v4878, 5
        %v4928 = vsel %vm1022, %v4925, %v4927
        %v4929 = vrot.slane %v4879, 5
        %v4930 = vrot.slane %v4880, 5
        %v4931 = vsel %vm1022, %v4929, %v4930
        %v4932 = vrot.slane %v4881, 5
        %v4933 = vsel %vm1022, %v4930, %v4932
        %v4934 = vrot.slane %v4882, 5
        %v4935 = vrot.slane %v4883, 5
        %v4936 = vsel %vm1022, %v4934, %v4935
        %v4937 = vrot.slane %v4884, 5
        %v4938 = vsel %vm1022, %v4935, %v4937
        %v4939 = vrot.slane %v4885, 5
        %v4940 = vrot.slane %v4886, 5
        %v4941 = vsel %vm1022, %v4939, %v4940
        %v4942 = vrot.slane %v4887, 5
        %v4943 = vsel %vm1022, %v4940, %v4942
        %v4944 = vrot.slane %v4888, 5
        %v4945 = vrot.slane %v4889, 5
        %v4946 = vsel %vm1022, %v4944, %v4945
        %v4947 = vrot.slane %v4890, 5
        %v4948 = vsel %vm1022, %v4945, %v4947
        %v4949 = vrot.slane %v4891, 5
        %v4950 = vrot.slane %v4892, 5
        %v4951 = vsel %vm1022, %v4949, %v4950
        %v4952 = vrot.slane %v4893, 5
        %v4953 = vsel %vm1022, %v4950, %v4952
        %v4954 = vrot.slane %v4894, 5
        %v4955 = vrot.slane %v4895, 5
        %v4956 = vsel %vm1022, %v4954, %v4955
        %v4957 = vrot.slane %v4896, 5
        %v4958 = vsel %vm1022, %v4955, %v4957
        %v4959 = vrot.slane %v4897, 5
        %v4960 = vrot.slane %v4898, 5
        %v4961 = vsel %vm1022, %v4959, %v4960
        %v4962 = vrot.slane %v4899, 5
        %v4963 = vsel %vm1022, %v4960, %v4962
        %v4980 = vadd.f32 %v4856, %v4926
        %v4981 = vadd.f32 %v4857, %v4928
        %v4982 = vadd.f32 %v4858, %v4931
        %v4983 = vadd.f32 %v4859, %v4933
        %v4984 = vadd.f32 %v4860, %v4936
        %v4985 = vadd.f32 %v4861, %v4938
        %v4986 = vadd.f32 %v4862, %v4941
        %v4987 = vadd.f32 %v4863, %v4943
        %v4988 = vadd.f32 %v4864, %v4946
        %v4989 = vadd.f32 %v4865, %v4948
        %v4990 = vadd.f32 %v4866, %v4951
        %v4991 = vadd.f32 %v4867, %v4953
        %v4992 = vadd.f32 %v4868, %v4956
        %v4993 = vadd.f32 %v4869, %v4958
        %v4994 = vadd.f32 %v4870, %v4961
        %v4995 = vadd.f32 %v4871, %v4963
        %v4996 = vlaneseq
        %v4997 = vshrl.u32 %v4996, 7
        %v4998 = vsub.s32 1, %v4997
        %v4999 = vrot.slane %v424, %v4998
        %v5000 = vmul.f32 %v392, %v4999
        %v5001 = vmul.f32 %v393, %v4999
        %v5002 = vmul.f32 %v394, %v4999
        %v5003 = vmul.f32 %v395, %v4999
        %v5004 = vmul.f32 %v396, %v4999
        %v5005 = vmul.f32 %v397, %v4999
        %v5006 = vmul.f32 %v398, %v4999
        %v5007 = vmul.f32 %v399, %v4999
        %v5008 = vmul.f32 %v400, %v4999
        %v5009 = vmul.f32 %v401, %v4999
        %v5010 = vmul.f32 %v402, %v4999
        %v5011 = vmul.f32 %v403, %v4999
        %v5012 = vmul.f32 %v404, %v4999
        %v5013 = vmul.f32 %v405, %v4999
        %v5014 = vmul.f32 %v406, %v4999
        %v5015 = vmul.f32 %v407, %v4999
        %v5016 = vmul.f32 %v408, %v4999
        %v5017 = vmul.f32 %v409, %v4999
        %v5018 = vmul.f32 %v410, %v4999
        %v5019 = vmul.f32 %v411, %v4999
        %v5020 = vmul.f32 %v412, %v4999
        %v5021 = vmul.f32 %v413, %v4999
        %v5022 = vmul.f32 %v414, %v4999
        %v5023 = vmul.f32 %v415, %v4999
        %v5048 = vrot.slane %v5000, 6
        %v5049 = vrot.slane %v5001, 6
        %v5050 = vsel %vm1147, %v5048, %v5049
        %v5051 = vrot.slane %v5002, 6
        %v5052 = vsel %vm1147, %v5049, %v5051
        %v5053 = vrot.slane %v5003, 6
        %v5054 = vrot.slane %v5004, 6
        %v5055 = vsel %vm1147, %v5053, %v5054
        %v5056 = vrot.slane %v5005, 6
        %v5057 = vsel %vm1147, %v5054, %v5056
        %v5058 = vrot.slane %v5006, 6
        %v5059 = vrot.slane %v5007, 6
        %v5060 = vsel %vm1147, %v5058, %v5059
        %v5061 = vrot.slane %v5008, 6
        %v5062 = vsel %vm1147, %v5059, %v5061
        %v5063 = vrot.slane %v5009, 6
        %v5064 = vrot.slane %v5010, 6
        %v5065 = vsel %vm1147, %v5063, %v5064
        %v5066 = vrot.slane %v5011, 6
        %v5067 = vsel %vm1147, %v5064, %v5066
        %v5068 = vrot.slane %v5012, 6
        %v5069 = vrot.slane %v5013, 6
        %v5070 = vsel %vm1147, %v5068, %v5069
        %v5071 = vrot.slane %v5014, 6
        %v5072 = vsel %vm1147, %v5069, %v5071
        %v5073 = vrot.slane %v5015, 6
        %v5074 = vrot.slane %v5016, 6
        %v5075 = vsel %vm1147, %v5073, %v5074
        %v5076 = vrot.slane %v5017, 6
        %v5077 = vsel %vm1147, %v5074, %v5076
        %v5078 = vrot.slane %v5018, 6
        %v5079 = vrot.slane %v5019, 6
        %v5080 = vsel %vm1147, %v5078, %v5079
        %v5081 = vrot.slane %v5020, 6
        %v5082 = vsel %vm1147, %v5079, %v5081
        %v5083 = vrot.slane %v5021, 6
        %v5084 = vrot.slane %v5022, 6
        %v5085 = vsel %vm1147, %v5083, %v5084
        %v5086 = vrot.slane %v5023, 6
        %v5087 = vsel %vm1147, %v5084, %v5086
        %v5104 = vadd.f32 %v4980, %v5050
        %v5105 = vadd.f32 %v4981, %v5052
        %v5106 = vadd.f32 %v4982, %v5055
        %v5107 = vadd.f32 %v4983, %v5057
        %v5108 = vadd.f32 %v4984, %v5060
        %v5109 = vadd.f32 %v4985, %v5062
        %v5110 = vadd.f32 %v4986, %v5065
        %v5111 = vadd.f32 %v4987, %v5067
        %v5112 = vadd.f32 %v4988, %v5070
        %v5113 = vadd.f32 %v4989, %v5072
        %v5114 = vadd.f32 %v4990, %v5075
        %v5115 = vadd.f32 %v4991, %v5077
        %v5116 = vadd.f32 %v4992, %v5080
        %v5117 = vadd.f32 %v4993, %v5082
        %v5118 = vadd.f32 %v4994, %v5085
        %v5119 = vadd.f32 %v4995, %v5087
        %v5120 = vlaneseq
        %v5121 = vshrl.u32 %v5120, 7
        %v5122 = vsub.s32 2, %v5121
        %v5123 = vrot.slane %v424, %v5122
        %v5124 = vmul.f32 %v395, %v5123
        %v5125 = vmul.f32 %v396, %v5123
        %v5126 = vmul.f32 %v398, %v5123
        %v5127 = vmul.f32 %v399, %v5123
        %v5128 = vmul.f32 %v401, %v5123
        %v5129 = vmul.f32 %v402, %v5123
        %v5130 = vmul.f32 %v404, %v5123
        %v5131 = vmul.f32 %v405, %v5123
        %v5132 = vmul.f32 %v407, %v5123
        %v5133 = vmul.f32 %v408, %v5123
        %v5134 = vmul.f32 %v410, %v5123
        %v5135 = vmul.f32 %v411, %v5123
        %v5136 = vmul.f32 %v413, %v5123
        %v5137 = vmul.f32 %v414, %v5123
        %v5138 = vmul.f32 %v416, %v5123
        %v5139 = vmul.f32 %v417, %v5123
        %v5140 = vadd.f32 %v5104, %v5124
        %v5141 = vadd.f32 %v5105, %v5125
        %v5142 = vadd.f32 %v5106, %v5126
        %v5143 = vadd.f32 %v5107, %v5127
        %v5144 = vadd.f32 %v5108, %v5128
        %v5145 = vadd.f32 %v5109, %v5129
        %v5146 = vadd.f32 %v5110, %v5130
        %v5147 = vadd.f32 %v5111, %v5131
        %v5148 = vadd.f32 %v5112, %v5132
        %v5149 = vadd.f32 %v5113, %v5133
        %v5150 = vadd.f32 %v5114, %v5134
        %v5151 = vadd.f32 %v5115, %v5135
        %v5152 = vadd.f32 %v5116, %v5136
        %v5153 = vadd.f32 %v5117, %v5137
        %v5154 = vadd.f32 %v5118, %v5138
        %v5155 = vadd.f32 %v5119, %v5139
        %v5156 = vlaneseq
        %v5157 = vshrl.u32 %v5156, 7
        %v5158 = vsub.s32 3, %v5157
        %v5159 = vrot.slane %v424, %v5158
        %v5160 = vmul.f32 %v395, %v5159
        %v5161 = vmul.f32 %v396, %v5159
        %v5162 = vmul.f32 %v397, %v5159
        %v5163 = vmul.f32 %v398, %v5159
        %v5164 = vmul.f32 %v399, %v5159
        %v5165 = vmul.f32 %v400, %v5159
        %v5166 = vmul.f32 %v401, %v5159
        %v5167 = vmul.f32 %v402, %v5159
        %v5168 = vmul.f32 %v403, %v5159
        %v5169 = vmul.f32 %v404, %v5159
        %v5170 = vmul.f32 %v405, %v5159
        %v5171 = vmul.f32 %v406, %v5159
        %v5172 = vmul.f32 %v407, %v5159
        %v5173 = vmul.f32 %v408, %v5159
        %v5174 = vmul.f32 %v409, %v5159
        %v5175 = vmul.f32 %v410, %v5159
        %v5176 = vmul.f32 %v411, %v5159
        %v5177 = vmul.f32 %v412, %v5159
        %v5178 = vmul.f32 %v413, %v5159
        %v5179 = vmul.f32 %v414, %v5159
        %v5180 = vmul.f32 %v415, %v5159
        %v5181 = vmul.f32 %v416, %v5159
        %v5182 = vmul.f32 %v417, %v5159
        %v5183 = vmul.f32 %v418, %v5159
        %v5208 = vrot.slane %v5160, 1
        %v5209 = vrot.slane %v5161, 1
        %v5210 = vsel %vm522, %v5208, %v5209
        %v5211 = vrot.slane %v5162, 1
        %v5212 = vsel %vm522, %v5209, %v5211
        %v5213 = vrot.slane %v5163, 1
        %v5214 = vrot.slane %v5164, 1
        %v5215 = vsel %vm522, %v5213, %v5214
        %v5216 = vrot.slane %v5165, 1
        %v5217 = vsel %vm522, %v5214, %v5216
        %v5218 = vrot.slane %v5166, 1
        %v5219 = vrot.slane %v5167, 1
        %v5220 = vsel %vm522, %v5218, %v5219
        %v5221 = vrot.slane %v5168, 1
        %v5222 = vsel %vm522, %v5219, %v5221
        %v5223 = vrot.slane %v5169, 1
        %v5224 = vrot.slane %v5170, 1
        %v5225 = vsel %vm522, %v5223, %v5224
        %v5226 = vrot.slane %v5171, 1
        %v5227 = vsel %vm522, %v5224, %v5226
        %v5228 = vrot.slane %v5172, 1
        %v5229 = vrot.slane %v5173, 1
        %v5230 = vsel %vm522, %v5228, %v5229
        %v5231 = vrot.slane %v5174, 1
        %v5232 = vsel %vm522, %v5229, %v5231
        %v5233 = vrot.slane %v5175, 1
        %v5234 = vrot.slane %v5176, 1
        %v5235 = vsel %vm522, %v5233, %v5234
        %v5236 = vrot.slane %v5177, 1
        %v5237 = vsel %vm522, %v5234, %v5236
        %v5238 = vrot.slane %v5178, 1
        %v5239 = vrot.slane %v5179, 1
        %v5240 = vsel %vm522, %v5238, %v5239
        %v5241 = vrot.slane %v5180, 1
        %v5242 = vsel %vm522, %v5239, %v5241
        %v5243 = vrot.slane %v5181, 1
        %v5244 = vrot.slane %v5182, 1
        %v5245 = vsel %vm522, %v5243, %v5244
        %v5246 = vrot.slane %v5183, 1
        %v5247 = vsel %vm522, %v5244, %v5246
        %v5264 = vadd.f32 %v5140, %v5210
        %v5265 = vadd.f32 %v5141, %v5212
        %v5266 = vadd.f32 %v5142, %v5215
        %v5267 = vadd.f32 %v5143, %v5217
        %v5268 = vadd.f32 %v5144, %v5220
        %v5269 = vadd.f32 %v5145, %v5222
        %v5270 = vadd.f32 %v5146, %v5225
        %v5271 = vadd.f32 %v5147, %v5227
        %v5272 = vadd.f32 %v5148, %v5230
        %v5273 = vadd.f32 %v5149, %v5232
        %v5274 = vadd.f32 %v5150, %v5235
        %v5275 = vadd.f32 %v5151, %v5237
        %v5276 = vadd.f32 %v5152, %v5240
        %v5277 = vadd.f32 %v5153, %v5242
        %v5278 = vadd.f32 %v5154, %v5245
        %v5279 = vadd.f32 %v5155, %v5247
        %v5280 = vlaneseq
        %v5281 = vshrl.u32 %v5280, 7
        %v5282 = vsub.s32 4, %v5281
        %v5283 = vrot.slane %v424, %v5282
        %v5284 = vmul.f32 %v395, %v5283
        %v5285 = vmul.f32 %v396, %v5283
        %v5286 = vmul.f32 %v397, %v5283
        %v5287 = vmul.f32 %v398, %v5283
        %v5288 = vmul.f32 %v399, %v5283
        %v5289 = vmul.f32 %v400, %v5283
        %v5290 = vmul.f32 %v401, %v5283
        %v5291 = vmul.f32 %v402, %v5283
        %v5292 = vmul.f32 %v403, %v5283
        %v5293 = vmul.f32 %v404, %v5283
        %v5294 = vmul.f32 %v405, %v5283
        %v5295 = vmul.f32 %v406, %v5283
        %v5296 = vmul.f32 %v407, %v5283
        %v5297 = vmul.f32 %v408, %v5283
        %v5298 = vmul.f32 %v409, %v5283
        %v5299 = vmul.f32 %v410, %v5283
        %v5300 = vmul.f32 %v411, %v5283
        %v5301 = vmul.f32 %v412, %v5283
        %v5302 = vmul.f32 %v413, %v5283
        %v5303 = vmul.f32 %v414, %v5283
        %v5304 = vmul.f32 %v415, %v5283
        %v5305 = vmul.f32 %v416, %v5283
        %v5306 = vmul.f32 %v417, %v5283
        %v5307 = vmul.f32 %v418, %v5283
        %v5332 = vrot.slane %v5284, 2
        %v5333 = vrot.slane %v5285, 2
        %v5334 = vsel %vm647, %v5332, %v5333
        %v5335 = vrot.slane %v5286, 2
        %v5336 = vsel %vm647, %v5333, %v5335
        %v5337 = vrot.slane %v5287, 2
        %v5338 = vrot.slane %v5288, 2
        %v5339 = vsel %vm647, %v5337, %v5338
        %v5340 = vrot.slane %v5289, 2
        %v5341 = vsel %vm647, %v5338, %v5340
        %v5342 = vrot.slane %v5290, 2
        %v5343 = vrot.slane %v5291, 2
        %v5344 = vsel %vm647, %v5342, %v5343
        %v5345 = vrot.slane %v5292, 2
        %v5346 = vsel %vm647, %v5343, %v5345
        %v5347 = vrot.slane %v5293, 2
        %v5348 = vrot.slane %v5294, 2
        %v5349 = vsel %vm647, %v5347, %v5348
        %v5350 = vrot.slane %v5295, 2
        %v5351 = vsel %vm647, %v5348, %v5350
        %v5352 = vrot.slane %v5296, 2
        %v5353 = vrot.slane %v5297, 2
        %v5354 = vsel %vm647, %v5352, %v5353
        %v5355 = vrot.slane %v5298, 2
        %v5356 = vsel %vm647, %v5353, %v5355
        %v5357 = vrot.slane %v5299, 2
        %v5358 = vrot.slane %v5300, 2
        %v5359 = vsel %vm647, %v5357, %v5358
        %v5360 = vrot.slane %v5301, 2
        %v5361 = vsel %vm647, %v5358, %v5360
        %v5362 = vrot.slane %v5302, 2
        %v5363 = vrot.slane %v5303, 2
        %v5364 = vsel %vm647, %v5362, %v5363
        %v5365 = vrot.slane %v5304, 2
        %v5366 = vsel %vm647, %v5363, %v5365
        %v5367 = vrot.slane %v5305, 2
        %v5368 = vrot.slane %v5306, 2
        %v5369 = vsel %vm647, %v5367, %v5368
        %v5370 = vrot.slane %v5307, 2
        %v5371 = vsel %vm647, %v5368, %v5370
        %v5388 = vadd.f32 %v5264, %v5334
        %v5389 = vadd.f32 %v5265, %v5336
        %v5390 = vadd.f32 %v5266, %v5339
        %v5391 = vadd.f32 %v5267, %v5341
        %v5392 = vadd.f32 %v5268, %v5344
        %v5393 = vadd.f32 %v5269, %v5346
        %v5394 = vadd.f32 %v5270, %v5349
        %v5395 = vadd.f32 %v5271, %v5351
        %v5396 = vadd.f32 %v5272, %v5354
        %v5397 = vadd.f32 %v5273, %v5356
        %v5398 = vadd.f32 %v5274, %v5359
        %v5399 = vadd.f32 %v5275, %v5361
        %v5400 = vadd.f32 %v5276, %v5364
        %v5401 = vadd.f32 %v5277, %v5366
        %v5402 = vadd.f32 %v5278, %v5369
        %v5403 = vadd.f32 %v5279, %v5371
        %v5404 = vlaneseq
        %v5405 = vshrl.u32 %v5404, 7
        %v5406 = vsub.s32 5, %v5405
        %v5407 = vrot.slane %v424, %v5406
        %v5408 = vmul.f32 %v395, %v5407
        %v5409 = vmul.f32 %v396, %v5407
        %v5410 = vmul.f32 %v397, %v5407
        %v5411 = vmul.f32 %v398, %v5407
        %v5412 = vmul.f32 %v399, %v5407
        %v5413 = vmul.f32 %v400, %v5407
        %v5414 = vmul.f32 %v401, %v5407
        %v5415 = vmul.f32 %v402, %v5407
        %v5416 = vmul.f32 %v403, %v5407
        %v5417 = vmul.f32 %v404, %v5407
        %v5418 = vmul.f32 %v405, %v5407
        %v5419 = vmul.f32 %v406, %v5407
        %v5420 = vmul.f32 %v407, %v5407
        %v5421 = vmul.f32 %v408, %v5407
        %v5422 = vmul.f32 %v409, %v5407
        %v5423 = vmul.f32 %v410, %v5407
        %v5424 = vmul.f32 %v411, %v5407
        %v5425 = vmul.f32 %v412, %v5407
        %v5426 = vmul.f32 %v413, %v5407
        %v5427 = vmul.f32 %v414, %v5407
        %v5428 = vmul.f32 %v415, %v5407
        %v5429 = vmul.f32 %v416, %v5407
        %v5430 = vmul.f32 %v417, %v5407
        %v5431 = vmul.f32 %v418, %v5407
        %v5456 = vrot.slane %v5408, 3
        %v5457 = vrot.slane %v5409, 3
        %v5458 = vsel %vm772, %v5456, %v5457
        %v5459 = vrot.slane %v5410, 3
        %v5460 = vsel %vm772, %v5457, %v5459
        %v5461 = vrot.slane %v5411, 3
        %v5462 = vrot.slane %v5412, 3
        %v5463 = vsel %vm772, %v5461, %v5462
        %v5464 = vrot.slane %v5413, 3
        %v5465 = vsel %vm772, %v5462, %v5464
        %v5466 = vrot.slane %v5414, 3
        %v5467 = vrot.slane %v5415, 3
        %v5468 = vsel %vm772, %v5466, %v5467
        %v5469 = vrot.slane %v5416, 3
        %v5470 = vsel %vm772, %v5467, %v5469
        %v5471 = vrot.slane %v5417, 3
        %v5472 = vrot.slane %v5418, 3
        %v5473 = vsel %vm772, %v5471, %v5472
        %v5474 = vrot.slane %v5419, 3
        %v5475 = vsel %vm772, %v5472, %v5474
        %v5476 = vrot.slane %v5420, 3
        %v5477 = vrot.slane %v5421, 3
        %v5478 = vsel %vm772, %v5476, %v5477
        %v5479 = vrot.slane %v5422, 3
        %v5480 = vsel %vm772, %v5477, %v5479
        %v5481 = vrot.slane %v5423, 3
        %v5482 = vrot.slane %v5424, 3
        %v5483 = vsel %vm772, %v5481, %v5482
        %v5484 = vrot.slane %v5425, 3
        %v5485 = vsel %vm772, %v5482, %v5484
        %v5486 = vrot.slane %v5426, 3
        %v5487 = vrot.slane %v5427, 3
        %v5488 = vsel %vm772, %v5486, %v5487
        %v5489 = vrot.slane %v5428, 3
        %v5490 = vsel %vm772, %v5487, %v5489
        %v5491 = vrot.slane %v5429, 3
        %v5492 = vrot.slane %v5430, 3
        %v5493 = vsel %vm772, %v5491, %v5492
        %v5494 = vrot.slane %v5431, 3
        %v5495 = vsel %vm772, %v5492, %v5494
        %v5512 = vadd.f32 %v5388, %v5458
        %v5513 = vadd.f32 %v5389, %v5460
        %v5514 = vadd.f32 %v5390, %v5463
        %v5515 = vadd.f32 %v5391, %v5465
        %v5516 = vadd.f32 %v5392, %v5468
        %v5517 = vadd.f32 %v5393, %v5470
        %v5518 = vadd.f32 %v5394, %v5473
        %v5519 = vadd.f32 %v5395, %v5475
        %v5520 = vadd.f32 %v5396, %v5478
        %v5521 = vadd.f32 %v5397, %v5480
        %v5522 = vadd.f32 %v5398, %v5483
        %v5523 = vadd.f32 %v5399, %v5485
        %v5524 = vadd.f32 %v5400, %v5488
        %v5525 = vadd.f32 %v5401, %v5490
        %v5526 = vadd.f32 %v5402, %v5493
        %v5527 = vadd.f32 %v5403, %v5495
        %v5528 = vlaneseq
        %v5529 = vshrl.u32 %v5528, 7
        %v5530 = vsub.s32 6, %v5529
        %v5531 = vrot.slane %v424, %v5530
        %v5532 = vmul.f32 %v395, %v5531
        %v5533 = vmul.f32 %v396, %v5531
        %v5534 = vmul.f32 %v397, %v5531
        %v5535 = vmul.f32 %v398, %v5531
        %v5536 = vmul.f32 %v399, %v5531
        %v5537 = vmul.f32 %v400, %v5531
        %v5538 = vmul.f32 %v401, %v5531
        %v5539 = vmul.f32 %v402, %v5531
        %v5540 = vmul.f32 %v403, %v5531
        %v5541 = vmul.f32 %v404, %v5531
        %v5542 = vmul.f32 %v405, %v5531
        %v5543 = vmul.f32 %v406, %v5531
        %v5544 = vmul.f32 %v407, %v5531
        %v5545 = vmul.f32 %v408, %v5531
        %v5546 = vmul.f32 %v409, %v5531
        %v5547 = vmul.f32 %v410, %v5531
        %v5548 = vmul.f32 %v411, %v5531
        %v5549 = vmul.f32 %v412, %v5531
        %v5550 = vmul.f32 %v413, %v5531
        %v5551 = vmul.f32 %v414, %v5531
        %v5552 = vmul.f32 %v415, %v5531
        %v5553 = vmul.f32 %v416, %v5531
        %v5554 = vmul.f32 %v417, %v5531
        %v5555 = vmul.f32 %v418, %v5531
        %v5580 = vrot.slane %v5532, 4
        %v5581 = vrot.slane %v5533, 4
        %v5582 = vsel %vm897, %v5580, %v5581
        %v5583 = vrot.slane %v5534, 4
        %v5584 = vsel %vm897, %v5581, %v5583
        %v5585 = vrot.slane %v5535, 4
        %v5586 = vrot.slane %v5536, 4
        %v5587 = vsel %vm897, %v5585, %v5586
        %v5588 = vrot.slane %v5537, 4
        %v5589 = vsel %vm897, %v5586, %v5588
        %v5590 = vrot.slane %v5538, 4
        %v5591 = vrot.slane %v5539, 4
        %v5592 = vsel %vm897, %v5590, %v5591
        %v5593 = vrot.slane %v5540, 4
        %v5594 = vsel %vm897, %v5591, %v5593
        %v5595 = vrot.slane %v5541, 4
        %v5596 = vrot.slane %v5542, 4
        %v5597 = vsel %vm897, %v5595, %v5596
        %v5598 = vrot.slane %v5543, 4
        %v5599 = vsel %vm897, %v5596, %v5598
        %v5600 = vrot.slane %v5544, 4
        %v5601 = vrot.slane %v5545, 4
        %v5602 = vsel %vm897, %v5600, %v5601
        %v5603 = vrot.slane %v5546, 4
        %v5604 = vsel %vm897, %v5601, %v5603
        %v5605 = vrot.slane %v5547, 4
        %v5606 = vrot.slane %v5548, 4
        %v5607 = vsel %vm897, %v5605, %v5606
        %v5608 = vrot.slane %v5549, 4
        %v5609 = vsel %vm897, %v5606, %v5608
        %v5610 = vrot.slane %v5550, 4
        %v5611 = vrot.slane %v5551, 4
        %v5612 = vsel %vm897, %v5610, %v5611
        %v5613 = vrot.slane %v5552, 4
        %v5614 = vsel %vm897, %v5611, %v5613
        %v5615 = vrot.slane %v5553, 4
        %v5616 = vrot.slane %v5554, 4
        %v5617 = vsel %vm897, %v5615, %v5616
        %v5618 = vrot.slane %v5555, 4
        %v5619 = vsel %vm897, %v5616, %v5618
        %v5636 = vadd.f32 %v5512, %v5582
        %v5637 = vadd.f32 %v5513, %v5584
        %v5638 = vadd.f32 %v5514, %v5587
        %v5639 = vadd.f32 %v5515, %v5589
        %v5640 = vadd.f32 %v5516, %v5592
        %v5641 = vadd.f32 %v5517, %v5594
        %v5642 = vadd.f32 %v5518, %v5597
        %v5643 = vadd.f32 %v5519, %v5599
        %v5644 = vadd.f32 %v5520, %v5602
        %v5645 = vadd.f32 %v5521, %v5604
        %v5646 = vadd.f32 %v5522, %v5607
        %v5647 = vadd.f32 %v5523, %v5609
        %v5648 = vadd.f32 %v5524, %v5612
        %v5649 = vadd.f32 %v5525, %v5614
        %v5650 = vadd.f32 %v5526, %v5617
        %v5651 = vadd.f32 %v5527, %v5619
        %v5652 = vlaneseq
        %v5653 = vshrl.u32 %v5652, 7
        %v5654 = vsub.s32 7, %v5653
        %v5655 = vrot.slane %v424, %v5654
        %v5656 = vmul.f32 %v395, %v5655
        %v5657 = vmul.f32 %v396, %v5655
        %v5658 = vmul.f32 %v397, %v5655
        %v5659 = vmul.f32 %v398, %v5655
        %v5660 = vmul.f32 %v399, %v5655
        %v5661 = vmul.f32 %v400, %v5655
        %v5662 = vmul.f32 %v401, %v5655
        %v5663 = vmul.f32 %v402, %v5655
        %v5664 = vmul.f32 %v403, %v5655
        %v5665 = vmul.f32 %v404, %v5655
        %v5666 = vmul.f32 %v405, %v5655
        %v5667 = vmul.f32 %v406, %v5655
        %v5668 = vmul.f32 %v407, %v5655
        %v5669 = vmul.f32 %v408, %v5655
        %v5670 = vmul.f32 %v409, %v5655
        %v5671 = vmul.f32 %v410, %v5655
        %v5672 = vmul.f32 %v411, %v5655
        %v5673 = vmul.f32 %v412, %v5655
        %v5674 = vmul.f32 %v413, %v5655
        %v5675 = vmul.f32 %v414, %v5655
        %v5676 = vmul.f32 %v415, %v5655
        %v5677 = vmul.f32 %v416, %v5655
        %v5678 = vmul.f32 %v417, %v5655
        %v5679 = vmul.f32 %v418, %v5655
        %v5704 = vrot.slane %v5656, 5
        %v5705 = vrot.slane %v5657, 5
        %v5706 = vsel %vm1022, %v5704, %v5705
        %v5707 = vrot.slane %v5658, 5
        %v5708 = vsel %vm1022, %v5705, %v5707
        %v5709 = vrot.slane %v5659, 5
        %v5710 = vrot.slane %v5660, 5
        %v5711 = vsel %vm1022, %v5709, %v5710
        %v5712 = vrot.slane %v5661, 5
        %v5713 = vsel %vm1022, %v5710, %v5712
        %v5714 = vrot.slane %v5662, 5
        %v5715 = vrot.slane %v5663, 5
        %v5716 = vsel %vm1022, %v5714, %v5715
        %v5717 = vrot.slane %v5664, 5
        %v5718 = vsel %vm1022, %v5715, %v5717
        %v5719 = vrot.slane %v5665, 5
        %v5720 = vrot.slane %v5666, 5
        %v5721 = vsel %vm1022, %v5719, %v5720
        %v5722 = vrot.slane %v5667, 5
        %v5723 = vsel %vm1022, %v5720, %v5722
        %v5724 = vrot.slane %v5668, 5
        %v5725 = vrot.slane %v5669, 5
        %v5726 = vsel %vm1022, %v5724, %v5725
        %v5727 = vrot.slane %v5670, 5
        %v5728 = vsel %vm1022, %v5725, %v5727
        %v5729 = vrot.slane %v5671, 5
        %v5730 = vrot.slane %v5672, 5
        %v5731 = vsel %vm1022, %v5729, %v5730
        %v5732 = vrot.slane %v5673, 5
        %v5733 = vsel %vm1022, %v5730, %v5732
        %v5734 = vrot.slane %v5674, 5
        %v5735 = vrot.slane %v5675, 5
        %v5736 = vsel %vm1022, %v5734, %v5735
        %v5737 = vrot.slane %v5676, 5
        %v5738 = vsel %vm1022, %v5735, %v5737
        %v5739 = vrot.slane %v5677, 5
        %v5740 = vrot.slane %v5678, 5
        %v5741 = vsel %vm1022, %v5739, %v5740
        %v5742 = vrot.slane %v5679, 5
        %v5743 = vsel %vm1022, %v5740, %v5742
        %v5760 = vadd.f32 %v5636, %v5706
        %v5761 = vadd.f32 %v5637, %v5708
        %v5762 = vadd.f32 %v5638, %v5711
        %v5763 = vadd.f32 %v5639, %v5713
        %v5764 = vadd.f32 %v5640, %v5716
        %v5765 = vadd.f32 %v5641, %v5718
        %v5766 = vadd.f32 %v5642, %v5721
        %v5767 = vadd.f32 %v5643, %v5723
        %v5768 = vadd.f32 %v5644, %v5726
        %v5769 = vadd.f32 %v5645, %v5728
        %v5770 = vadd.f32 %v5646, %v5731
        %v5771 = vadd.f32 %v5647, %v5733
        %v5772 = vadd.f32 %v5648, %v5736
        %v5773 = vadd.f32 %v5649, %v5738
        %v5774 = vadd.f32 %v5650, %v5741
        %v5775 = vadd.f32 %v5651, %v5743
        %v5776 = vlaneseq
        %v5777 = vshrl.u32 %v5776, 7
        %v5778 = vsub.s32 0, %v5777
        %v5779 = vrot.slane %v425, %v5778
        %v5780 = vmul.f32 %v395, %v5779
        %v5781 = vmul.f32 %v396, %v5779
        %v5782 = vmul.f32 %v397, %v5779
        %v5783 = vmul.f32 %v398, %v5779
        %v5784 = vmul.f32 %v399, %v5779
        %v5785 = vmul.f32 %v400, %v5779
        %v5786 = vmul.f32 %v401, %v5779
        %v5787 = vmul.f32 %v402, %v5779
        %v5788 = vmul.f32 %v403, %v5779
        %v5789 = vmul.f32 %v404, %v5779
        %v5790 = vmul.f32 %v405, %v5779
        %v5791 = vmul.f32 %v406, %v5779
        %v5792 = vmul.f32 %v407, %v5779
        %v5793 = vmul.f32 %v408, %v5779
        %v5794 = vmul.f32 %v409, %v5779
        %v5795 = vmul.f32 %v410, %v5779
        %v5796 = vmul.f32 %v411, %v5779
        %v5797 = vmul.f32 %v412, %v5779
        %v5798 = vmul.f32 %v413, %v5779
        %v5799 = vmul.f32 %v414, %v5779
        %v5800 = vmul.f32 %v415, %v5779
        %v5801 = vmul.f32 %v416, %v5779
        %v5802 = vmul.f32 %v417, %v5779
        %v5803 = vmul.f32 %v418, %v5779
        %v5828 = vrot.slane %v5780, 6
        %v5829 = vrot.slane %v5781, 6
        %v5830 = vsel %vm1147, %v5828, %v5829
        %v5831 = vrot.slane %v5782, 6
        %v5832 = vsel %vm1147, %v5829, %v5831
        %v5833 = vrot.slane %v5783, 6
        %v5834 = vrot.slane %v5784, 6
        %v5835 = vsel %vm1147, %v5833, %v5834
        %v5836 = vrot.slane %v5785, 6
        %v5837 = vsel %vm1147, %v5834, %v5836
        %v5838 = vrot.slane %v5786, 6
        %v5839 = vrot.slane %v5787, 6
        %v5840 = vsel %vm1147, %v5838, %v5839
        %v5841 = vrot.slane %v5788, 6
        %v5842 = vsel %vm1147, %v5839, %v5841
        %v5843 = vrot.slane %v5789, 6
        %v5844 = vrot.slane %v5790, 6
        %v5845 = vsel %vm1147, %v5843, %v5844
        %v5846 = vrot.slane %v5791, 6
        %v5847 = vsel %vm1147, %v5844, %v5846
        %v5848 = vrot.slane %v5792, 6
        %v5849 = vrot.slane %v5793, 6
        %v5850 = vsel %vm1147, %v5848, %v5849
        %v5851 = vrot.slane %v5794, 6
        %v5852 = vsel %vm1147, %v5849, %v5851
        %v5853 = vrot.slane %v5795, 6
        %v5854 = vrot.slane %v5796, 6
        %v5855 = vsel %vm1147, %v5853, %v5854
        %v5856 = vrot.slane %v5797, 6
        %v5857 = vsel %vm1147, %v5854, %v5856
        %v5858 = vrot.slane %v5798, 6
        %v5859 = vrot.slane %v5799, 6
        %v5860 = vsel %vm1147, %v5858, %v5859
        %v5861 = vrot.slane %v5800, 6
        %v5862 = vsel %vm1147, %v5859, %v5861
        %v5863 = vrot.slane %v5801, 6
        %v5864 = vrot.slane %v5802, 6
        %v5865 = vsel %vm1147, %v5863, %v5864
        %v5866 = vrot.slane %v5803, 6
        %v5867 = vsel %vm1147, %v5864, %v5866
        %v5884 = vadd.f32 %v5760, %v5830
        %v5885 = vadd.f32 %v5761, %v5832
        %v5886 = vadd.f32 %v5762, %v5835
        %v5887 = vadd.f32 %v5763, %v5837
        %v5888 = vadd.f32 %v5764, %v5840
        %v5889 = vadd.f32 %v5765, %v5842
        %v5890 = vadd.f32 %v5766, %v5845
        %v5891 = vadd.f32 %v5767, %v5847
        %v5892 = vadd.f32 %v5768, %v5850
        %v5893 = vadd.f32 %v5769, %v5852
        %v5894 = vadd.f32 %v5770, %v5855
        %v5895 = vadd.f32 %v5771, %v5857
        %v5896 = vadd.f32 %v5772, %v5860
        %v5897 = vadd.f32 %v5773, %v5862
        %v5898 = vadd.f32 %v5774, %v5865
        %v5899 = vadd.f32 %v5775, %v5867
        %5900 = vadd.xlane.f32.xlu0 %v5884
        %v5901 = vpop.xlane.xlu0 %5900
        %5902 = vadd.xlane.f32.xlu0 %v5885
        %v5903 = vpop.xlane.xlu0 %5902
        %5904 = vadd.xlane.f32.xlu0 %v5886
        %v5905 = vpop.xlane.xlu0 %5904
        %5906 = vadd.xlane.f32.xlu0 %v5887
        %v5907 = vpop.xlane.xlu0 %5906
        %5908 = vadd.xlane.f32.xlu0 %v5888
        %v5909 = vpop.xlane.xlu0 %5908
        %5910 = vadd.xlane.f32.xlu0 %v5889
        %v5911 = vpop.xlane.xlu0 %5910
        %5912 = vadd.xlane.f32.xlu0 %v5890
        %v5913 = vpop.xlane.xlu0 %5912
        %5914 = vadd.xlane.f32.xlu0 %v5891
        %v5915 = vpop.xlane.xlu0 %5914
        %5916 = vadd.xlane.f32.xlu0 %v5892
        %v5917 = vpop.xlane.xlu0 %5916
        %5918 = vadd.xlane.f32.xlu0 %v5893
        %v5919 = vpop.xlane.xlu0 %5918
        %5920 = vadd.xlane.f32.xlu0 %v5894
        %v5921 = vpop.xlane.xlu0 %5920
        %5922 = vadd.xlane.f32.xlu0 %v5895
        %v5923 = vpop.xlane.xlu0 %5922
        %5924 = vadd.xlane.f32.xlu0 %v5896
        %v5925 = vpop.xlane.xlu0 %5924
        %5926 = vadd.xlane.f32.xlu0 %v5897
        %v5927 = vpop.xlane.xlu0 %5926
        %5928 = vadd.xlane.f32.xlu0 %v5898
        %v5929 = vpop.xlane.xlu0 %5928
        %5930 = vadd.xlane.f32.xlu0 %v5899
        %v5931 = vpop.xlane.xlu0 %5930
        %v5932 = vmul.f32 %v5901, 0.125
        %v5933 = vmul.f32 %v5903, 0.125
        %v5934 = vmul.f32 %v5905, 0.125
        %v5935 = vmul.f32 %v5907, 0.125
        %v5936 = vmul.f32 %v5909, 0.125
        %v5937 = vmul.f32 %v5911, 0.125
        %v5938 = vmul.f32 %v5913, 0.125
        %v5939 = vmul.f32 %v5915, 0.125
        %v5940 = vmul.f32 %v5917, 0.125
        %v5941 = vmul.f32 %v5919, 0.125
        %v5942 = vmul.f32 %v5921, 0.125
        %v5943 = vmul.f32 %v5923, 0.125
        %v5944 = vmul.f32 %v5925, 0.125
        %v5945 = vmul.f32 %v5927, 0.125
        %v5946 = vmul.f32 %v5929, 0.125
        %v5947 = vmul.f32 %v5931, 0.125
        %v5948 = vmul.f32 %v5884, %v5884
        %v5949 = vmul.f32 %v5885, %v5885
        %v5950 = vmul.f32 %v5886, %v5886
        %v5951 = vmul.f32 %v5887, %v5887
        %v5952 = vmul.f32 %v5888, %v5888
        %v5953 = vmul.f32 %v5889, %v5889
        %v5954 = vmul.f32 %v5890, %v5890
        %v5955 = vmul.f32 %v5891, %v5891
        %v5956 = vmul.f32 %v5892, %v5892
        %v5957 = vmul.f32 %v5893, %v5893
        %v5958 = vmul.f32 %v5894, %v5894
        %v5959 = vmul.f32 %v5895, %v5895
        %v5960 = vmul.f32 %v5896, %v5896
        %v5961 = vmul.f32 %v5897, %v5897
        %v5962 = vmul.f32 %v5898, %v5898
        %v5963 = vmul.f32 %v5899, %v5899
        %5964 = vadd.xlane.f32.xlu0 %v5948
        %v5965 = vpop.xlane.xlu0 %5964
        %5966 = vadd.xlane.f32.xlu0 %v5949
        %v5967 = vpop.xlane.xlu0 %5966
        %5968 = vadd.xlane.f32.xlu0 %v5950
        %v5969 = vpop.xlane.xlu0 %5968
        %5970 = vadd.xlane.f32.xlu0 %v5951
        %v5971 = vpop.xlane.xlu0 %5970
        %5972 = vadd.xlane.f32.xlu0 %v5952
        %v5973 = vpop.xlane.xlu0 %5972
        %5974 = vadd.xlane.f32.xlu0 %v5953
        %v5975 = vpop.xlane.xlu0 %5974
        %5976 = vadd.xlane.f32.xlu0 %v5954
        %v5977 = vpop.xlane.xlu0 %5976
        %5978 = vadd.xlane.f32.xlu0 %v5955
        %v5979 = vpop.xlane.xlu0 %5978
        %5980 = vadd.xlane.f32.xlu0 %v5956
        %v5981 = vpop.xlane.xlu0 %5980
        %5982 = vadd.xlane.f32.xlu0 %v5957
        %v5983 = vpop.xlane.xlu0 %5982
        %5984 = vadd.xlane.f32.xlu0 %v5958
        %v5985 = vpop.xlane.xlu0 %5984
        %5986 = vadd.xlane.f32.xlu0 %v5959
        %v5987 = vpop.xlane.xlu0 %5986
        %5988 = vadd.xlane.f32.xlu0 %v5960
        %v5989 = vpop.xlane.xlu0 %5988
        %5990 = vadd.xlane.f32.xlu0 %v5961
        %v5991 = vpop.xlane.xlu0 %5990
        %5992 = vadd.xlane.f32.xlu0 %v5962
        %v5993 = vpop.xlane.xlu0 %5992
        %5994 = vadd.xlane.f32.xlu0 %v5963
        %v5995 = vpop.xlane.xlu0 %5994
        %v5996 = vmul.f32 %v5965, 0.125
        %v5997 = vmul.f32 %v5967, 0.125
        %v5998 = vmul.f32 %v5969, 0.125
        %v5999 = vmul.f32 %v5971, 0.125
        %v6000 = vmul.f32 %v5973, 0.125
        %v6001 = vmul.f32 %v5975, 0.125
        %v6002 = vmul.f32 %v5977, 0.125
        %v6003 = vmul.f32 %v5979, 0.125
        %v6004 = vmul.f32 %v5981, 0.125
        %v6005 = vmul.f32 %v5983, 0.125
        %v6006 = vmul.f32 %v5985, 0.125
        %v6007 = vmul.f32 %v5987, 0.125
        %v6008 = vmul.f32 %v5989, 0.125
        %v6009 = vmul.f32 %v5991, 0.125
        %v6010 = vmul.f32 %v5993, 0.125
        %v6011 = vmul.f32 %v5995, 0.125
        %v6012 = vmul.f32 %v5932, %v5932
        %v6013 = vmul.f32 %v5933, %v5933
        %v6014 = vmul.f32 %v5934, %v5934
        %v6015 = vmul.f32 %v5935, %v5935
        %v6016 = vmul.f32 %v5936, %v5936
        %v6017 = vmul.f32 %v5937, %v5937
        %v6018 = vmul.f32 %v5938, %v5938
        %v6019 = vmul.f32 %v5939, %v5939
        %v6020 = vmul.f32 %v5940, %v5940
        %v6021 = vmul.f32 %v5941, %v5941
        %v6022 = vmul.f32 %v5942, %v5942
        %v6023 = vmul.f32 %v5943, %v5943
        %v6024 = vmul.f32 %v5944, %v5944
        %v6025 = vmul.f32 %v5945, %v5945
        %v6026 = vmul.f32 %v5946, %v5946
        %v6027 = vmul.f32 %v5947, %v5947
        %v6028 = vsub.f32 %v5996, %v6012
        %v6029 = vsub.f32 %v5997, %v6013
        %v6030 = vsub.f32 %v5998, %v6014
        %v6031 = vsub.f32 %v5999, %v6015
        %v6032 = vsub.f32 %v6000, %v6016
        %v6033 = vsub.f32 %v6001, %v6017
        %v6034 = vsub.f32 %v6002, %v6018
        %v6035 = vsub.f32 %v6003, %v6019
        %v6036 = vsub.f32 %v6004, %v6020
        %v6037 = vsub.f32 %v6005, %v6021
        %v6038 = vsub.f32 %v6006, %v6022
        %v6039 = vsub.f32 %v6007, %v6023
        %v6040 = vsub.f32 %v6008, %v6024
        %v6041 = vsub.f32 %v6009, %v6025
        %v6042 = vsub.f32 %v6010, %v6026
        %v6043 = vsub.f32 %v6011, %v6027
        %v6044 = vsub.f32 %v5884, %v5932
        %v6045 = vsub.f32 %v5885, %v5933
        %v6046 = vsub.f32 %v5886, %v5934
        %v6047 = vsub.f32 %v5887, %v5935
        %v6048 = vsub.f32 %v5888, %v5936
        %v6049 = vsub.f32 %v5889, %v5937
        %v6050 = vsub.f32 %v5890, %v5938
        %v6051 = vsub.f32 %v5891, %v5939
        %v6052 = vsub.f32 %v5892, %v5940
        %v6053 = vsub.f32 %v5893, %v5941
        %v6054 = vsub.f32 %v5894, %v5942
        %v6055 = vsub.f32 %v5895, %v5943
        %v6056 = vsub.f32 %v5896, %v5944
        %v6057 = vsub.f32 %v5897, %v5945
        %v6058 = vsub.f32 %v5898, %v5946
        %v6059 = vsub.f32 %v5899, %v5947
        %v6060 = vadd.f32 %v6028, 1e-06
        %v6061 = vadd.f32 %v6029, 1e-06
        %v6062 = vadd.f32 %v6030, 1e-06
        %v6063 = vadd.f32 %v6031, 1e-06
        %v6064 = vadd.f32 %v6032, 1e-06
        %v6065 = vadd.f32 %v6033, 1e-06
        %v6066 = vadd.f32 %v6034, 1e-06
        %v6067 = vadd.f32 %v6035, 1e-06
        %v6068 = vadd.f32 %v6036, 1e-06
        %v6069 = vadd.f32 %v6037, 1e-06
        %v6070 = vadd.f32 %v6038, 1e-06
        %v6071 = vadd.f32 %v6039, 1e-06
        %v6072 = vadd.f32 %v6040, 1e-06
        %v6073 = vadd.f32 %v6041, 1e-06
        %v6074 = vadd.f32 %v6042, 1e-06
        %v6075 = vadd.f32 %v6043, 1e-06
        %v6076 = vrsqrt.pop %v6060
        %v6077 = vrsqrt.pop %v6061
        %v6078 = vrsqrt.pop %v6062
        %v6079 = vrsqrt.pop %v6063
        %v6080 = vrsqrt.pop %v6064
        %v6081 = vrsqrt.pop %v6065
        %v6082 = vrsqrt.pop %v6066
        %v6083 = vrsqrt.pop %v6067
        %v6084 = vrsqrt.pop %v6068
        %v6085 = vrsqrt.pop %v6069
        %v6086 = vrsqrt.pop %v6070
        %v6087 = vrsqrt.pop %v6071
        %v6088 = vrsqrt.pop %v6072
        %v6089 = vrsqrt.pop %v6073
        %v6090 = vrsqrt.pop %v6074
        %v6091 = vrsqrt.pop %v6075
        %v6092 = vmul.f32 %v6044, %v6076
        %v6093 = vmul.f32 %v6045, %v6077
        %v6094 = vmul.f32 %v6046, %v6078
        %v6095 = vmul.f32 %v6047, %v6079
        %v6096 = vmul.f32 %v6048, %v6080
        %v6097 = vmul.f32 %v6049, %v6081
        %v6098 = vmul.f32 %v6050, %v6082
        %v6099 = vmul.f32 %v6051, %v6083
        %v6100 = vmul.f32 %v6052, %v6084
        %v6101 = vmul.f32 %v6053, %v6085
        %v6102 = vmul.f32 %v6054, %v6086
        %v6103 = vmul.f32 %v6055, %v6087
        %v6104 = vmul.f32 %v6056, %v6088
        %v6105 = vmul.f32 %v6057, %v6089
        %v6106 = vmul.f32 %v6058, %v6090
        %v6107 = vmul.f32 %v6059, %v6091
        %v6108 = vld [vmem:[%s3] sm:$0x1]
        %v6110 = vlaneseq
        %v6111 = vshrl.u32 %v6110, 7
        %v6112 = vsub.s32 0, %v6111
        %v6113 = vrot.slane %v6108, %v6112
        %v6115 = vmul.f32 %v6092, %v6113
        %v6116 = vmul.f32 %v6093, %v6113
        %v6117 = vmul.f32 %v6094, %v6113
        %v6118 = vmul.f32 %v6095, %v6113
        %v6119 = vmul.f32 %v6096, %v6113
        %v6120 = vmul.f32 %v6097, %v6113
        %v6121 = vmul.f32 %v6098, %v6113
        %v6122 = vmul.f32 %v6099, %v6113
        %v6123 = vmul.f32 %v6100, %v6113
        %v6124 = vmul.f32 %v6101, %v6113
        %v6125 = vmul.f32 %v6102, %v6113
        %v6126 = vmul.f32 %v6103, %v6113
        %v6127 = vmul.f32 %v6104, %v6113
        %v6128 = vmul.f32 %v6105, %v6113
        %v6129 = vmul.f32 %v6106, %v6113
        %v6130 = vmul.f32 %v6107, %v6113
        %v6131 = vld [vmem:[%s4] sm:$0x1]
        %v6133 = vlaneseq
        %v6134 = vshrl.u32 %v6133, 7
        %v6135 = vsub.s32 0, %v6134
        %v6136 = vrot.slane %v6131, %v6135
        %v6138 = vadd.f32 %v6115, %v6136
        %v6139 = vadd.f32 %v6116, %v6136
        %v6140 = vadd.f32 %v6117, %v6136
        %v6141 = vadd.f32 %v6118, %v6136
        %v6142 = vadd.f32 %v6119, %v6136
        %v6143 = vadd.f32 %v6120, %v6136
        %v6144 = vadd.f32 %v6121, %v6136
        %v6145 = vadd.f32 %v6122, %v6136
        %v6146 = vadd.f32 %v6123, %v6136
        %v6147 = vadd.f32 %v6124, %v6136
        %v6148 = vadd.f32 %v6125, %v6136
        %v6149 = vadd.f32 %v6126, %v6136
        %v6150 = vadd.f32 %v6127, %v6136
        %v6151 = vadd.f32 %v6128, %v6136
        %v6152 = vadd.f32 %v6129, %v6136
        %v6153 = vadd.f32 %v6130, %v6136
        %v6154 = vpack.c.bf16 %v6139, %v6138
        %v6155 = vpack.c.bf16 %v6141, %v6140
        %v6156 = vpack.c.bf16 %v6143, %v6142
        %v6157 = vpack.c.bf16 %v6145, %v6144
        %v6158 = vpack.c.bf16 %v6147, %v6146
        %v6159 = vpack.c.bf16 %v6149, %v6148
        %v6160 = vpack.c.bf16 %v6151, %v6150
        %v6161 = vpack.c.bf16 %v6153, %v6152
        %v6162 = vld [vmem:[%s5] sm:$0xf]
        %v6163 = vld [vmem:[%s5 + $0x4] sm:$0xf]
        %v6164 = vld [vmem:[%s5 + $0x8] sm:$0xf]
        %v6165 = vld [vmem:[%s5 + $0xc] sm:$0xf]
        %v6166 = vld [vmem:[%s5 + $0x10] sm:$0xf]
        %v6167 = vld [vmem:[%s5 + $0x14] sm:$0xf]
        %v6168 = vld [vmem:[%s5 + $0x18] sm:$0xf]
        %v6169 = vld [vmem:[%s5 + $0x1c] sm:$0xf]
        %v6170 = vld [vmem:[%s5 + $0x20] sm:$0xf]
        %v6171 = vld [vmem:[%s5 + $0x24] sm:$0xf]
        %v6172 = vld [vmem:[%s5 + $0x28] sm:$0xf]
        %v6173 = vld [vmem:[%s5 + $0x2c] sm:$0xf]
        %v6174 = vld [vmem:[%s5 + $0x30] sm:$0xf]
        %v6175 = vld [vmem:[%s5 + $0x34] sm:$0xf]
        %v6176 = vld [vmem:[%s5 + $0x38] sm:$0xf]
        %v6177 = vld [vmem:[%s5 + $0x3c] sm:$0xf]
        %v6178 = vld [vmem:[%s6] sm:$0x1]
        %v6180 = vlaneseq
        %v6181 = vshrl.u32 %v6180, 7
        %v6182 = vsub.s32 0, %v6181
        %v6183 = vrot.slane %v6178, %v6182
        %v6201 = vunpack.c.l.b16 %v6162
        %v6202 = vunpack.c.l.b16 %v6163
        %v6203 = vunpack.c.l.b16 %v6164
        %v6204 = vunpack.c.l.b16 %v6165
        %v6205 = vunpack.c.l.b16 %v6166
        %v6206 = vunpack.c.l.b16 %v6167
        %v6207 = vunpack.c.l.b16 %v6168
        %v6208 = vunpack.c.l.b16 %v6169
        %v6209 = vunpack.c.l.b16 %v6170
        %v6210 = vunpack.c.l.b16 %v6171
        %v6211 = vunpack.c.l.b16 %v6172
        %v6212 = vunpack.c.l.b16 %v6173
        %v6213 = vunpack.c.l.b16 %v6174
        %v6214 = vunpack.c.l.b16 %v6175
        %v6215 = vunpack.c.l.b16 %v6176
        %v6216 = vunpack.c.l.b16 %v6177
        %v6217 = vpack.c.b16 %v6202, %v6201
        %v6218 = vpack.c.b16 %v6204, %v6203
        %v6219 = vpack.c.b16 %v6206, %v6205
        %v6220 = vpack.c.b16 %v6208, %v6207
        %v6221 = vpack.c.b16 %v6210, %v6209
        %v6222 = vpack.c.b16 %v6212, %v6211
        %v6223 = vpack.c.b16 %v6214, %v6213
        %v6224 = vpack.c.b16 %v6216, %v6215
        %6233 = vmatprep.subr.bf16.mxu0 0
        %6234 = vmatpush1.bf16.msra.mxu0 %v6224
        %6235 = vmatprep.subr.bf16.mxu0 0
        %6236 = vmatpush1.bf16.msra.mxu0 %v6223
        %6237 = vmatprep.subr.bf16.mxu0 0
        %6238 = vmatpush1.bf16.msra.mxu0 %v6222
        %6239 = vmatprep.subr.bf16.mxu0 0
        %6240 = vmatpush1.bf16.msra.mxu0 %v6221
        %6241 = vmatprep.subr.bf16.mxu0 0
        %6242 = vmatpush1.bf16.msra.mxu0 %v6220
        %6243 = vmatprep.subr.bf16.mxu0 0
        %6244 = vmatpush1.bf16.msra.mxu0 %v6219
        %6245 = vmatprep.subr.bf16.mxu0 0
        %6246 = vmatpush1.bf16.msra.mxu0 %v6218
        %6247 = vmatprep.subr.bf16.mxu0 0
        %6248 = vmatpush1.bf16.msra.mxu0 %v6217
        %6249 = vmatprep.subr.bf16.mxu0 0
        %6250 = vmatpush2.bf16.msra.mxu0 0
        %6251 = vmatprep.subr.bf16.mxu0 0
        %6252 = vmatpush2.bf16.msra.mxu0 0
        %6253 = vmatprep.subr.bf16.mxu0 0
        %6254 = vmatpush2.bf16.msra.mxu0 0
        %6255 = vmatprep.subr.bf16.mxu0 0
        %6256 = vmatpush2.bf16.msra.mxu0 0
        %6257 = vmatprep.subr.bf16.mxu0 0
        %6258 = vmatpush2.bf16.msra.mxu0 0
        %6259 = vmatprep.subr.bf16.mxu0 0
        %6260 = vmatpush2.bf16.msra.mxu0 0
        %6261 = vmatprep.subr.bf16.mxu0 0
        %6262 = vmatpush2.bf16.msra.mxu0 0
        %6263 = vmatprep.subr.bf16.mxu0 0
        %6264 = vmatpush2.bf16.msra.mxu0 0
        %6265 = vmatprep.mubr.bf16.mxu0 0
        %6266 = vmatmul.mubr.bf16.gmra.mxu0 %v6154
        %v6267 = vpop.f32.mrf.mxu0
        %v6268 = vadd.f32 %v6183, %v6267
        %v6269 = vpop.f32.mrf.mxu0
        %v6270 = vpop.f32.mrf.mxu0
        %v6271 = vadd.f32 %v6183, %v6270
        %v6272 = vpop.f32.mrf.mxu0
        %6273 = vmatprep.mubr.bf16.mxu0 0
        %6274 = vmatmul.mubr.bf16.gmra.mxu0 %v6155
        %v6275 = vpop.f32.mrf.mxu0
        %v6276 = vadd.f32 %v6183, %v6275
        %v6277 = vpop.f32.mrf.mxu0
        %v6278 = vpop.f32.mrf.mxu0
        %v6279 = vadd.f32 %v6183, %v6278
        %v6280 = vpop.f32.mrf.mxu0
        %6281 = vmatprep.mubr.bf16.mxu0 0
        %6282 = vmatmul.mubr.bf16.gmra.mxu0 %v6156
        %v6283 = vpop.f32.mrf.mxu0
        %v6284 = vadd.f32 %v6183, %v6283
        %v6285 = vpop.f32.mrf.mxu0
        %v6286 = vpop.f32.mrf.mxu0
        %v6287 = vadd.f32 %v6183, %v6286
        %v6288 = vpop.f32.mrf.mxu0
        %6289 = vmatprep.mubr.bf16.mxu0 0
        %6290 = vmatmul.mubr.bf16.gmra.mxu0 %v6157
        %v6291 = vpop.f32.mrf.mxu0
        %v6292 = vadd.f32 %v6183, %v6291
        %v6293 = vpop.f32.mrf.mxu0
        %v6294 = vpop.f32.mrf.mxu0
        %v6295 = vadd.f32 %v6183, %v6294
        %v6296 = vpop.f32.mrf.mxu0
        %6297 = vmatprep.mubr.bf16.mxu0 0
        %6298 = vmatmul.mubr.bf16.gmra.mxu0 %v6158
        %v6299 = vpop.f32.mrf.mxu0
        %v6300 = vadd.f32 %v6183, %v6299
        %v6301 = vpop.f32.mrf.mxu0
        %v6302 = vpop.f32.mrf.mxu0
        %v6303 = vadd.f32 %v6183, %v6302
        %v6304 = vpop.f32.mrf.mxu0
        %6305 = vmatprep.mubr.bf16.mxu0 0
        %6306 = vmatmul.mubr.bf16.gmra.mxu0 %v6159
        %v6307 = vpop.f32.mrf.mxu0
        %v6308 = vadd.f32 %v6183, %v6307
        %v6309 = vpop.f32.mrf.mxu0
        %v6310 = vpop.f32.mrf.mxu0
        %v6311 = vadd.f32 %v6183, %v6310
        %v6312 = vpop.f32.mrf.mxu0
        %6313 = vmatprep.mubr.bf16.mxu0 0
        %6314 = vmatmul.mubr.bf16.gmra.mxu0 %v6160
        %v6315 = vpop.f32.mrf.mxu0
        %v6316 = vadd.f32 %v6183, %v6315
        %v6317 = vpop.f32.mrf.mxu0
        %v6318 = vpop.f32.mrf.mxu0
        %v6319 = vadd.f32 %v6183, %v6318
        %v6320 = vpop.f32.mrf.mxu0
        %6321 = vmatprep.mubr.bf16.mxu0 0
        %6322 = vmatmul.mubr.bf16.gmra.mxu0 %v6161
        %v6323 = vpop.f32.mrf.mxu0
        %v6324 = vadd.f32 %v6183, %v6323
        %v6325 = vpop.f32.mrf.mxu0
        %v6326 = vpop.f32.mrf.mxu0
        %v6327 = vadd.f32 %v6183, %v6326
        %v6328 = vpop.f32.mrf.mxu0
        %6329 = vdwg.mxu0
        %v6330 = vmul.f32 %v6268, 0.5
        %v6331 = vmul.f32 %v6271, 0.5
        %v6332 = vmul.f32 %v6276, 0.5
        %v6333 = vmul.f32 %v6279, 0.5
        %v6334 = vmul.f32 %v6284, 0.5
        %v6335 = vmul.f32 %v6287, 0.5
        %v6336 = vmul.f32 %v6292, 0.5
        %v6337 = vmul.f32 %v6295, 0.5
        %v6338 = vmul.f32 %v6300, 0.5
        %v6339 = vmul.f32 %v6303, 0.5
        %v6340 = vmul.f32 %v6308, 0.5
        %v6341 = vmul.f32 %v6311, 0.5
        %v6342 = vmul.f32 %v6316, 0.5
        %v6343 = vmul.f32 %v6319, 0.5
        %v6344 = vmul.f32 %v6324, 0.5
        %v6345 = vmul.f32 %v6327, 0.5
        %v6346 = vmul.f32 %v6268, 0.70710677
        %v6347 = vmul.f32 %v6271, 0.70710677
        %v6348 = vmul.f32 %v6276, 0.70710677
        %v6349 = vmul.f32 %v6279, 0.70710677
        %v6350 = vmul.f32 %v6284, 0.70710677
        %v6351 = vmul.f32 %v6287, 0.70710677
        %v6352 = vmul.f32 %v6292, 0.70710677
        %v6353 = vmul.f32 %v6295, 0.70710677
        %v6354 = vmul.f32 %v6300, 0.70710677
        %v6355 = vmul.f32 %v6303, 0.70710677
        %v6356 = vmul.f32 %v6308, 0.70710677
        %v6357 = vmul.f32 %v6311, 0.70710677
        %v6358 = vmul.f32 %v6316, 0.70710677
        %v6359 = vmul.f32 %v6319, 0.70710677
        %v6360 = vmul.f32 %v6324, 0.70710677
        %v6361 = vmul.f32 %v6327, 0.70710677
        %v6362 = verf.f32.pop %v6346
        %v6363 = verf.f32.pop %v6347
        %v6364 = verf.f32.pop %v6348
        %v6365 = verf.f32.pop %v6349
        %v6366 = verf.f32.pop %v6350
        %v6367 = verf.f32.pop %v6351
        %v6368 = verf.f32.pop %v6352
        %v6369 = verf.f32.pop %v6353
        %v6370 = verf.f32.pop %v6354
        %v6371 = verf.f32.pop %v6355
        %v6372 = verf.f32.pop %v6356
        %v6373 = verf.f32.pop %v6357
        %v6374 = verf.f32.pop %v6358
        %v6375 = verf.f32.pop %v6359
        %v6376 = verf.f32.pop %v6360
        %v6377 = verf.f32.pop %v6361
        %v6378 = vadd.f32 %v6362, 1.0
        %v6379 = vadd.f32 %v6363, 1.0
        %v6380 = vadd.f32 %v6364, 1.0
        %v6381 = vadd.f32 %v6365, 1.0
        %v6382 = vadd.f32 %v6366, 1.0
        %v6383 = vadd.f32 %v6367, 1.0
        %v6384 = vadd.f32 %v6368, 1.0
        %v6385 = vadd.f32 %v6369, 1.0
        %v6386 = vadd.f32 %v6370, 1.0
        %v6387 = vadd.f32 %v6371, 1.0
        %v6388 = vadd.f32 %v6372, 1.0
        %v6389 = vadd.f32 %v6373, 1.0
        %v6390 = vadd.f32 %v6374, 1.0
        %v6391 = vadd.f32 %v6375, 1.0
        %v6392 = vadd.f32 %v6376, 1.0
        %v6393 = vadd.f32 %v6377, 1.0
        %v6394 = vmul.f32 %v6330, %v6378
        %v6395 = vmul.f32 %v6331, %v6379
        %v6396 = vmul.f32 %v6332, %v6380
        %v6397 = vmul.f32 %v6333, %v6381
        %v6398 = vmul.f32 %v6334, %v6382
        %v6399 = vmul.f32 %v6335, %v6383
        %v6400 = vmul.f32 %v6336, %v6384
        %v6401 = vmul.f32 %v6337, %v6385
        %v6402 = vmul.f32 %v6338, %v6386
        %v6403 = vmul.f32 %v6339, %v6387
        %v6404 = vmul.f32 %v6340, %v6388
        %v6405 = vmul.f32 %v6341, %v6389
        %v6406 = vmul.f32 %v6342, %v6390
        %v6407 = vmul.f32 %v6343, %v6391
        %v6408 = vmul.f32 %v6344, %v6392
        %v6409 = vmul.f32 %v6345, %v6393
        %v6410 = vpack.c.bf16 %v6395, %v6394
        %v6411 = vpack.c.bf16 %v6397, %v6396
        %v6412 = vpack.c.bf16 %v6399, %v6398
        %v6413 = vpack.c.bf16 %v6401, %v6400
        %v6414 = vpack.c.bf16 %v6403, %v6402
        %v6415 = vpack.c.bf16 %v6405, %v6404
        %v6416 = vpack.c.bf16 %v6407, %v6406
        %v6417 = vpack.c.bf16 %v6409, %v6408
        %v6418 = vld [vmem:[%s7] sm:$0xf]
        %v6419 = vld [vmem:[%s7 + $0x4] sm:$0xf]
        %v6420 = vld [vmem:[%s7 + $0x8] sm:$0xf]
        %v6421 = vld [vmem:[%s7 + $0xc] sm:$0xf]
        %v6422 = vld [vmem:[%s7 + $0x10] sm:$0xf]
        %v6423 = vld [vmem:[%s7 + $0x14] sm:$0xf]
        %v6424 = vld [vmem:[%s7 + $0x18] sm:$0xf]
        %v6425 = vld [vmem:[%s7 + $0x1c] sm:$0xf]
        %v6426 = vld [vmem:[%s7 + $0x20] sm:$0xf]
        %v6427 = vld [vmem:[%s7 + $0x24] sm:$0xf]
        %v6428 = vld [vmem:[%s7 + $0x28] sm:$0xf]
        %v6429 = vld [vmem:[%s7 + $0x2c] sm:$0xf]
        %v6430 = vld [vmem:[%s7 + $0x30] sm:$0xf]
        %v6431 = vld [vmem:[%s7 + $0x34] sm:$0xf]
        %v6432 = vld [vmem:[%s7 + $0x38] sm:$0xf]
        %v6433 = vld [vmem:[%s7 + $0x3c] sm:$0xf]
        %v6434 = vld [vmem:[%s8] sm:$0x1]
        %v6436 = vlaneseq
        %v6437 = vshrl.u32 %v6436, 7
        %v6438 = vsub.s32 0, %v6437
        %v6439 = vrot.slane %v6434, %v6438
        %v6457 = vunpack.c.l.b16 %v6418
        %v6458 = vunpack.c.l.b16 %v6419
        %v6459 = vunpack.c.l.b16 %v6420
        %v6460 = vunpack.c.l.b16 %v6421
        %v6461 = vunpack.c.l.b16 %v6422
        %v6462 = vunpack.c.l.b16 %v6423
        %v6463 = vunpack.c.l.b16 %v6424
        %v6464 = vunpack.c.l.b16 %v6425
        %v6465 = vunpack.c.l.b16 %v6426
        %v6466 = vunpack.c.l.b16 %v6427
        %v6467 = vunpack.c.l.b16 %v6428
        %v6468 = vunpack.c.l.b16 %v6429
        %v6469 = vunpack.c.l.b16 %v6430
        %v6470 = vunpack.c.l.b16 %v6431
        %v6471 = vunpack.c.l.b16 %v6432
        %v6472 = vunpack.c.l.b16 %v6433
        %v6473 = vpack.c.b16 %v6458, %v6457
        %v6474 = vpack.c.b16 %v6460, %v6459
        %v6475 = vpack.c.b16 %v6462, %v6461
        %v6476 = vpack.c.b16 %v6464, %v6463
        %v6477 = vpack.c.b16 %v6466, %v6465
        %v6478 = vpack.c.b16 %v6468, %v6467
        %v6479 = vpack.c.b16 %v6470, %v6469
        %v6480 = vpack.c.b16 %v6472, %v6471
        %6489 = vmatprep.subr.bf16.mxu0 0
        %6490 = vmatpush1.bf16.msra.mxu0 %v6480
        %6491 = vmatprep.subr.bf16.mxu0 0
        %6492 = vmatpush1.bf16.msra.mxu0 %v6479
        %6493 = vmatprep.subr.bf16.mxu0 0
        %6494 = vmatpush1.bf16.msra.mxu0 %v6478
        %6495 = vmatprep.subr.bf16.mxu0 0
        %6496 = vmatpush1.bf16.msra.mxu0 %v6477
        %6497 = vmatprep.subr.bf16.mxu0 0
        %6498 = vmatpush1.bf16.msra.mxu0 %v6476
        %6499 = vmatprep.subr.bf16.mxu0 0
        %6500 = vmatpush1.bf16.msra.mxu0 %v6475
        %6501 = vmatprep.subr.bf16.mxu0 0
        %6502 = vmatpush1.bf16.msra.mxu0 %v6474
        %6503 = vmatprep.subr.bf16.mxu0 0
        %6504 = vmatpush1.bf16.msra.mxu0 %v6473
        %6505 = vmatprep.subr.bf16.mxu0 0
        %6506 = vmatpush2.bf16.msra.mxu0 0
        %6507 = vmatprep.subr.bf16.mxu0 0
        %6508 = vmatpush2.bf16.msra.mxu0 0
        %6509 = vmatprep.subr.bf16.mxu0 0
        %6510 = vmatpush2.bf16.msra.mxu0 0
        %6511 = vmatprep.subr.bf16.mxu0 0
        %6512 = vmatpush2.bf16.msra.mxu0 0
        %6513 = vmatprep.subr.bf16.mxu0 0
        %6514 = vmatpush2.bf16.msra.mxu0 0
        %6515 = vmatprep.subr.bf16.mxu0 0
        %6516 = vmatpush2.bf16.msra.mxu0 0
        %6517 = vmatprep.subr.bf16.mxu0 0
        %6518 = vmatpush2.bf16.msra.mxu0 0
        %6519 = vmatprep.subr.bf16.mxu0 0
        %6520 = vmatpush2.bf16.msra.mxu0 0
        %6521 = vmatprep.mubr.bf16.mxu0 0
        %6522 = vmatmul.mubr.bf16.gmra.mxu0 %v6410
        %v6523 = vpop.f32.mrf.mxu0
        %v6524 = vadd.f32 %v6439, %v6523
        %v6525 = vpop.f32.mrf.mxu0
        %v6526 = vpop.f32.mrf.mxu0
        %v6527 = vadd.f32 %v6439, %v6526
        %v6528 = vpop.f32.mrf.mxu0
        %6529 = vmatprep.mubr.bf16.mxu0 0
        %6530 = vmatmul.mubr.bf16.gmra.mxu0 %v6411
        %v6531 = vpop.f32.mrf.mxu0
        %v6532 = vadd.f32 %v6439, %v6531
        %v6533 = vpop.f32.mrf.mxu0
        %v6534 = vpop.f32.mrf.mxu0
        %v6535 = vadd.f32 %v6439, %v6534
        %v6536 = vpop.f32.mrf.mxu0
        %6537 = vmatprep.mubr.bf16.mxu0 0
        %6538 = vmatmul.mubr.bf16.gmra.mxu0 %v6412
        %v6539 = vpop.f32.mrf.mxu0
        %v6540 = vadd.f32 %v6439, %v6539
        %v6541 = vpop.f32.mrf.mxu0
        %v6542 = vpop.f32.mrf.mxu0
        %v6543 = vadd.f32 %v6439, %v6542
        %v6544 = vpop.f32.mrf.mxu0
        %6545 = vmatprep.mubr.bf16.mxu0 0
        %6546 = vmatmul.mubr.bf16.gmra.mxu0 %v6413
        %v6547 = vpop.f32.mrf.mxu0
        %v6548 = vadd.f32 %v6439, %v6547
        %v6549 = vpop.f32.mrf.mxu0
        %v6550 = vpop.f32.mrf.mxu0
        %v6551 = vadd.f32 %v6439, %v6550
        %v6552 = vpop.f32.mrf.mxu0
        %6553 = vmatprep.mubr.bf16.mxu0 0
        %6554 = vmatmul.mubr.bf16.gmra.mxu0 %v6414
        %v6555 = vpop.f32.mrf.mxu0
        %v6556 = vadd.f32 %v6439, %v6555
        %v6557 = vpop.f32.mrf.mxu0
        %v6558 = vpop.f32.mrf.mxu0
        %v6559 = vadd.f32 %v6439, %v6558
        %v6560 = vpop.f32.mrf.mxu0
        %6561 = vmatprep.mubr.bf16.mxu0 0
        %6562 = vmatmul.mubr.bf16.gmra.mxu0 %v6415
        %v6563 = vpop.f32.mrf.mxu0
        %v6564 = vadd.f32 %v6439, %v6563
        %v6565 = vpop.f32.mrf.mxu0
        %v6566 = vpop.f32.mrf.mxu0
        %v6567 = vadd.f32 %v6439, %v6566
        %v6568 = vpop.f32.mrf.mxu0
        %6569 = vmatprep.mubr.bf16.mxu0 0
        %6570 = vmatmul.mubr.bf16.gmra.mxu0 %v6416
        %v6571 = vpop.f32.mrf.mxu0
        %v6572 = vadd.f32 %v6439, %v6571
        %v6573 = vpop.f32.mrf.mxu0
        %v6574 = vpop.f32.mrf.mxu0
        %v6575 = vadd.f32 %v6439, %v6574
        %v6576 = vpop.f32.mrf.mxu0
        %6577 = vmatprep.mubr.bf16.mxu0 0
        %6578 = vmatmul.mubr.bf16.gmra.mxu0 %v6417
        %v6579 = vpop.f32.mrf.mxu0
        %v6580 = vadd.f32 %v6439, %v6579
        %v6581 = vpop.f32.mrf.mxu0
        %v6582 = vpop.f32.mrf.mxu0
        %v6583 = vadd.f32 %v6439, %v6582
        %v6584 = vpop.f32.mrf.mxu0
        %6585 = vdwg.mxu0
        %v6586 = vld [vmem:[%s9] sm:$0x1]
        %v6588 = vlaneseq
        %v6589 = vshrl.u32 %v6588, 7
        %v6590 = vsub.s32 0, %v6589
        %v6591 = vrot.slane %v6586, %v6590
        %v6593 = vmul.f32 %v6524, %v6591
        %v6594 = vmul.f32 %v6527, %v6591
        %v6595 = vmul.f32 %v6532, %v6591
        %v6596 = vmul.f32 %v6535, %v6591
        %v6597 = vmul.f32 %v6540, %v6591
        %v6598 = vmul.f32 %v6543, %v6591
        %v6599 = vmul.f32 %v6548, %v6591
        %v6600 = vmul.f32 %v6551, %v6591
        %v6601 = vmul.f32 %v6556, %v6591
        %v6602 = vmul.f32 %v6559, %v6591
        %v6603 = vmul.f32 %v6564, %v6591
        %v6604 = vmul.f32 %v6567, %v6591
        %v6605 = vmul.f32 %v6572, %v6591
        %v6606 = vmul.f32 %v6575, %v6591
        %v6607 = vmul.f32 %v6580, %v6591
        %v6608 = vmul.f32 %v6583, %v6591
        %v6625 = vrot.slane %v6593, 5
        %v6626 = vrot.slane %v6594, 5
        %v6627 = vsel %vm1022, %v6625, %v6626
        %v6628 = vrot.slane %v6595, 5
        %v6629 = vrot.slane %v6596, 5
        %v6630 = vsel %vm1022, %v6628, %v6629
        %v6631 = vrot.slane %v6597, 5
        %v6632 = vrot.slane %v6598, 5
        %v6633 = vsel %vm1022, %v6631, %v6632
        %v6634 = vrot.slane %v6599, 5
        %v6635 = vrot.slane %v6600, 5
        %v6636 = vsel %vm1022, %v6634, %v6635
        %v6637 = vrot.slane %v6601, 5
        %v6638 = vrot.slane %v6602, 5
        %v6639 = vsel %vm1022, %v6637, %v6638
        %v6640 = vrot.slane %v6603, 5
        %v6641 = vrot.slane %v6604, 5
        %v6642 = vsel %vm1022, %v6640, %v6641
        %v6643 = vrot.slane %v6605, 5
        %v6644 = vrot.slane %v6606, 5
        %v6645 = vsel %vm1022, %v6643, %v6644
        %v6646 = vrot.slane %v6607, 5
        %v6647 = vrot.slane %v6608, 5
        %v6648 = vsel %vm1022, %v6646, %v6647
        %v6673 = vadd.f32 %v386, %v6625
        %v6674 = vadd.f32 %v387, %v6627
        %v6675 = vadd.f32 %v388, %v6626
        %v6676 = vadd.f32 %v389, %v6628
        %v6677 = vadd.f32 %v390, %v6630
        %v6678 = vadd.f32 %v391, %v6629
        %v6679 = vadd.f32 %v392, %v6631
        %v6680 = vadd.f32 %v393, %v6633
        %v6681 = vadd.f32 %v394, %v6632
        %v6682 = vadd.f32 %v395, %v6634
        %v6683 = vadd.f32 %v396, %v6636
        %v6684 = vadd.f32 %v397, %v6635
        %v6685 = vadd.f32 %v398, %v6637
        %v6686 = vadd.f32 %v399, %v6639
        %v6687 = vadd.f32 %v400, %v6638
        %v6688 = vadd.f32 %v401, %v6640
        %v6689 = vadd.f32 %v402, %v6642
        %v6690 = vadd.f32 %v403, %v6641
        %v6691 = vadd.f32 %v404, %v6643
        %v6692 = vadd.f32 %v405, %v6645
        %v6693 = vadd.f32 %v406, %v6644
        %v6694 = vadd.f32 %v407, %v6646
        %v6695 = vadd.f32 %v408, %v6648
        %v6696 = vadd.f32 %v409, %v6647
        %6697 = vst [vmem:[%s366 - $0x3] sm:$0xf8] %v6673
        %6698 = vst [vmem:[%s366 + $0x5] sm:$0xff] %v6674
        %6699 = vst [vmem:[%s366 + $0xd] sm:$0x7] %v6675
        %6700 = vst [vmem:[%s366 + $0xd] sm:$0xf8] %v6676
        %6701 = vst [vmem:[%s366 + $0x15] sm:$0xff] %v6677
        %6702 = vst [vmem:[%s366 + $0x1d] sm:$0x7] %v6678
        %6703 = vst [vmem:[%s366 + $0x1d] sm:$0xf8] %v6679
        %6704 = vst [vmem:[%s366 + $0x25] sm:$0xff] %v6680
        %6705 = vst [vmem:[%s366 + $0x2d] sm:$0x7] %v6681
        %6706 = vst [vmem:[%s366 + $0x2d] sm:$0xf8] %v6682
        %6707 = vst [vmem:[%s366 + $0x35] sm:$0xff] %v6683
        %6708 = vst [vmem:[%s366 + $0x3d] sm:$0x7] %v6684
        %6709 = vst [vmem:[%s366 + $0x3d] sm:$0xf8] %v6685
        %6710 = vst [vmem:[%s366 + $0x45] sm:$0xff] %v6686
        %6711 = vst [vmem:[%s366 + $0x4d] sm:$0x7] %v6687
        %6712 = vst [vmem:[%s366 + $0x4d] sm:$0xf8] %v6688
        %6713 = vst [vmem:[%s366 + $0x55] sm:$0xff] %v6689
        %6714 = vst [vmem:[%s366 + $0x5d] sm:$0x7] %v6690
        %6715 = vst [vmem:[%s366 + $0x5d] sm:$0xf8] %v6691
        %6716 = vst [vmem:[%s366 + $0x65] sm:$0xff] %v6692
        %6717 = vst [vmem:[%s366 + $0x6d] sm:$0x7] %v6693
        %6718 = vst [vmem:[%s366 + $0x6d] sm:$0xf8] %v6694
        %6719 = vst [vmem:[%s366 + $0x75] sm:$0xff] %v6695
        %6720 = vst [vmem:[%s366 + $0x7d] sm:$0x7] %v6696
        %s6721 = sand.u32 %s261, 1
        %s6722 = scalar_lea.sflag [#allocation3], %s6721
        %s6723 = sand.u32 %s261, 1
        %s6724 = smul.addr %s6723, 128
        %s6725 = scalar_lea.vmem [#allocation2], %s6724
        // Predicated region
        $region61: #{tpu_custom_call.1} parent=59 // pred_check
          %p6726 = pneg %p271
        $region62: #{tpu_custom_call.1} parent=59 // pred_check_branch
          %6728 = sbr.rel (%p6726) target = $region64
        $region63: #{tpu_custom_call.1} parent=59 // pred_region
          %s6729 = smul.u32 8, %s29
          %s6731 = ssub.s32 2048, 2048
          %6732 = vsyncadd %s6722, %s6731
          %s6733 = smul.addr %s6729, 2
          %s6734 = smul.addr %s28, 32
          %s6735 = sadd.s32 %s6733, %s6734
          %s6736 = smul.addr %s6735, 128
          %s6737 = scalar_lea.hbm %s10, %s6736
          %s6738 = sshll.u32 %s6725, 4
          %s6739 = int_to_ptr.vmem [resolvable:$true] %s6738
          %6744 = dma.vmem_to_hbm [thread:$0]  %s6739, 2048, %s6737, %s6722, 128, 128, 8
        $region64: #{tpu_custom_call.1} parent=59 // pred_fallthru
          _
      $region60: #{tpu_custom_call.1} parent=5 // pred_fallthru
        _
      %p6745 = scmp.le.s32.totalorder 2, %s19
      // Predicated region
      $region65: #{tpu_custom_call.1} parent=5 // pred_check
        %p6746 = pneg %p6745
      $region66: #{tpu_custom_call.1} parent=5 // pred_check_branch
        %6748 = sbr.rel (%p6746) target = $region68
      $region67: #{tpu_custom_call.1} parent=5 // pred_region
        %s6749 = ssub.s32 %s19, 2
        // Predicated region
        $region69: #{tpu_custom_call.1} parent=67 // pred_check
          %p6750 = pneg %p277
        $region70: #{tpu_custom_call.1} parent=67 // pred_check_branch
          %6752 = sbr.rel (%p6750) target = $region72
        $region71: #{tpu_custom_call.1} parent=67 // pred_region
          %s6753 = sand.u32 %s262, 1
          %s6754 = scalar_lea.sflag [#allocation3], %s6753
          %s6755 = sand.u32 %s262, 1
          %s6756 = smul.addr %s6755, 128
          %s6757 = scalar_lea.vmem [#allocation2], %s6756
          %6758 = dma.done %s6754, 2048
        $region72: #{tpu_custom_call.1} parent=67 // pred_fallthru
          _
      $region68: #{tpu_custom_call.1} parent=5 // pred_fallthru
        _
    $region6: #{tpu_custom_call.1} parent=1 // loop_footer
      %s23 = sadd.s32 1, %s19
    $region7: #{tpu_custom_call.1} parent=1 // loop_footer_branch
      %18 = sbr.rel target = $region3
    $region8: #{tpu_custom_call.1} parent=1 // loop_exit
      _
    %6759 = vsyncpa [#allocation3], 1
    %s6760 = scalar_lea.sflag [#allocation3], 1
    %6761 = vsyncpa %s6760, 1

</llo_original>
